<compile_context>
chip_gen: v6e
topology: v6e:2x2x1
jax: 0.10.0
libtpu: 0.0.40
codegen_flags: <defaults>
</compile_context>

<pallas_src>
import functools

import jax
import jax.numpy as jnp
from jax import lax
from jax.experimental import pallas as pl
from jax.experimental.pallas import tpu as pltpu


_VMEM_LIMIT = 48 * 1024 * 1024  # < v7x 64 MiB physical; > v5e/v6e scoped defaults
_LN_EPS = 1e-12                 # BERT LayerNorm eps


def _layer_norm(x, gamma, beta):
    mean = jnp.mean(x, axis=-1, keepdims=True)
    var = jnp.mean(jnp.square(x - mean), axis=-1, keepdims=True)
    return (x - mean) * lax.rsqrt(var + _LN_EPS) * gamma + beta


# ----------------------------------------------------------------------------
# Fused BERT stack kernel.
#   grid = (B // bb, num_layers); batch axis "parallel", layer axis "arbitrary".
#   Scratch:
#     h_ref   : (bb, S, D) f32   resident hidden state across the layer axis
#     ctx_ref : (bb*S, D) f32    per-layer attention-context assembly buffer
# ----------------------------------------------------------------------------
def _bert_stack_kernel(nh,
                       we_ref, pe_ref, te_ref, eg_ref, eb_ref, mask_ref,
                       wq_ref, bq_ref, wk_ref, bk_ref, wv_ref, bv_ref,
                       wo_ref, bo_ref, l1g_ref, l1b_ref,
                       w1_ref, b1_ref, w2_ref, b2_ref, l2g_ref, l2b_ref,
                       cw_ref, cb_ref,
                       logits_ref,
                       h_ref, ctx_ref):
    layer = pl.program_id(1)
    num_layers = pl.num_programs(1)
    bb, S, D = h_ref.shape
    M = bb * S
    hd = D // nh
    scale = 1.0 / float(hd) ** 0.5

    # -- Layer 0: embeddings sum + LayerNorm folded into the stack kernel.
    @pl.when(layer == 0)
    def _():
        e = (we_ref[...].astype(jnp.float32)
             + pe_ref[...].astype(jnp.float32)
             + te_ref[...].astype(jnp.float32))
        h_ref[...] = _layer_norm(e, eg_ref[...], eb_ref[...])

    x = h_ref[...]                              # (bb, S, D) f32, VMEM-resident
    x2d = x.reshape(M, D)                       # free reshape (leading dims merge)
    xb = x2d.astype(jnp.bfloat16)
    bias = mask_ref[...]                        # (bb, 1, S) additive mask bias

    # -- QKV projections at M = bb*S rows (fills the MXU M dimension).
    q = jnp.dot(xb, wq_ref[0], preferred_element_type=jnp.float32) + bq_ref[0]
    k = jnp.dot(xb, wk_ref[0], preferred_element_type=jnp.float32) + bk_ref[0]
    v = jnp.dot(xb, wv_ref[0], preferred_element_type=jnp.float32) + bv_ref[0]
    q = q * scale                               # fold 1/sqrt(hd) once into q
    qb = q.astype(jnp.bfloat16)
    kb = k.astype(jnp.bfloat16)
    vb = v.astype(jnp.bfloat16)

    # -- Multi-head attention: static unroll over heads (nh is a small Python
    #    constant); each head's matmuls are batched over the bb examples with
    #    leading-batch einsums.  Context written to VMEM scratch (no concat).
    for h in range(nh):
        lo = h * hd
        qh = qb[:, lo:lo + hd].reshape(bb, S, hd)
        kh = kb[:, lo:lo + hd].reshape(bb, S, hd)
        vh = vb[:, lo:lo + hd].reshape(bb, S, hd)
        s = jnp.einsum('bqd,bkd->bqk', qh, kh,
                       preferred_element_type=jnp.float32)       # (bb, S, S)
        s = s + bias
        m = jnp.max(s, axis=-1, keepdims=True)
        e = jnp.exp(s - m)
        p = e * pl.reciprocal(jnp.sum(e, axis=-1, keepdims=True), approx=True)
        c = jnp.einsum('bqk,bkd->bqd', p.astype(jnp.bfloat16), vh,
                       preferred_element_type=jnp.float32)       # (bb, S, hd)
        ctx_ref[:, lo:lo + hd] = c.reshape(M, hd)

    attn = (jnp.dot(ctx_ref[...].astype(jnp.bfloat16), wo_ref[0],
                    preferred_element_type=jnp.float32) + bo_ref[0])
    x1 = _layer_norm(x2d + attn, l1g_ref[0], l1b_ref[0])         # (M, D)

    # -- Feed-forward at M = bb*S rows.
    hmid = (jnp.dot(x1.astype(jnp.bfloat16), w1_ref[0],
                    preferred_element_type=jnp.float32) + b1_ref[0])
    # TODO(synk): pretrained BERT uses exact erf GELU; tanh approximation kept
    # for guaranteed Mosaic lowering (weights are random in this demo).
    hmid = jax.nn.gelu(hmid)
    ffn = (jnp.dot(hmid.astype(jnp.bfloat16), w2_ref[0],
                   preferred_element_type=jnp.float32) + b2_ref[0])
    out = _layer_norm(x1 + ffn, l2g_ref[0], l2b_ref[0])          # (M, D)

    out3 = out.reshape(bb, S, D)
    h_ref[...] = out3                            # stays resident for next layer

    # -- Last layer: fused AvgPool2d((maxlen,1)).squeeze() + classifier Linear.
    #    NOTE: the mean deliberately includes padded positions, exactly like
    #    the AvgPool2d spec in the PyTorch module.
    @pl.when(layer == num_layers - 1)
    def _():
        pooled = jnp.mean(out3, axis=1)                           # (bb, D)
        logits_ref[...] = (jnp.dot(pooled.astype(jnp.bfloat16), cw_ref[...],
                                   preferred_element_type=jnp.float32)
                           + cb_ref[...])


# ----------------------------------------------------------------------------
# Parameters (per-layer weights stacked along a leading L axis).
# ----------------------------------------------------------------------------
def init_params(key, *, vocab, type_vocab, max_pos, embed_dim, num_heads,
                ffn_dim, num_layers, num_labels):
    del num_heads  # heads only affect the kernel's view of the same weights
    D, F, L = embed_dim, ffn_dim, num_layers
    std = 0.02

    def nrm(k, shape, dtype):
        return (std * jax.random.normal(k, shape, jnp.float32)).astype(dtype)

    keys = jax.random.split(key, 11)
    params = {
        "word_emb": nrm(keys[0], (vocab, D), jnp.bfloat16),
        "pos_emb":  nrm(keys[1], (max_pos, D), jnp.bfloat16),
        "type_emb": nrm(keys[2], (type_vocab, D), jnp.bfloat16),
        "emb_ln_g": jnp.ones((1, D), jnp.float32),
        "emb_ln_b": jnp.zeros((1, D), jnp.float32),
        "wq": nrm(keys[3], (L, D, D), jnp.bfloat16),
        "bq": jnp.zeros((L, 1, D), jnp.float32),
        "wk": nrm(keys[4], (L, D, D), jnp.bfloat16),
        "bk": jnp.zeros((L, 1, D), jnp.float32),
        "wv": nrm(keys[5], (L, D, D), jnp.bfloat16),
        "bv": jnp.zeros((L, 1, D), jnp.float32),
        "wo": nrm(keys[6], (L, D, D), jnp.bfloat16),
        "bo": jnp.zeros((L, 1, D), jnp.float32),
        "ln1_g": jnp.ones((L, 1, D), jnp.float32),
        "ln1_b": jnp.zeros((L, 1, D), jnp.float32),
        "w1": nrm(keys[7], (L, D, F), jnp.bfloat16),
        "b1": jnp.zeros((L, 1, F), jnp.float32),
        "w2": nrm(keys[8], (L, F, D), jnp.bfloat16),
        "b2": jnp.zeros((L, 1, D), jnp.float32),
        "ln2_g": jnp.ones((L, 1, D), jnp.float32),
        "ln2_b": jnp.zeros((L, 1, D), jnp.float32),
        "cls_w": nrm(keys[9], (D, num_labels), jnp.bfloat16),
        "cls_b": nrm(keys[10], (1, num_labels), jnp.float32),
    }
    return params


# ----------------------------------------------------------------------------
# Full model wrapper: embedding gathers (plain JAX) + one fused pallas_call.
# ----------------------------------------------------------------------------
def bert_classification_model(params, input_ids, token_type_ids=None,
                              attention_mask=None, *, num_heads=2):
    B, S = input_ids.shape
    D = params["word_emb"].shape[1]
    F = params["w1"].shape[2]
    L = params["wq"].shape[0]
    NL = params["cls_w"].shape[1]
    assert D % num_heads == 0

    if token_type_ids is None:
        token_type_ids = jnp.zeros((B, S), jnp.int32)
    if attention_mask is None:
        attention_mask = jnp.ones((B, S), jnp.int32)

    # HF-BERT additive attention bias: 0 for valid, -1e4 for padding.
    mask_bias = ((1.0 - attention_mask.astype(jnp.float32))
                 * -10000.0).reshape(B, 1, S)

    # TODO(synk): embedding gathers stay in plain JAX (data-dependent lookup);
    # they could be moved in-kernel via scalar prefetch for very long inputs.
    we = jnp.take(params["word_emb"], input_ids, axis=0)          # (B,S,D) bf16
    pe = params["pos_emb"][:S][None, :, :]                        # (1,S,D) bf16
    te = jnp.take(params["type_emb"], token_type_ids, axis=0)     # (B,S,D) bf16

    # Batch block size: whole batch for small B, multiples of 8 otherwise
    # (keeps the (bb, num_labels) output block sublane-aligned).
    bb = B if B <= 8 else 8
    assert B % bb == 0, "batch must be a multiple of the batch block"
    grid = (B // bb, L)

    bmap = lambda b, l: (b, 0, 0)       # batch-indexed activations / mask
    lmap = lambda b, l: (l, 0, 0)       # layer-indexed (stacked) weights
    c3 = lambda b, l: (0, 0, 0)
    c2 = lambda b, l: (0, 0)

    in_specs = [
        pl.BlockSpec((bb, S, D), bmap),      # word embeddings
        pl.BlockSpec((1, S, D), c3),         # position embeddings
        pl.BlockSpec((bb, S, D), bmap),      # token-type embeddings
        pl.BlockSpec((1, D), c2),            # emb LN gamma
        pl.BlockSpec((1, D), c2),            # emb LN beta
        pl.BlockSpec((bb, 1, S), bmap),      # attention mask bias
        pl.BlockSpec((1, D, D), lmap),       # wq
        pl.BlockSpec((1, 1, D), lmap),       # bq
        pl.BlockSpec((1, D, D), lmap),       # wk
        pl.BlockSpec((1, 1, D), lmap),       # bk
        pl.BlockSpec((1, D, D), lmap),       # wv
        pl.BlockSpec((1, 1, D), lmap),       # bv
        pl.BlockSpec((1, D, D), lmap),       # wo
        pl.BlockSpec((1, 1, D), lmap),       # bo
        pl.BlockSpec((1, 1, D), lmap),       # ln1 gamma
        pl.BlockSpec((1, 1, D), lmap),       # ln1 beta
        pl.BlockSpec((1, D, F), lmap),       # w1
        pl.BlockSpec((1, 1, F), lmap),       # b1
        pl.BlockSpec((1, F, D), lmap),       # w2
        pl.BlockSpec((1, 1, D), lmap),       # b2
        pl.BlockSpec((1, 1, D), lmap),       # ln2 gamma
        pl.BlockSpec((1, 1, D), lmap),       # ln2 beta
        pl.BlockSpec((D, NL), c2),           # classifier weight
        pl.BlockSpec((1, NL), c2),           # classifier bias
    ]

    return pl.pallas_call(
        functools.partial(_bert_stack_kernel, num_heads),
        out_shape=jax.ShapeDtypeStruct((B, NL), jnp.float32),
        grid=grid,
        in_specs=in_specs,
        out_specs=pl.BlockSpec((bb, NL), lambda b, l: (b, 0)),
        scratch_shapes=[
            pltpu.VMEM((bb, S, D), jnp.float32),     # resident hidden state
            pltpu.VMEM((bb * S, D), jnp.float32),    # attention-context buffer
        ],
        compiler_params=pltpu.CompilerParams(
            dimension_semantics=("parallel", "arbitrary"),
            vmem_limit_bytes=_VMEM_LIMIT),
    )(we, pe, te, params["emb_ln_g"], params["emb_ln_b"], mask_bias,
      params["wq"], params["bq"], params["wk"], params["bk"],
      params["wv"], params["bv"], params["wo"], params["bo"],
      params["ln1_g"], params["ln1_b"],
      params["w1"], params["b1"], params["w2"], params["b2"],
      params["ln2_g"], params["ln2_b"],
      params["cls_w"], params["cls_b"])


if __name__ == "__main__":
    # Small shapes consistent with the module's forward pass.
    B = 2
    MAXLEN = 8          # args.maxlen
    EMBED_DIM = 128     # lane-dense stand-in for 768
    NUM_HEADS = 2
    FFN_DIM = 256
    NUM_LAYERS = 2
    NUM_LABELS = 2
    VOCAB = 128

    key = jax.random.PRNGKey(0)
    k_params, k_ids = jax.random.split(key)
    params = init_params(k_params, vocab=VOCAB, type_vocab=2, max_pos=MAXLEN,
                         embed_dim=EMBED_DIM, num_heads=NUM_HEADS,
                         ffn_dim=FFN_DIM, num_layers=NUM_LAYERS,
                         num_labels=NUM_LABELS)

    input_ids = jax.random.randint(k_ids, (B, MAXLEN), 0, VOCAB, dtype=jnp.int32)
    token_type_ids = jnp.zeros((B, MAXLEN), jnp.int32)
    attention_mask = jnp.ones((B, MAXLEN), jnp.int32)

    logits = bert_classification_model(params, input_ids, token_type_ids,
                                       attention_mask, num_heads=NUM_HEADS)
    logits = jax.block_until_ready(logits)
    assert logits.shape == (B, NUM_LABELS)
    print("KERNEL_OK")
</pallas_src>

<mosaic_0001>
module attributes {stable_mosaic.version = 11 : i64} {
  func.func @_bert_stack_kernel(%arg0: i32, %arg1: i32, %arg2: memref<2x8x128xbf16, #tpu.memory_space<vmem>>, %arg3: memref<1x8x128xbf16, #tpu.memory_space<vmem>>, %arg4: memref<2x8x128xbf16, #tpu.memory_space<vmem>>, %arg5: memref<1x128xf32, #tpu.memory_space<vmem>>, %arg6: memref<1x128xf32, #tpu.memory_space<vmem>>, %arg7: memref<2x1x8xf32, #tpu.memory_space<vmem>>, %arg8: memref<1x128x128xbf16, #tpu.memory_space<vmem>>, %arg9: memref<1x1x128xf32, #tpu.memory_space<vmem>>, %arg10: memref<1x128x128xbf16, #tpu.memory_space<vmem>>, %arg11: memref<1x1x128xf32, #tpu.memory_space<vmem>>, %arg12: memref<1x128x128xbf16, #tpu.memory_space<vmem>>, %arg13: memref<1x1x128xf32, #tpu.memory_space<vmem>>, %arg14: memref<1x128x128xbf16, #tpu.memory_space<vmem>>, %arg15: memref<1x1x128xf32, #tpu.memory_space<vmem>>, %arg16: memref<1x1x128xf32, #tpu.memory_space<vmem>>, %arg17: memref<1x1x128xf32, #tpu.memory_space<vmem>>, %arg18: memref<1x128x256xbf16, #tpu.memory_space<vmem>>, %arg19: memref<1x1x256xf32, #tpu.memory_space<vmem>>, %arg20: memref<1x256x128xbf16, #tpu.memory_space<vmem>>, %arg21: memref<1x1x128xf32, #tpu.memory_space<vmem>>, %arg22: memref<1x1x128xf32, #tpu.memory_space<vmem>>, %arg23: memref<1x1x128xf32, #tpu.memory_space<vmem>>, %arg24: memref<128x2xbf16, #tpu.memory_space<vmem>>, %arg25: memref<1x2xf32, #tpu.memory_space<vmem>>, %arg26: memref<2x2xf32, #tpu.memory_space<vmem>>, %arg27: memref<2x8x128xf32, #tpu.memory_space<vmem>>, %arg28: memref<16x128xf32, #tpu.memory_space<vmem>>) attributes {dimension_semantics = [#tpu.dimension_semantics<parallel>, #tpu.dimension_semantics<arbitrary>], iteration_bounds = array<i64: 1, 2>, scalar_prefetch = 0 : i64, scratch_operands = 2 : i64, tpu.core_type = #tpu.core_type<tc>, window_params = [{transform_indices = @transform_0, window_bounds = array<i64: 2, 8, 128>}, {pipeline_mode = #tpu.pipeline_mode<synchronous>, transform_indices = @transform_1, window_bounds = array<i64: 1, 8, 128>}, {transform_indices = @transform_2, window_bounds = array<i64: 2, 8, 128>}, {pipeline_mode = #tpu.pipeline_mode<synchronous>, transform_indices = @transform_3, window_bounds = array<i64: 1, 128>}, {pipeline_mode = #tpu.pipeline_mode<synchronous>, transform_indices = @transform_4, window_bounds = array<i64: 1, 128>}, {transform_indices = @transform_5, window_bounds = array<i64: 2, 1, 8>}, {transform_indices = @transform_6, window_bounds = array<i64: 1, 128, 128>}, {transform_indices = @transform_7, window_bounds = array<i64: 1, 1, 128>}, {transform_indices = @transform_8, window_bounds = array<i64: 1, 128, 128>}, {transform_indices = @transform_9, window_bounds = array<i64: 1, 1, 128>}, {transform_indices = @transform_10, window_bounds = array<i64: 1, 128, 128>}, {transform_indices = @transform_11, window_bounds = array<i64: 1, 1, 128>}, {transform_indices = @transform_12, window_bounds = array<i64: 1, 128, 128>}, {transform_indices = @transform_13, window_bounds = array<i64: 1, 1, 128>}, {transform_indices = @transform_14, window_bounds = array<i64: 1, 1, 128>}, {transform_indices = @transform_15, window_bounds = array<i64: 1, 1, 128>}, {transform_indices = @transform_16, window_bounds = array<i64: 1, 128, 256>}, {transform_indices = @transform_17, window_bounds = array<i64: 1, 1, 256>}, {transform_indices = @transform_18, window_bounds = array<i64: 1, 256, 128>}, {transform_indices = @transform_19, window_bounds = array<i64: 1, 1, 128>}, {transform_indices = @transform_20, window_bounds = array<i64: 1, 1, 128>}, {transform_indices = @transform_21, window_bounds = array<i64: 1, 1, 128>}, {pipeline_mode = #tpu.pipeline_mode<synchronous>, transform_indices = @transform_22, window_bounds = array<i64: 128, 2>}, {pipeline_mode = #tpu.pipeline_mode<synchronous>, transform_indices = @transform_23, window_bounds = array<i64: 1, 2>}, {transform_indices = @transform_24, window_bounds = array<i64: 2, 2>}]} {
    %c0_i32 = arith.constant 0 : i32
    %0 = arith.cmpi eq, %arg1, %c0_i32 : i32
    %1 = arith.extui %0 : i1 to i32
    %c0_i32_0 = arith.constant 0 : i32
    %2 = arith.cmpi ne, %1, %c0_i32_0 : i32
    scf.if %2 {
      %c0_91 = arith.constant 0 : index
      %c0_92 = arith.constant 0 : index
      %c0_93 = arith.constant 0 : index
      %176 = vector.load %arg2[%c0_91, %c0_92, %c0_93] : memref<2x8x128xbf16, #tpu.memory_space<vmem>>, vector<2x8x128xbf16>
      %177 = arith.extf %176 : vector<2x8x128xbf16> to vector<2x8x128xf32>
      %c0_94 = arith.constant 0 : index
      %c0_95 = arith.constant 0 : index
      %c0_96 = arith.constant 0 : index
      %178 = vector.load %arg3[%c0_94, %c0_95, %c0_96] : memref<1x8x128xbf16, #tpu.memory_space<vmem>>, vector<1x8x128xbf16>
      %179 = arith.extf %178 : vector<1x8x128xbf16> to vector<1x8x128xf32>
      %180 = vector.broadcast %179 : vector<1x8x128xf32> to vector<2x8x128xf32>
      %181 = arith.addf %177, %180 : vector<2x8x128xf32>
      %c0_97 = arith.constant 0 : index
      %c0_98 = arith.constant 0 : index
      %c0_99 = arith.constant 0 : index
      %182 = vector.load %arg4[%c0_97, %c0_98, %c0_99] : memref<2x8x128xbf16, #tpu.memory_space<vmem>>, vector<2x8x128xbf16>
      %183 = arith.extf %182 : vector<2x8x128xbf16> to vector<2x8x128xf32>
      %184 = arith.addf %181, %183 : vector<2x8x128xf32>
      %c0_100 = arith.constant 0 : index
      %c0_101 = arith.constant 0 : index
      %185 = vector.load %arg5[%c0_100, %c0_101] : memref<1x128xf32, #tpu.memory_space<vmem>>, vector<1x128xf32>
      %c0_102 = arith.constant 0 : index
      %c0_103 = arith.constant 0 : index
      %186 = vector.load %arg6[%c0_102, %c0_103] : memref<1x128xf32, #tpu.memory_space<vmem>>, vector<1x128xf32>
      %cst_104 = arith.constant dense<0.000000e+00> : vector<2x8xf32>
      %187 = vector.multi_reduction <add>, %184, %cst_104 [2] : vector<2x8x128xf32> to vector<2x8xf32>
      %188 = vector.shape_cast %187 : vector<2x8xf32> to vector<2x8x1xf32>
      %cst_105 = arith.constant 1.280000e+02 : f32
      %189 = vector.broadcast %cst_105 : f32 to vector<2x8x1xf32>
      %190 = arith.divf %188, %189 : vector<2x8x1xf32>
      %191 = vector.broadcast %190 : vector<2x8x1xf32> to vector<2x8x128xf32>
      %192 = arith.subf %184, %191 : vector<2x8x128xf32>
      %193 = arith.mulf %192, %192 : vector<2x8x128xf32>
      %cst_106 = arith.constant dense<0.000000e+00> : vector<2x8xf32>
      %194 = vector.multi_reduction <add>, %193, %cst_106 [2] : vector<2x8x128xf32> to vector<2x8xf32>
      %195 = vector.shape_cast %194 : vector<2x8xf32> to vector<2x8x1xf32>
      %cst_107 = arith.constant 1.280000e+02 : f32
      %196 = vector.broadcast %cst_107 : f32 to vector<2x8x1xf32>
      %197 = arith.divf %195, %196 : vector<2x8x1xf32>
      %198 = vector.broadcast %190 : vector<2x8x1xf32> to vector<2x8x128xf32>
      %199 = arith.subf %184, %198 : vector<2x8x128xf32>
      %cst_108 = arith.constant 9.99999996E-13 : f32
      %200 = vector.broadcast %cst_108 : f32 to vector<2x8x1xf32>
      %201 = arith.addf %197, %200 : vector<2x8x1xf32>
      %202 = math.rsqrt %201 : vector<2x8x1xf32>
      %203 = vector.broadcast %202 : vector<2x8x1xf32> to vector<2x8x128xf32>
      %204 = arith.mulf %199, %203 : vector<2x8x128xf32>
      %205 = vector.shape_cast %185 : vector<1x128xf32> to vector<1x1x128xf32>
      %206 = vector.broadcast %205 : vector<1x1x128xf32> to vector<2x8x128xf32>
      %207 = arith.mulf %204, %206 : vector<2x8x128xf32>
      %208 = vector.shape_cast %186 : vector<1x128xf32> to vector<1x1x128xf32>
      %209 = vector.broadcast %208 : vector<1x1x128xf32> to vector<2x8x128xf32>
      %210 = arith.addf %207, %209 : vector<2x8x128xf32>
      %c0_109 = arith.constant 0 : index
      %c0_110 = arith.constant 0 : index
      %c0_111 = arith.constant 0 : index
      %211 = vector.load %arg27[%c0_109, %c0_110, %c0_111] : memref<2x8x128xf32, #tpu.memory_space<vmem>>, vector<2x8x128xf32>
      tpu.vector_store %arg27[%c0_109, %c0_110, %c0_111], %210 {strides = array<i32>} : memref<2x8x128xf32, #tpu.memory_space<vmem>>, vector<2x8x128xf32>,
    } else {
    }
    %c0 = arith.constant 0 : index
    %c0_1 = arith.constant 0 : index
    %c0_2 = arith.constant 0 : index
    %3 = vector.load %arg27[%c0, %c0_1, %c0_2] : memref<2x8x128xf32, #tpu.memory_space<vmem>>, vector<2x8x128xf32>
    %4 = vector.shape_cast %3 : vector<2x8x128xf32> to vector<16x128xf32>
    %5 = arith.truncf %4 : vector<16x128xf32> to vector<16x128xbf16>
    %c0_3 = arith.constant 0 : index
    %c0_4 = arith.constant 0 : index
    %c0_5 = arith.constant 0 : index
    %6 = vector.load %arg7[%c0_3, %c0_4, %c0_5] : memref<2x1x8xf32, #tpu.memory_space<vmem>>, vector<2x1x8xf32>
    %c0_6 = arith.constant 0 : index
    %c0_7 = arith.constant 0 : index
    %c0_8 = arith.constant 0 : index
    %7 = vector.load %arg8[%c0_6, %c0_7, %c0_8] : memref<1x128x128xbf16, #tpu.memory_space<vmem>>, vector<1x128x128xbf16>
    %8 = vector.shape_cast %7 : vector<1x128x128xbf16> to vector<128x128xbf16>
    %cst = arith.constant dense<0.000000e+00> : vector<16x128xf32>
    %9 = tpu.matmul %5, %8, %cst {dimension_numbers = #tpu.dot_dimension_numbers<[1], [0], [0], [1], [0, 0, 1, 1], [], []>} : vector<16x128xbf16>, vector<128x128xbf16>, vector<16x128xf32> -> vector<16x128xf32>
    %c0_9 = arith.constant 0 : index
    %c0_10 = arith.constant 0 : index
    %c0_11 = arith.constant 0 : index
    %10 = vector.load %arg9[%c0_9, %c0_10, %c0_11] : memref<1x1x128xf32, #tpu.memory_space<vmem>>, vector<1x1x128xf32>
    %11 = vector.shape_cast %10 : vector<1x1x128xf32> to vector<1x128xf32>
    %12 = vector.broadcast %11 : vector<1x128xf32> to vector<16x128xf32>
    %13 = arith.addf %9, %12 : vector<16x128xf32>
    %c0_12 = arith.constant 0 : index
    %c0_13 = arith.constant 0 : index
    %c0_14 = arith.constant 0 : index
    %14 = vector.load %arg10[%c0_12, %c0_13, %c0_14] : memref<1x128x128xbf16, #tpu.memory_space<vmem>>, vector<1x128x128xbf16>
    %15 = vector.shape_cast %14 : vector<1x128x128xbf16> to vector<128x128xbf16>
    %cst_15 = arith.constant dense<0.000000e+00> : vector<16x128xf32>
    %16 = tpu.matmul %5, %15, %cst_15 {dimension_numbers = #tpu.dot_dimension_numbers<[1], [0], [0], [1], [0, 0, 1, 1], [], []>} : vector<16x128xbf16>, vector<128x128xbf16>, vector<16x128xf32> -> vector<16x128xf32>
    %c0_16 = arith.constant 0 : index
    %c0_17 = arith.constant 0 : index
    %c0_18 = arith.constant 0 : index
    %17 = vector.load %arg11[%c0_16, %c0_17, %c0_18] : memref<1x1x128xf32, #tpu.memory_space<vmem>>, vector<1x1x128xf32>
    %18 = vector.shape_cast %17 : vector<1x1x128xf32> to vector<1x128xf32>
    %19 = vector.broadcast %18 : vector<1x128xf32> to vector<16x128xf32>
    %20 = arith.addf %16, %19 : vector<16x128xf32>
    %c0_19 = arith.constant 0 : index
    %c0_20 = arith.constant 0 : index
    %c0_21 = arith.constant 0 : index
    %21 = vector.load %arg12[%c0_19, %c0_20, %c0_21] : memref<1x128x128xbf16, #tpu.memory_space<vmem>>, vector<1x128x128xbf16>
    %22 = vector.shape_cast %21 : vector<1x128x128xbf16> to vector<128x128xbf16>
    %cst_22 = arith.constant dense<0.000000e+00> : vector<16x128xf32>
    %23 = tpu.matmul %5, %22, %cst_22 {dimension_numbers = #tpu.dot_dimension_numbers<[1], [0], [0], [1], [0, 0, 1, 1], [], []>} : vector<16x128xbf16>, vector<128x128xbf16>, vector<16x128xf32> -> vector<16x128xf32>
    %c0_23 = arith.constant 0 : index
    %c0_24 = arith.constant 0 : index
    %c0_25 = arith.constant 0 : index
    %24 = vector.load %arg13[%c0_23, %c0_24, %c0_25] : memref<1x1x128xf32, #tpu.memory_space<vmem>>, vector<1x1x128xf32>
    %25 = vector.shape_cast %24 : vector<1x1x128xf32> to vector<1x128xf32>
    %26 = vector.broadcast %25 : vector<1x128xf32> to vector<16x128xf32>
    %27 = arith.addf %23, %26 : vector<16x128xf32>
    %cst_26 = arith.constant 1.250000e-01 : f32
    %28 = vector.broadcast %cst_26 : f32 to vector<16x128xf32>
    %29 = arith.mulf %13, %28 : vector<16x128xf32>
    %30 = arith.truncf %29 : vector<16x128xf32> to vector<16x128xbf16>
    %31 = arith.truncf %20 : vector<16x128xf32> to vector<16x128xbf16>
    %32 = arith.truncf %27 : vector<16x128xf32> to vector<16x128xbf16>
    %33 = vector.extract_strided_slice %30 {offsets = [0, 0], sizes = [16, 64], strides = [1, 1]} : vector<16x128xbf16> to vector<16x64xbf16>
    %34 = vector.shape_cast %33 : vector<16x64xbf16> to vector<2x8x64xbf16>
    %35 = vector.extract_strided_slice %31 {offsets = [0, 0], sizes = [16, 64], strides = [1, 1]} : vector<16x128xbf16> to vector<16x64xbf16>
    %36 = vector.shape_cast %35 : vector<16x64xbf16> to vector<2x8x64xbf16>
    %37 = vector.extract_strided_slice %32 {offsets = [0, 0], sizes = [16, 64], strides = [1, 1]} : vector<16x128xbf16> to vector<16x64xbf16>
    %38 = vector.shape_cast %37 : vector<16x64xbf16> to vector<2x8x64xbf16>
    "tpu.trace_start"() <{level = 10 : i32, message = "bqd,bkd->bqk"}> : () -> ()
    %cst_27 = arith.constant dense<0.000000e+00> : vector<2x8x8xf32>
    %39 = tpu.matmul %34, %36, %cst_27 {dimension_numbers = #tpu.dot_dimension_numbers<[2], [2], [1], [1], [0, 0, 0, 1, 1, 1], [0], [0]>} : vector<2x8x64xbf16>, vector<2x8x64xbf16>, vector<2x8x8xf32> -> vector<2x8x8xf32>
    "tpu.trace_stop"() : () -> ()
    %40 = vector.broadcast %6 : vector<2x1x8xf32> to vector<2x8x8xf32>
    %41 = arith.addf %39, %40 : vector<2x8x8xf32>
    %cst_28 = arith.constant dense<0xFF800000> : vector<2x8xf32>
    %42 = vector.multi_reduction <maximumf>, %41, %cst_28 [2] : vector<2x8x8xf32> to vector<2x8xf32>
    %43 = vector.shape_cast %42 : vector<2x8xf32> to vector<2x8x1xf32>
    %44 = vector.broadcast %43 : vector<2x8x1xf32> to vector<2x8x8xf32>
    %45 = arith.subf %41, %44 : vector<2x8x8xf32>
    %46 = math.exp %45 : vector<2x8x8xf32>
    %cst_29 = arith.constant dense<0.000000e+00> : vector<2x8xf32>
    %47 = vector.multi_reduction <add>, %46, %cst_29 [2] : vector<2x8x8xf32> to vector<2x8xf32>
    %48 = vector.shape_cast %47 : vector<2x8xf32> to vector<2x8x1xf32>
    %49 = tpu.reciprocal %48 {approx = true} : vector<2x8x1xf32> -> vector<2x8x1xf32>
    %50 = vector.broadcast %49 : vector<2x8x1xf32> to vector<2x8x8xf32>
    %51 = arith.mulf %46, %50 : vector<2x8x8xf32>
    %52 = arith.truncf %51 : vector<2x8x8xf32> to vector<2x8x8xbf16>
    "tpu.trace_start"() <{level = 10 : i32, message = "bqk,bkd->bqd"}> : () -> ()
    %cst_30 = arith.constant dense<0.000000e+00> : vector<2x8x64xf32>
    %53 = tpu.matmul %52, %38, %cst_30 {dimension_numbers = #tpu.dot_dimension_numbers<[2], [1], [1], [2], [0, 0, 0, 1, 1, 2], [0], [0]>} : vector<2x8x8xbf16>, vector<2x8x64xbf16>, vector<2x8x64xf32> -> vector<2x8x64xf32>
    "tpu.trace_stop"() : () -> ()
    %54 = vector.shape_cast %53 : vector<2x8x64xf32> to vector<16x64xf32>
    %c0_31 = arith.constant 0 : index
    %c0_32 = arith.constant 0 : index
    %55 = vector.load %arg28[%c0_31, %c0_32] : memref<16x128xf32, #tpu.memory_space<vmem>>, vector<16x64xf32>
    tpu.vector_store %arg28[%c0_31, %c0_32], %54 {strides = array<i32>} : memref<16x128xf32, #tpu.memory_space<vmem>>, vector<16x64xf32>,
    %56 = vector.extract_strided_slice %30 {offsets = [0, 64], sizes = [16, 64], strides = [1, 1]} : vector<16x128xbf16> to vector<16x64xbf16>
    %57 = vector.shape_cast %56 : vector<16x64xbf16> to vector<2x8x64xbf16>
    %58 = vector.extract_strided_slice %31 {offsets = [0, 64], sizes = [16, 64], strides = [1, 1]} : vector<16x128xbf16> to vector<16x64xbf16>
    %59 = vector.shape_cast %58 : vector<16x64xbf16> to vector<2x8x64xbf16>
    %60 = vector.extract_strided_slice %32 {offsets = [0, 64], sizes = [16, 64], strides = [1, 1]} : vector<16x128xbf16> to vector<16x64xbf16>
    %61 = vector.shape_cast %60 : vector<16x64xbf16> to vector<2x8x64xbf16>
    "tpu.trace_start"() <{level = 10 : i32, message = "bqd,bkd->bqk"}> : () -> ()
    %cst_33 = arith.constant dense<0.000000e+00> : vector<2x8x8xf32>
    %62 = tpu.matmul %57, %59, %cst_33 {dimension_numbers = #tpu.dot_dimension_numbers<[2], [2], [1], [1], [0, 0, 0, 1, 1, 1], [0], [0]>} : vector<2x8x64xbf16>, vector<2x8x64xbf16>, vector<2x8x8xf32> -> vector<2x8x8xf32>
    "tpu.trace_stop"() : () -> ()
    %63 = vector.broadcast %6 : vector<2x1x8xf32> to vector<2x8x8xf32>
    %64 = arith.addf %62, %63 : vector<2x8x8xf32>
    %cst_34 = arith.constant dense<0xFF800000> : vector<2x8xf32>
    %65 = vector.multi_reduction <maximumf>, %64, %cst_34 [2] : vector<2x8x8xf32> to vector<2x8xf32>
    %66 = vector.shape_cast %65 : vector<2x8xf32> to vector<2x8x1xf32>
    %67 = vector.broadcast %66 : vector<2x8x1xf32> to vector<2x8x8xf32>
    %68 = arith.subf %64, %67 : vector<2x8x8xf32>
    %69 = math.exp %68 : vector<2x8x8xf32>
    %cst_35 = arith.constant dense<0.000000e+00> : vector<2x8xf32>
    %70 = vector.multi_reduction <add>, %69, %cst_35 [2] : vector<2x8x8xf32> to vector<2x8xf32>
    %71 = vector.shape_cast %70 : vector<2x8xf32> to vector<2x8x1xf32>
    %72 = tpu.reciprocal %71 {approx = true} : vector<2x8x1xf32> -> vector<2x8x1xf32>
    %73 = vector.broadcast %72 : vector<2x8x1xf32> to vector<2x8x8xf32>
    %74 = arith.mulf %69, %73 : vector<2x8x8xf32>
    %75 = arith.truncf %74 : vector<2x8x8xf32> to vector<2x8x8xbf16>
    "tpu.trace_start"() <{level = 10 : i32, message = "bqk,bkd->bqd"}> : () -> ()
    %cst_36 = arith.constant dense<0.000000e+00> : vector<2x8x64xf32>
    %76 = tpu.matmul %75, %61, %cst_36 {dimension_numbers = #tpu.dot_dimension_numbers<[2], [1], [1], [2], [0, 0, 0, 1, 1, 2], [0], [0]>} : vector<2x8x8xbf16>, vector<2x8x64xbf16>, vector<2x8x64xf32> -> vector<2x8x64xf32>
    "tpu.trace_stop"() : () -> ()
    %77 = vector.shape_cast %76 : vector<2x8x64xf32> to vector<16x64xf32>
    %c0_37 = arith.constant 0 : index
    %c64 = arith.constant 64 : index
    %78 = vector.load %arg28[%c0_37, %c64] : memref<16x128xf32, #tpu.memory_space<vmem>>, vector<16x64xf32>
    tpu.vector_store %arg28[%c0_37, %c64], %77 {strides = array<i32>} : memref<16x128xf32, #tpu.memory_space<vmem>>, vector<16x64xf32>,
    %c0_38 = arith.constant 0 : index
    %c0_39 = arith.constant 0 : index
    %79 = vector.load %arg28[%c0_38, %c0_39] : memref<16x128xf32, #tpu.memory_space<vmem>>, vector<16x128xf32>
    %80 = arith.truncf %79 : vector<16x128xf32> to vector<16x128xbf16>
    %c0_40 = arith.constant 0 : index
    %c0_41 = arith.constant 0 : index
    %c0_42 = arith.constant 0 : index
    %81 = vector.load %arg14[%c0_40, %c0_41, %c0_42] : memref<1x128x128xbf16, #tpu.memory_space<vmem>>, vector<1x128x128xbf16>
    %82 = vector.shape_cast %81 : vector<1x128x128xbf16> to vector<128x128xbf16>
    %cst_43 = arith.constant dense<0.000000e+00> : vector<16x128xf32>
    %83 = tpu.matmul %80, %82, %cst_43 {dimension_numbers = #tpu.dot_dimension_numbers<[1], [0], [0], [1], [0, 0, 1, 1], [], []>} : vector<16x128xbf16>, vector<128x128xbf16>, vector<16x128xf32> -> vector<16x128xf32>
    %c0_44 = arith.constant 0 : index
    %c0_45 = arith.constant 0 : index
    %c0_46 = arith.constant 0 : index
    %84 = vector.load %arg15[%c0_44, %c0_45, %c0_46] : memref<1x1x128xf32, #tpu.memory_space<vmem>>, vector<1x1x128xf32>
    %85 = vector.shape_cast %84 : vector<1x1x128xf32> to vector<1x128xf32>
    %86 = vector.broadcast %85 : vector<1x128xf32> to vector<16x128xf32>
    %87 = arith.addf %83, %86 : vector<16x128xf32>
    %88 = arith.addf %4, %87 : vector<16x128xf32>
    %c0_47 = arith.constant 0 : index
    %c0_48 = arith.constant 0 : index
    %c0_49 = arith.constant 0 : index
    %89 = vector.load %arg16[%c0_47, %c0_48, %c0_49] : memref<1x1x128xf32, #tpu.memory_space<vmem>>, vector<1x1x128xf32>
    %90 = vector.shape_cast %89 : vector<1x1x128xf32> to vector<1x128xf32>
    %c0_50 = arith.constant 0 : index
    %c0_51 = arith.constant 0 : index
    %c0_52 = arith.constant 0 : index
    %91 = vector.load %arg17[%c0_50, %c0_51, %c0_52] : memref<1x1x128xf32, #tpu.memory_space<vmem>>, vector<1x1x128xf32>
    %92 = vector.shape_cast %91 : vector<1x1x128xf32> to vector<1x128xf32>
    %cst_53 = arith.constant dense<0.000000e+00> : vector<16xf32>
    %93 = vector.multi_reduction <add>, %88, %cst_53 [1] : vector<16x128xf32> to vector<16xf32>
    %94 = vector.shape_cast %93 : vector<16xf32> to vector<16x1xf32>
    %cst_54 = arith.constant 1.280000e+02 : f32
    %95 = vector.broadcast %cst_54 : f32 to vector<16x1xf32>
    %96 = arith.divf %94, %95 : vector<16x1xf32>
    %97 = vector.broadcast %96 : vector<16x1xf32> to vector<16x128xf32>
    %98 = arith.subf %88, %97 : vector<16x128xf32>
    %99 = arith.mulf %98, %98 : vector<16x128xf32>
    %cst_55 = arith.constant dense<0.000000e+00> : vector<16xf32>
    %100 = vector.multi_reduction <add>, %99, %cst_55 [1] : vector<16x128xf32> to vector<16xf32>
    %101 = vector.shape_cast %100 : vector<16xf32> to vector<16x1xf32>
    %cst_56 = arith.constant 1.280000e+02 : f32
    %102 = vector.broadcast %cst_56 : f32 to vector<16x1xf32>
    %103 = arith.divf %101, %102 : vector<16x1xf32>
    %104 = vector.broadcast %96 : vector<16x1xf32> to vector<16x128xf32>
    %105 = arith.subf %88, %104 : vector<16x128xf32>
    %cst_57 = arith.constant 9.99999996E-13 : f32
    %106 = vector.broadcast %cst_57 : f32 to vector<16x1xf32>
    %107 = arith.addf %103, %106 : vector<16x1xf32>
    %108 = math.rsqrt %107 : vector<16x1xf32>
    %109 = vector.broadcast %108 : vector<16x1xf32> to vector<16x128xf32>
    %110 = arith.mulf %105, %109 : vector<16x128xf32>
    %111 = vector.broadcast %90 : vector<1x128xf32> to vector<16x128xf32>
    %112 = arith.mulf %110, %111 : vector<16x128xf32>
    %113 = vector.broadcast %92 : vector<1x128xf32> to vector<16x128xf32>
    %114 = arith.addf %112, %113 : vector<16x128xf32>
    %115 = arith.truncf %114 : vector<16x128xf32> to vector<16x128xbf16>
    %c0_58 = arith.constant 0 : index
    %c0_59 = arith.constant 0 : index
    %c0_60 = arith.constant 0 : index
    %116 = vector.load %arg18[%c0_58, %c0_59, %c0_60] : memref<1x128x256xbf16, #tpu.memory_space<vmem>>, vector<1x128x256xbf16>
    %117 = vector.shape_cast %116 : vector<1x128x256xbf16> to vector<128x256xbf16>
    %cst_61 = arith.constant dense<0.000000e+00> : vector<16x256xf32>
    %118 = tpu.matmul %115, %117, %cst_61 {dimension_numbers = #tpu.dot_dimension_numbers<[1], [0], [0], [1], [0, 0, 1, 1], [], []>} : vector<16x128xbf16>, vector<128x256xbf16>, vector<16x256xf32> -> vector<16x256xf32>
    %c0_62 = arith.constant 0 : index
    %c0_63 = arith.constant 0 : index
    %c0_64 = arith.constant 0 : index
    %119 = vector.load %arg19[%c0_62, %c0_63, %c0_64] : memref<1x1x256xf32, #tpu.memory_space<vmem>>, vector<1x1x256xf32>
    %120 = vector.shape_cast %119 : vector<1x1x256xf32> to vector<1x256xf32>
    %121 = vector.broadcast %120 : vector<1x256xf32> to vector<16x256xf32>
    %122 = arith.addf %118, %121 : vector<16x256xf32>
    %123 = arith.mulf %122, %122 : vector<16x256xf32>
    %124 = arith.mulf %122, %123 : vector<16x256xf32>
    %cst_65 = arith.constant 4.471500e-02 : f32
    %125 = vector.broadcast %cst_65 : f32 to vector<16x256xf32>
    %126 = arith.mulf %125, %124 : vector<16x256xf32>
    %127 = arith.addf %122, %126 : vector<16x256xf32>
    %cst_66 = arith.constant 0.797884583 : f32
    %128 = vector.broadcast %cst_66 : f32 to vector<16x256xf32>
    %129 = arith.mulf %128, %127 : vector<16x256xf32>
    %130 = math.tanh %129 : vector<16x256xf32>
    %cst_67 = arith.constant 1.000000e+00 : f32
    %131 = vector.broadcast %cst_67 : f32 to vector<16x256xf32>
    %132 = arith.addf %131, %130 : vector<16x256xf32>
    %cst_68 = arith.constant 5.000000e-01 : f32
    %133 = vector.broadcast %cst_68 : f32 to vector<16x256xf32>
    %134 = arith.mulf %133, %132 : vector<16x256xf32>
    %135 = arith.mulf %122, %134 : vector<16x256xf32>
    %136 = arith.truncf %135 : vector<16x256xf32> to vector<16x256xbf16>
    %c0_69 = arith.constant 0 : index
    %c0_70 = arith.constant 0 : index
    %c0_71 = arith.constant 0 : index
    %137 = vector.load %arg20[%c0_69, %c0_70, %c0_71] : memref<1x256x128xbf16, #tpu.memory_space<vmem>>, vector<1x256x128xbf16>
    %138 = vector.shape_cast %137 : vector<1x256x128xbf16> to vector<256x128xbf16>
    %cst_72 = arith.constant dense<0.000000e+00> : vector<16x128xf32>
    %139 = tpu.matmul %136, %138, %cst_72 {dimension_numbers = #tpu.dot_dimension_numbers<[1], [0], [0], [1], [0, 0, 1, 1], [], []>} : vector<16x256xbf16>, vector<256x128xbf16>, vector<16x128xf32> -> vector<16x128xf32>
    %c0_73 = arith.constant 0 : index
    %c0_74 = arith.constant 0 : index
    %c0_75 = arith.constant 0 : index
    %140 = vector.load %arg21[%c0_73, %c0_74, %c0_75] : memref<1x1x128xf32, #tpu.memory_space<vmem>>, vector<1x1x128xf32>
    %141 = vector.shape_cast %140 : vector<1x1x128xf32> to vector<1x128xf32>
    %142 = vector.broadcast %141 : vector<1x128xf32> to vector<16x128xf32>
    %143 = arith.addf %139, %142 : vector<16x128xf32>
    %144 = arith.addf %114, %143 : vector<16x128xf32>
    %c0_76 = arith.constant 0 : index
    %c0_77 = arith.constant 0 : index
    %c0_78 = arith.constant 0 : index
    %145 = vector.load %arg22[%c0_76, %c0_77, %c0_78] : memref<1x1x128xf32, #tpu.memory_space<vmem>>, vector<1x1x128xf32>
    %146 = vector.shape_cast %145 : vector<1x1x128xf32> to vector<1x128xf32>
    %c0_79 = arith.constant 0 : index
    %c0_80 = arith.constant 0 : index
    %c0_81 = arith.constant 0 : index
    %147 = vector.load %arg23[%c0_79, %c0_80, %c0_81] : memref<1x1x128xf32, #tpu.memory_space<vmem>>, vector<1x1x128xf32>
    %148 = vector.shape_cast %147 : vector<1x1x128xf32> to vector<1x128xf32>
    %cst_82 = arith.constant dense<0.000000e+00> : vector<16xf32>
    %149 = vector.multi_reduction <add>, %144, %cst_82 [1] : vector<16x128xf32> to vector<16xf32>
    %150 = vector.shape_cast %149 : vector<16xf32> to vector<16x1xf32>
    %cst_83 = arith.constant 1.280000e+02 : f32
    %151 = vector.broadcast %cst_83 : f32 to vector<16x1xf32>
    %152 = arith.divf %150, %151 : vector<16x1xf32>
    %153 = vector.broadcast %152 : vector<16x1xf32> to vector<16x128xf32>
    %154 = arith.subf %144, %153 : vector<16x128xf32>
    %155 = arith.mulf %154, %154 : vector<16x128xf32>
    %cst_84 = arith.constant dense<0.000000e+00> : vector<16xf32>
    %156 = vector.multi_reduction <add>, %155, %cst_84 [1] : vector<16x128xf32> to vector<16xf32>
    %157 = vector.shape_cast %156 : vector<16xf32> to vector<16x1xf32>
    %cst_85 = arith.constant 1.280000e+02 : f32
    %158 = vector.broadcast %cst_85 : f32 to vector<16x1xf32>
    %159 = arith.divf %157, %158 : vector<16x1xf32>
    %160 = vector.broadcast %152 : vector<16x1xf32> to vector<16x128xf32>
    %161 = arith.subf %144, %160 : vector<16x128xf32>
    %cst_86 = arith.constant 9.99999996E-13 : f32
    %162 = vector.broadcast %cst_86 : f32 to vector<16x1xf32>
    %163 = arith.addf %159, %162 : vector<16x1xf32>
    %164 = math.rsqrt %163 : vector<16x1xf32>
    %165 = vector.broadcast %164 : vector<16x1xf32> to vector<16x128xf32>
    %166 = arith.mulf %161, %165 : vector<16x128xf32>
    %167 = vector.broadcast %146 : vector<1x128xf32> to vector<16x128xf32>
    %168 = arith.mulf %166, %167 : vector<16x128xf32>
    %169 = vector.broadcast %148 : vector<1x128xf32> to vector<16x128xf32>
    %170 = arith.addf %168, %169 : vector<16x128xf32>
    %171 = vector.shape_cast %170 : vector<16x128xf32> to vector<2x8x128xf32>
    %c0_87 = arith.constant 0 : index
    %c0_88 = arith.constant 0 : index
    %c0_89 = arith.constant 0 : index
    %172 = vector.load %arg27[%c0_87, %c0_88, %c0_89] : memref<2x8x128xf32, #tpu.memory_space<vmem>>, vector<2x8x128xf32>
    tpu.vector_store %arg27[%c0_87, %c0_88, %c0_89], %171 {strides = array<i32>} : memref<2x8x128xf32, #tpu.memory_space<vmem>>, vector<2x8x128xf32>,
    %c1_i32 = arith.constant 1 : i32
    %173 = arith.cmpi eq, %arg1, %c1_i32 : i32
    %174 = arith.extui %173 : i1 to i32
    %c0_i32_90 = arith.constant 0 : i32
    %175 = arith.cmpi ne, %174, %c0_i32_90 : i32
    scf.if %175 {
      %cst_91 = arith.constant dense<0.000000e+00> : vector<2x128xf32>
      %176 = vector.multi_reduction <add>, %171, %cst_91 [1] : vector<2x8x128xf32> to vector<2x128xf32>
      %cst_92 = arith.constant 8.000000e+00 : f32
      %177 = vector.broadcast %cst_92 : f32 to vector<2x128xf32>
      %178 = arith.divf %176, %177 : vector<2x128xf32>
      %179 = arith.truncf %178 : vector<2x128xf32> to vector<2x128xbf16>
      %c0_93 = arith.constant 0 : index
      %c0_94 = arith.constant 0 : index
      %180 = vector.load %arg24[%c0_93, %c0_94] : memref<128x2xbf16, #tpu.memory_space<vmem>>, vector<128x2xbf16>
      %cst_95 = arith.constant dense<0.000000e+00> : vector<2x2xf32>
      %181 = tpu.matmul %179, %180, %cst_95 {dimension_numbers = #tpu.dot_dimension_numbers<[1], [0], [0], [1], [0, 0, 1, 1], [], []>} : vector<2x128xbf16>, vector<128x2xbf16>, vector<2x2xf32> -> vector<2x2xf32>
      %c0_96 = arith.constant 0 : index
      %c0_97 = arith.constant 0 : index
      %182 = vector.load %arg25[%c0_96, %c0_97] : memref<1x2xf32, #tpu.memory_space<vmem>>, vector<1x2xf32>
      %183 = vector.broadcast %182 : vector<1x2xf32> to vector<2x2xf32>
      %184 = arith.addf %181, %183 : vector<2x2xf32>
      %c0_98 = arith.constant 0 : index
      %c0_99 = arith.constant 0 : index
      %185 = vector.load %arg26[%c0_98, %c0_99] : memref<2x2xf32, #tpu.memory_space<vmem>>, vector<2x2xf32>
      tpu.vector_store %arg26[%c0_98, %c0_99], %184 {strides = array<i32>} : memref<2x2xf32, #tpu.memory_space<vmem>>, vector<2x2xf32>,
    } else {
    }
    return
  }
  func.func @transform_0(%arg0: i32, %arg1: i32) -> (i32, i32, i32) {
    %c0_i32 = arith.constant 0 : i32
    %c0_i32_0 = arith.constant 0 : i32
    %c0_i32_1 = arith.constant 0 : i32
    return %arg0, %c0_i32, %c0_i32_0 : i32, i32, i32
  }
  func.func @transform_1(%arg0: i32, %arg1: i32) -> (i32, i32, i32) {
    %c0_i32 = arith.constant 0 : i32
    %c0_i32_0 = arith.constant 0 : i32
    %c0_i32_1 = arith.constant 0 : i32
    %c0_i32_2 = arith.constant 0 : i32
    return %c0_i32, %c0_i32_0, %c0_i32_1 : i32, i32, i32
  }
  func.func @transform_2(%arg0: i32, %arg1: i32) -> (i32, i32, i32) {
    %c0_i32 = arith.constant 0 : i32
    %c0_i32_0 = arith.constant 0 : i32
    %c0_i32_1 = arith.constant 0 : i32
    return %arg0, %c0_i32, %c0_i32_0 : i32, i32, i32
  }
  func.func @transform_3(%arg0: i32, %arg1: i32) -> (i32, i32) {
    %c0_i32 = arith.constant 0 : i32
    %c0_i32_0 = arith.constant 0 : i32
    %c0_i32_1 = arith.constant 0 : i32
    return %c0_i32, %c0_i32_0 : i32, i32
  }
  func.func @transform_4(%arg0: i32, %arg1: i32) -> (i32, i32) {
    %c0_i32 = arith.constant 0 : i32
    %c0_i32_0 = arith.constant 0 : i32
    %c0_i32_1 = arith.constant 0 : i32
    return %c0_i32, %c0_i32_0 : i32, i32
  }
  func.func @transform_5(%arg0: i32, %arg1: i32) -> (i32, i32, i32) {
    %c0_i32 = arith.constant 0 : i32
    %c0_i32_0 = arith.constant 0 : i32
    %c0_i32_1 = arith.constant 0 : i32
    return %arg0, %c0_i32, %c0_i32_0 : i32, i32, i32
  }
  func.func @transform_6(%arg0: i32, %arg1: i32) -> (i32, i32, i32) {
    %c0_i32 = arith.constant 0 : i32
    %c0_i32_0 = arith.constant 0 : i32
    %c0_i32_1 = arith.constant 0 : i32
    return %arg1, %c0_i32, %c0_i32_0 : i32, i32, i32
  }
  func.func @transform_7(%arg0: i32, %arg1: i32) -> (i32, i32, i32) {
    %c0_i32 = arith.constant 0 : i32
    %c0_i32_0 = arith.constant 0 : i32
    %c0_i32_1 = arith.constant 0 : i32
    return %arg1, %c0_i32, %c0_i32_0 : i32, i32, i32
  }
  func.func @transform_8(%arg0: i32, %arg1: i32) -> (i32, i32, i32) {
    %c0_i32 = arith.constant 0 : i32
    %c0_i32_0 = arith.constant 0 : i32
    %c0_i32_1 = arith.constant 0 : i32
    return %arg1, %c0_i32, %c0_i32_0 : i32, i32, i32
  }
  func.func @transform_9(%arg0: i32, %arg1: i32) -> (i32, i32, i32) {
    %c0_i32 = arith.constant 0 : i32
    %c0_i32_0 = arith.constant 0 : i32
    %c0_i32_1 = arith.constant 0 : i32
    return %arg1, %c0_i32, %c0_i32_0 : i32, i32, i32
  }
  func.func @transform_10(%arg0: i32, %arg1: i32) -> (i32, i32, i32) {
    %c0_i32 = arith.constant 0 : i32
    %c0_i32_0 = arith.constant 0 : i32
    %c0_i32_1 = arith.constant 0 : i32
    return %arg1, %c0_i32, %c0_i32_0 : i32, i32, i32
  }
  func.func @transform_11(%arg0: i32, %arg1: i32) -> (i32, i32, i32) {
    %c0_i32 = arith.constant 0 : i32
    %c0_i32_0 = arith.constant 0 : i32
    %c0_i32_1 = arith.constant 0 : i32
    return %arg1, %c0_i32, %c0_i32_0 : i32, i32, i32
  }
  func.func @transform_12(%arg0: i32, %arg1: i32) -> (i32, i32, i32) {
    %c0_i32 = arith.constant 0 : i32
    %c0_i32_0 = arith.constant 0 : i32
    %c0_i32_1 = arith.constant 0 : i32
    return %arg1, %c0_i32, %c0_i32_0 : i32, i32, i32
  }
  func.func @transform_13(%arg0: i32, %arg1: i32) -> (i32, i32, i32) {
    %c0_i32 = arith.constant 0 : i32
    %c0_i32_0 = arith.constant 0 : i32
    %c0_i32_1 = arith.constant 0 : i32
    return %arg1, %c0_i32, %c0_i32_0 : i32, i32, i32
  }
  func.func @transform_14(%arg0: i32, %arg1: i32) -> (i32, i32, i32) {
    %c0_i32 = arith.constant 0 : i32
    %c0_i32_0 = arith.constant 0 : i32
    %c0_i32_1 = arith.constant 0 : i32
    return %arg1, %c0_i32, %c0_i32_0 : i32, i32, i32
  }
  func.func @transform_15(%arg0: i32, %arg1: i32) -> (i32, i32, i32) {
    %c0_i32 = arith.constant 0 : i32
    %c0_i32_0 = arith.constant 0 : i32
    %c0_i32_1 = arith.constant 0 : i32
    return %arg1, %c0_i32, %c0_i32_0 : i32, i32, i32
  }
  func.func @transform_16(%arg0: i32, %arg1: i32) -> (i32, i32, i32) {
    %c0_i32 = arith.constant 0 : i32
    %c0_i32_0 = arith.constant 0 : i32
    %c0_i32_1 = arith.constant 0 : i32
    return %arg1, %c0_i32, %c0_i32_0 : i32, i32, i32
  }
  func.func @transform_17(%arg0: i32, %arg1: i32) -> (i32, i32, i32) {
    %c0_i32 = arith.constant 0 : i32
    %c0_i32_0 = arith.constant 0 : i32
    %c0_i32_1 = arith.constant 0 : i32
    return %arg1, %c0_i32, %c0_i32_0 : i32, i32, i32
  }
  func.func @transform_18(%arg0: i32, %arg1: i32) -> (i32, i32, i32) {
    %c0_i32 = arith.constant 0 : i32
    %c0_i32_0 = arith.constant 0 : i32
    %c0_i32_1 = arith.constant 0 : i32
    return %arg1, %c0_i32, %c0_i32_0 : i32, i32, i32
  }
  func.func @transform_19(%arg0: i32, %arg1: i32) -> (i32, i32, i32) {
    %c0_i32 = arith.constant 0 : i32
    %c0_i32_0 = arith.constant 0 : i32
    %c0_i32_1 = arith.constant 0 : i32
    return %arg1, %c0_i32, %c0_i32_0 : i32, i32, i32
  }
  func.func @transform_20(%arg0: i32, %arg1: i32) -> (i32, i32, i32) {
    %c0_i32 = arith.constant 0 : i32
    %c0_i32_0 = arith.constant 0 : i32
    %c0_i32_1 = arith.constant 0 : i32
    return %arg1, %c0_i32, %c0_i32_0 : i32, i32, i32
  }
  func.func @transform_21(%arg0: i32, %arg1: i32) -> (i32, i32, i32) {
    %c0_i32 = arith.constant 0 : i32
    %c0_i32_0 = arith.constant 0 : i32
    %c0_i32_1 = arith.constant 0 : i32
    return %arg1, %c0_i32, %c0_i32_0 : i32, i32, i32
  }
  func.func @transform_22(%arg0: i32, %arg1: i32) -> (i32, i32) {
    %c0_i32 = arith.constant 0 : i32
    %c0_i32_0 = arith.constant 0 : i32
    %c0_i32_1 = arith.constant 0 : i32
    return %c0_i32, %c0_i32_0 : i32, i32
  }
  func.func @transform_23(%arg0: i32, %arg1: i32) -> (i32, i32) {
    %c0_i32 = arith.constant 0 : i32
    %c0_i32_0 = arith.constant 0 : i32
    %c0_i32_1 = arith.constant 0 : i32
    return %c0_i32, %c0_i32_0 : i32, i32
  }
  func.func @transform_24(%arg0: i32, %arg1: i32) -> (i32, i32) {
    %c0_i32 = arith.constant 0 : i32
    %c0_i32_0 = arith.constant 0 : i32
    return %arg0, %c0_i32 : i32, i32
  }
}

</mosaic_0001>

<llo_original>
// kernel: tpu_custom_call.1
$region0: #{tpu_custom_call.1}
  #allocation0 [shape = 'u32[]', space=smem, size = 0x4, offset = 0x4, fixed_abs, tag = 'smem constant byte address 0x4 - core index']
  #allocation1 [shape = 'u32[144,128]{1,0:T(1,128)}', space=vmem, size = 0x12000, scoped, tag = 'internal scratch']
  #allocation2 [shape = 'f32[2,8,128]{2,1,0:T(8,128)}', space=vmem, size = 0x2000, scoped, tag = 'scratch operand']
  #allocation3 [shape = 'f32[16,128]{1,0:T(8,128)}', space=vmem, size = 0x2000, scoped, tag = 'scratch operand']
  %s0 = inlined_call_operand.vmem [shape: bf16[2,8,128], index: 0, kind: input, shape index: {}]
  %s1 = inlined_call_operand.vmem [shape: bf16[1,8,128], index: 1, kind: input, shape index: {}]
  %s2 = inlined_call_operand.vmem [shape: bf16[2,8,128], index: 2, kind: input, shape index: {}]
  %s3 = inlined_call_operand.vmem [shape: f32[1,128], index: 3, kind: input, shape index: {}]
  %s4 = inlined_call_operand.vmem [shape: f32[1,128], index: 4, kind: input, shape index: {}]
  %s5 = inlined_call_operand.vmem [shape: f32[2,1,8], index: 5, kind: input, shape index: {}]
  %s6 = inlined_call_operand.hbm [shape: bf16[2,128,128], index: 6, kind: input, shape index: {}]
  %s7 = inlined_call_operand.vmem [shape: f32[2,1,128], index: 7, kind: input, shape index: {}]
  %s8 = inlined_call_operand.hbm [shape: bf16[2,128,128], index: 8, kind: input, shape index: {}]
  %s9 = inlined_call_operand.vmem [shape: f32[2,1,128], index: 9, kind: input, shape index: {}]
  %s10 = inlined_call_operand.hbm [shape: bf16[2,128,128], index: 10, kind: input, shape index: {}]
  %s11 = inlined_call_operand.vmem [shape: f32[2,1,128], index: 11, kind: input, shape index: {}]
  %s12 = inlined_call_operand.hbm [shape: bf16[2,128,128], index: 12, kind: input, shape index: {}]
  %s13 = inlined_call_operand.vmem [shape: f32[2,1,128], index: 13, kind: input, shape index: {}]
  %s14 = inlined_call_operand.vmem [shape: f32[2,1,128], index: 14, kind: input, shape index: {}]
  %s15 = inlined_call_operand.vmem [shape: f32[2,1,128], index: 15, kind: input, shape index: {}]
  %s16 = inlined_call_operand.hbm [shape: bf16[2,128,256], index: 16, kind: input, shape index: {}]
  %s17 = inlined_call_operand.vmem [shape: f32[2,1,256], index: 17, kind: input, shape index: {}]
  %s18 = inlined_call_operand.hbm [shape: bf16[2,256,128], index: 18, kind: input, shape index: {}]
  %s19 = inlined_call_operand.vmem [shape: f32[2,1,128], index: 19, kind: input, shape index: {}]
  %s20 = inlined_call_operand.vmem [shape: f32[2,1,128], index: 20, kind: input, shape index: {}]
  %s21 = inlined_call_operand.vmem [shape: f32[2,1,128], index: 21, kind: input, shape index: {}]
  %s22 = inlined_call_operand.vmem [shape: bf16[128,2], index: 22, kind: input, shape index: {}]
  %s23 = inlined_call_operand.vmem [shape: f32[1,2], index: 23, kind: input, shape index: {}]
  %s24 = inlined_call_operand.hbm [shape: f32[2,2], index: 24, kind: output, shape index: {}]
  %s25 = sld [smem:[#allocation0]]
  $region161: #{tpu_custom_call.1} parent=0
    _
  %s27 = ssub.s32 1, %s25
  %s28 = scalar_select 0, %s27, %s25
  $region1: #{tpu_custom_call.1} parent=0
    #allocation4 [shape = 'u8[65536]{0}', space=vmem, size = 0x10000, scoped, tag = 'input window, operand 6']
    #allocation5 [shape = 's32[2]{0}', space=sflag, size = 0x8, scoped, tag = 'scoped memory for tpu_custom_call.1']
    #allocation6 [shape = 's32[2]{0}', space=sflag, size = 0x8, scoped, tag = 'scoped memory for tpu_custom_call.1']
    #allocation7 [shape = 'u8[65536]{0}', space=vmem, size = 0x10000, scoped, tag = 'input window, operand 8']
    #allocation8 [shape = 's32[2]{0}', space=sflag, size = 0x8, scoped, tag = 'scoped memory for tpu_custom_call.1']
    #allocation9 [shape = 'u8[65536]{0}', space=vmem, size = 0x10000, scoped, tag = 'input window, operand 10']
    #allocation10 [shape = 'u8[65536]{0}', space=vmem, size = 0x10000, scoped, tag = 'input window, operand 12']
    #allocation11 [shape = 's32[2]{0}', space=sflag, size = 0x8, scoped, tag = 'scoped memory for tpu_custom_call.1']
    #allocation12 [shape = 'u8[131072]{0}', space=vmem, size = 0x20000, scoped, tag = 'input window, operand 16']
    #allocation13 [shape = 'u8[131072]{0}', space=vmem, size = 0x20000, scoped, tag = 'input window, operand 18']
    #allocation14 [shape = 's32[2]{0}', space=sflag, size = 0x8, scoped, tag = 'scoped memory for tpu_custom_call.1']
    #allocation15 [shape = 'u8[1024]{0}', space=vmem, size = 0x400, scoped, tag = 'output window, operand 0, single buffered']
    %29 = vsyncpa [#allocation5], 0
    %s30 = scalar_lea.sflag [#allocation5], 1
    %31 = vsyncpa %s30, 0
    %32 = vsyncpa [#allocation8], 0
    %s33 = scalar_lea.sflag [#allocation8], 1
    %34 = vsyncpa %s33, 0
    %35 = vsyncpa [#allocation11], 0
    %s36 = scalar_lea.sflag [#allocation11], 1
    %37 = vsyncpa %s36, 0
    %38 = vsyncpa [#allocation14], 0
    %s39 = scalar_lea.sflag [#allocation14], 1
    %40 = vsyncpa %s39, 0
    %41 = vsyncpa [#allocation6], 0
    loop: start=0, step=1, limit=4
    $region2: #{tpu_custom_call.1} parent=1 // loop_pre_header
      _
    $region3: #{tpu_custom_call.1} parent=1 // loop_header
      %s43 = sphi 0, %s47
      %p44 = scmp.ge.s32.totalorder %s43, 4
      %s50 = sphi 0, %s62
      %s51 = sphi 0, %s58
      %s52 = sphi 0, %s50
      %s53 = sphi 0, %s51
      %s54 = sphi 0, %s52
      %s55 = sphi 0, %s53
      %s65 = sphi 0, %s67
      %s68 = sphi 0, %s65
      %s69 = sphi 0, %s68
      %s85 = sphi 0, %s69
      %s89 = sphi 0, %s89
      %s91 = sphi 0, %s89
      %s92 = sphi 0, %s91
      %s106 = sphi 0, %s92
      %s112 = sphi 0, %s114
      %s115 = sphi 0, %s112
      %s116 = sphi 0, %s115
      %s132 = sphi 0, %s116
      %s136 = sphi 0, %s136
      %s138 = sphi 0, %s136
      %s139 = sphi 0, %s138
      %s153 = sphi 0, %s139
      %s157 = sphi 0, %s157
      %s159 = sphi 0, %s157
      %s160 = sphi 0, %s159
      %s174 = sphi 0, %s160
      %s180 = sphi 0, %s182
      %s183 = sphi 0, %s180
      %s184 = sphi 0, %s183
      %s200 = sphi 0, %s184
      %s206 = sphi 0, %s208
      %s209 = sphi 0, %s206
      %s210 = sphi 0, %s209
      %s226 = sphi 0, %s210
      %s232 = sphi 0, %s234
      %s235 = sphi 0, %s232
      %s236 = sphi 0, %s235
      %s252 = sphi 0, %s236
      %s258 = sphi 0, %s260
      %s261 = sphi 0, %s258
      %s262 = sphi 0, %s261
      %s278 = sphi 0, %s262
      %s284 = sphi 0, %s286
      %s287 = sphi 0, %s284
      %s288 = sphi 0, %s287
      %s304 = sphi 0, %s288
      %s310 = sphi 0, %s312
      %s313 = sphi 0, %s310
      %s314 = sphi 0, %s313
      %s330 = sphi 0, %s314
      %s336 = sphi 0, %s338
      %s339 = sphi 0, %s336
      %s340 = sphi 0, %s339
      %s356 = sphi 0, %s340
      %s362 = sphi 0, %s364
      %s365 = sphi 0, %s362
      %s366 = sphi 0, %s365
      %s382 = sphi 0, %s366
      %s388 = sphi 0, %s390
      %s391 = sphi 0, %s388
      %s392 = sphi 0, %s391
      %s408 = sphi 0, %s392
      %s414 = sphi 0, %s416
      %s417 = sphi 0, %s414
      %s418 = sphi 0, %s417
      %s434 = sphi 0, %s418
      %s440 = sphi 0, %s442
      %s443 = sphi 0, %s440
      %s444 = sphi 0, %s443
      %s460 = sphi 0, %s444
      %s466 = sphi 0, %s468
      %s469 = sphi 0, %s466
      %s470 = sphi 0, %s469
      %s486 = sphi 0, %s470
      %s492 = sphi 0, %s494
      %s495 = sphi 0, %s492
      %s496 = sphi 0, %s495
      %s512 = sphi 0, %s496
      %s518 = sphi 0, %s520
      %s521 = sphi 0, %s518
      %s522 = sphi 0, %s521
      %s538 = sphi 0, %s522
      %s544 = sphi 0, %s546
      %s547 = sphi 0, %s544
      %s548 = sphi 0, %s547
      %s564 = sphi 0, %s548
      %s570 = sphi 0, %s572
      %s573 = sphi 0, %s570
      %s574 = sphi 0, %s573
      %s590 = sphi 0, %s574
      %s596 = sphi 0, %s598
      %s599 = sphi 0, %s596
      %s600 = sphi 0, %s599
      %s616 = sphi 0, %s600
      %s620 = sphi 0, %s620
      %s622 = sphi 0, %s620
      %s623 = sphi 0, %s622
      %s637 = sphi 0, %s623
      %s641 = sphi 0, %s641
      %s643 = sphi 0, %s641
      %s644 = sphi 0, %s643
      %s658 = sphi 0, %s644
      %s664 = sphi 0, %s666
      %s667 = sphi 0, %s664
      %s668 = sphi 0, %s667
      %s684 = sphi 0, %s668
    $region4: #{tpu_custom_call.1} parent=1 // loop_header_branch
      %46 = sbr.rel (%p44) target = $region8
    $region5: #{tpu_custom_call.1} parent=1 // loop_body
      %s48 = ssub.s32 %s43, 1
      %s49 = ssub.s32 %s43, 2
      %s56 = sadd.s32 1, %s51
      %p57 = scmp.ge.s32.totalorder %s56, 2
      %s58 = scalar_select %p57, 0, %s56
      %s59 = sadd.s32 1, %s50
      %s60 = scalar_select %p57, %s59, %s50
      %p61 = scmp.ge.s32.totalorder %s60, 1
      %s62 = scalar_select %p61, 0, %s60
      %s63 = ssub.s32 %s50, %s62
      %p64 = scmp.eq.s32.totalorder %s63, 0
      %s66 = sadd.s32 %s65, 1
      %s67 = scalar_select %p64, %s65, %s66
      %p70 = pneg %p64
      %p71 = scmp.eq.s32.totalorder %s43, 1
      %p72 = por %p70, %p71
      %p73 = scmp.ne.s32.totalorder %s65, %s68
      %p74 = scmp.eq.s32.totalorder %s43, 0
      %p75 = por %p73, %p74
      %p76 = scmp.ne.s32.totalorder %s65, %s68
      %p77 = scmp.eq.s32.totalorder %s48, 1
      %p78 = por %p76, %p77
      %p79 = scmp.ne.s32.totalorder %s68, %s69
      %p80 = scmp.eq.s32.totalorder %s48, 0
      %p81 = por %p79, %p80
      %p82 = scmp.ne.s32.totalorder %s68, %s69
      %p83 = scmp.eq.s32.totalorder %s49, 1
      %p84 = por %p82, %p83
      %p86 = scmp.ne.s32.totalorder %s69, %s85
      %p87 = scmp.eq.s32.totalorder %s49, 0
      %p88 = por %p86, %p87
      %s90 = sadd.s32 %s89, 1
      %p93 = scmp.eq.s32.totalorder %s43, 1
      %p94 = scmp.ne.s32.totalorder %s89, %s91
      %p95 = scmp.eq.s32.totalorder %s43, 0
      %p96 = por %p94, %p95
      %p97 = scmp.ne.s32.totalorder %s89, %s91
      %p98 = scmp.eq.s32.totalorder %s48, 1
      %p99 = por %p97, %p98
      %p100 = scmp.ne.s32.totalorder %s91, %s92
      %p101 = scmp.eq.s32.totalorder %s48, 0
      %p102 = por %p100, %p101
      %p103 = scmp.ne.s32.totalorder %s91, %s92
      %p104 = scmp.eq.s32.totalorder %s49, 1
      %p105 = por %p103, %p104
      %p107 = scmp.ne.s32.totalorder %s92, %s106
      %p108 = scmp.eq.s32.totalorder %s49, 0
      %p109 = por %p107, %p108
      %s110 = ssub.s32 %s50, %s62
      %p111 = scmp.eq.s32.totalorder %s110, 0
      %s113 = sadd.s32 %s112, 1
      %s114 = scalar_select %p111, %s112, %s113
      %p117 = pneg %p111
      %p118 = scmp.eq.s32.totalorder %s43, 1
      %p119 = por %p117, %p118
      %p120 = scmp.ne.s32.totalorder %s112, %s115
      %p121 = scmp.eq.s32.totalorder %s43, 0
      %p122 = por %p120, %p121
      %p123 = scmp.ne.s32.totalorder %s112, %s115
      %p124 = scmp.eq.s32.totalorder %s48, 1
      %p125 = por %p123, %p124
      %p126 = scmp.ne.s32.totalorder %s115, %s116
      %p127 = scmp.eq.s32.totalorder %s48, 0
      %p128 = por %p126, %p127
      %p129 = scmp.ne.s32.totalorder %s115, %s116
      %p130 = scmp.eq.s32.totalorder %s49, 1
      %p131 = por %p129, %p130
      %p133 = scmp.ne.s32.totalorder %s116, %s132
      %p134 = scmp.eq.s32.totalorder %s49, 0
      %p135 = por %p133, %p134
      %s137 = sadd.s32 %s136, 1
      %p140 = scmp.eq.s32.totalorder %s43, 1
      %p141 = scmp.ne.s32.totalorder %s136, %s138
      %p142 = scmp.eq.s32.totalorder %s43, 0
      %p143 = por %p141, %p142
      %p144 = scmp.ne.s32.totalorder %s136, %s138
      %p145 = scmp.eq.s32.totalorder %s48, 1
      %p146 = por %p144, %p145
      %p147 = scmp.ne.s32.totalorder %s138, %s139
      %p148 = scmp.eq.s32.totalorder %s48, 0
      %p149 = por %p147, %p148
      %p150 = scmp.ne.s32.totalorder %s138, %s139
      %p151 = scmp.eq.s32.totalorder %s49, 1
      %p152 = por %p150, %p151
      %p154 = scmp.ne.s32.totalorder %s139, %s153
      %p155 = scmp.eq.s32.totalorder %s49, 0
      %p156 = por %p154, %p155
      %s158 = sadd.s32 %s157, 1
      %p161 = scmp.eq.s32.totalorder %s43, 1
      %p162 = scmp.ne.s32.totalorder %s157, %s159
      %p163 = scmp.eq.s32.totalorder %s43, 0
      %p164 = por %p162, %p163
      %p165 = scmp.ne.s32.totalorder %s157, %s159
      %p166 = scmp.eq.s32.totalorder %s48, 1
      %p167 = por %p165, %p166
      %p168 = scmp.ne.s32.totalorder %s159, %s160
      %p169 = scmp.eq.s32.totalorder %s48, 0
      %p170 = por %p168, %p169
      %p171 = scmp.ne.s32.totalorder %s159, %s160
      %p172 = scmp.eq.s32.totalorder %s49, 1
      %p173 = por %p171, %p172
      %p175 = scmp.ne.s32.totalorder %s160, %s174
      %p176 = scmp.eq.s32.totalorder %s49, 0
      %p177 = por %p175, %p176
      %s178 = ssub.s32 %s50, %s62
      %p179 = scmp.eq.s32.totalorder %s178, 0
      %s181 = sadd.s32 %s180, 1
      %s182 = scalar_select %p179, %s180, %s181
      %p185 = pneg %p179
      %p186 = scmp.eq.s32.totalorder %s43, 1
      %p187 = por %p185, %p186
      %p188 = scmp.ne.s32.totalorder %s180, %s183
      %p189 = scmp.eq.s32.totalorder %s43, 0
      %p190 = por %p188, %p189
      %p191 = scmp.ne.s32.totalorder %s180, %s183
      %p192 = scmp.eq.s32.totalorder %s48, 1
      %p193 = por %p191, %p192
      %p194 = scmp.ne.s32.totalorder %s183, %s184
      %p195 = scmp.eq.s32.totalorder %s48, 0
      %p196 = por %p194, %p195
      %p197 = scmp.ne.s32.totalorder %s183, %s184
      %p198 = scmp.eq.s32.totalorder %s49, 1
      %p199 = por %p197, %p198
      %p201 = scmp.ne.s32.totalorder %s184, %s200
      %p202 = scmp.eq.s32.totalorder %s49, 0
      %p203 = por %p201, %p202
      %s204 = ssub.s32 %s51, %s58
      %p205 = scmp.eq.s32.totalorder %s204, 0
      %s207 = sadd.s32 %s206, 1
      %s208 = scalar_select %p205, %s206, %s207
      %p211 = pneg %p205
      %p212 = scmp.eq.s32.totalorder %s43, 1
      %p213 = por %p211, %p212
      %p214 = scmp.ne.s32.totalorder %s206, %s209
      %p215 = scmp.eq.s32.totalorder %s43, 0
      %p216 = por %p214, %p215
      %p217 = scmp.ne.s32.totalorder %s206, %s209
      %p218 = scmp.eq.s32.totalorder %s48, 1
      %p219 = por %p217, %p218
      %p220 = scmp.ne.s32.totalorder %s209, %s210
      %p221 = scmp.eq.s32.totalorder %s48, 0
      %p222 = por %p220, %p221
      %p223 = scmp.ne.s32.totalorder %s209, %s210
      %p224 = scmp.eq.s32.totalorder %s49, 1
      %p225 = por %p223, %p224
      %p227 = scmp.ne.s32.totalorder %s210, %s226
      %p228 = scmp.eq.s32.totalorder %s49, 0
      %p229 = por %p227, %p228
      %s230 = ssub.s32 %s51, %s58
      %p231 = scmp.eq.s32.totalorder %s230, 0
      %s233 = sadd.s32 %s232, 1
      %s234 = scalar_select %p231, %s232, %s233
      %p237 = pneg %p231
      %p238 = scmp.eq.s32.totalorder %s43, 1
      %p239 = por %p237, %p238
      %p240 = scmp.ne.s32.totalorder %s232, %s235
      %p241 = scmp.eq.s32.totalorder %s43, 0
      %p242 = por %p240, %p241
      %p243 = scmp.ne.s32.totalorder %s232, %s235
      %p244 = scmp.eq.s32.totalorder %s48, 1
      %p245 = por %p243, %p244
      %p246 = scmp.ne.s32.totalorder %s235, %s236
      %p247 = scmp.eq.s32.totalorder %s48, 0
      %p248 = por %p246, %p247
      %p249 = scmp.ne.s32.totalorder %s235, %s236
      %p250 = scmp.eq.s32.totalorder %s49, 1
      %p251 = por %p249, %p250
      %p253 = scmp.ne.s32.totalorder %s236, %s252
      %p254 = scmp.eq.s32.totalorder %s49, 0
      %p255 = por %p253, %p254
      %s256 = ssub.s32 %s51, %s58
      %p257 = scmp.eq.s32.totalorder %s256, 0
      %s259 = sadd.s32 %s258, 1
      %s260 = scalar_select %p257, %s258, %s259
      %p263 = pneg %p257
      %p264 = scmp.eq.s32.totalorder %s43, 1
      %p265 = por %p263, %p264
      %p266 = scmp.ne.s32.totalorder %s258, %s261
      %p267 = scmp.eq.s32.totalorder %s43, 0
      %p268 = por %p266, %p267
      %p269 = scmp.ne.s32.totalorder %s258, %s261
      %p270 = scmp.eq.s32.totalorder %s48, 1
      %p271 = por %p269, %p270
      %p272 = scmp.ne.s32.totalorder %s261, %s262
      %p273 = scmp.eq.s32.totalorder %s48, 0
      %p274 = por %p272, %p273
      %p275 = scmp.ne.s32.totalorder %s261, %s262
      %p276 = scmp.eq.s32.totalorder %s49, 1
      %p277 = por %p275, %p276
      %p279 = scmp.ne.s32.totalorder %s262, %s278
      %p280 = scmp.eq.s32.totalorder %s49, 0
      %p281 = por %p279, %p280
      %s282 = ssub.s32 %s51, %s58
      %p283 = scmp.eq.s32.totalorder %s282, 0
      %s285 = sadd.s32 %s284, 1
      %s286 = scalar_select %p283, %s284, %s285
      %p289 = pneg %p283
      %p290 = scmp.eq.s32.totalorder %s43, 1
      %p291 = por %p289, %p290
      %p292 = scmp.ne.s32.totalorder %s284, %s287
      %p293 = scmp.eq.s32.totalorder %s43, 0
      %p294 = por %p292, %p293
      %p295 = scmp.ne.s32.totalorder %s284, %s287
      %p296 = scmp.eq.s32.totalorder %s48, 1
      %p297 = por %p295, %p296
      %p298 = scmp.ne.s32.totalorder %s287, %s288
      %p299 = scmp.eq.s32.totalorder %s48, 0
      %p300 = por %p298, %p299
      %p301 = scmp.ne.s32.totalorder %s287, %s288
      %p302 = scmp.eq.s32.totalorder %s49, 1
      %p303 = por %p301, %p302
      %p305 = scmp.ne.s32.totalorder %s288, %s304
      %p306 = scmp.eq.s32.totalorder %s49, 0
      %p307 = por %p305, %p306
      %s308 = ssub.s32 %s51, %s58
      %p309 = scmp.eq.s32.totalorder %s308, 0
      %s311 = sadd.s32 %s310, 1
      %s312 = scalar_select %p309, %s310, %s311
      %p315 = pneg %p309
      %p316 = scmp.eq.s32.totalorder %s43, 1
      %p317 = por %p315, %p316
      %p318 = scmp.ne.s32.totalorder %s310, %s313
      %p319 = scmp.eq.s32.totalorder %s43, 0
      %p320 = por %p318, %p319
      %p321 = scmp.ne.s32.totalorder %s310, %s313
      %p322 = scmp.eq.s32.totalorder %s48, 1
      %p323 = por %p321, %p322
      %p324 = scmp.ne.s32.totalorder %s313, %s314
      %p325 = scmp.eq.s32.totalorder %s48, 0
      %p326 = por %p324, %p325
      %p327 = scmp.ne.s32.totalorder %s313, %s314
      %p328 = scmp.eq.s32.totalorder %s49, 1
      %p329 = por %p327, %p328
      %p331 = scmp.ne.s32.totalorder %s314, %s330
      %p332 = scmp.eq.s32.totalorder %s49, 0
      %p333 = por %p331, %p332
      %s334 = ssub.s32 %s51, %s58
      %p335 = scmp.eq.s32.totalorder %s334, 0
      %s337 = sadd.s32 %s336, 1
      %s338 = scalar_select %p335, %s336, %s337
      %p341 = pneg %p335
      %p342 = scmp.eq.s32.totalorder %s43, 1
      %p343 = por %p341, %p342
      %p344 = scmp.ne.s32.totalorder %s336, %s339
      %p345 = scmp.eq.s32.totalorder %s43, 0
      %p346 = por %p344, %p345
      %p347 = scmp.ne.s32.totalorder %s336, %s339
      %p348 = scmp.eq.s32.totalorder %s48, 1
      %p349 = por %p347, %p348
      %p350 = scmp.ne.s32.totalorder %s339, %s340
      %p351 = scmp.eq.s32.totalorder %s48, 0
      %p352 = por %p350, %p351
      %p353 = scmp.ne.s32.totalorder %s339, %s340
      %p354 = scmp.eq.s32.totalorder %s49, 1
      %p355 = por %p353, %p354
      %p357 = scmp.ne.s32.totalorder %s340, %s356
      %p358 = scmp.eq.s32.totalorder %s49, 0
      %p359 = por %p357, %p358
      %s360 = ssub.s32 %s51, %s58
      %p361 = scmp.eq.s32.totalorder %s360, 0
      %s363 = sadd.s32 %s362, 1
      %s364 = scalar_select %p361, %s362, %s363
      %p367 = pneg %p361
      %p368 = scmp.eq.s32.totalorder %s43, 1
      %p369 = por %p367, %p368
      %p370 = scmp.ne.s32.totalorder %s362, %s365
      %p371 = scmp.eq.s32.totalorder %s43, 0
      %p372 = por %p370, %p371
      %p373 = scmp.ne.s32.totalorder %s362, %s365
      %p374 = scmp.eq.s32.totalorder %s48, 1
      %p375 = por %p373, %p374
      %p376 = scmp.ne.s32.totalorder %s365, %s366
      %p377 = scmp.eq.s32.totalorder %s48, 0
      %p378 = por %p376, %p377
      %p379 = scmp.ne.s32.totalorder %s365, %s366
      %p380 = scmp.eq.s32.totalorder %s49, 1
      %p381 = por %p379, %p380
      %p383 = scmp.ne.s32.totalorder %s366, %s382
      %p384 = scmp.eq.s32.totalorder %s49, 0
      %p385 = por %p383, %p384
      %s386 = ssub.s32 %s51, %s58
      %p387 = scmp.eq.s32.totalorder %s386, 0
      %s389 = sadd.s32 %s388, 1
      %s390 = scalar_select %p387, %s388, %s389
      %p393 = pneg %p387
      %p394 = scmp.eq.s32.totalorder %s43, 1
      %p395 = por %p393, %p394
      %p396 = scmp.ne.s32.totalorder %s388, %s391
      %p397 = scmp.eq.s32.totalorder %s43, 0
      %p398 = por %p396, %p397
      %p399 = scmp.ne.s32.totalorder %s388, %s391
      %p400 = scmp.eq.s32.totalorder %s48, 1
      %p401 = por %p399, %p400
      %p402 = scmp.ne.s32.totalorder %s391, %s392
      %p403 = scmp.eq.s32.totalorder %s48, 0
      %p404 = por %p402, %p403
      %p405 = scmp.ne.s32.totalorder %s391, %s392
      %p406 = scmp.eq.s32.totalorder %s49, 1
      %p407 = por %p405, %p406
      %p409 = scmp.ne.s32.totalorder %s392, %s408
      %p410 = scmp.eq.s32.totalorder %s49, 0
      %p411 = por %p409, %p410
      %s412 = ssub.s32 %s51, %s58
      %p413 = scmp.eq.s32.totalorder %s412, 0
      %s415 = sadd.s32 %s414, 1
      %s416 = scalar_select %p413, %s414, %s415
      %p419 = pneg %p413
      %p420 = scmp.eq.s32.totalorder %s43, 1
      %p421 = por %p419, %p420
      %p422 = scmp.ne.s32.totalorder %s414, %s417
      %p423 = scmp.eq.s32.totalorder %s43, 0
      %p424 = por %p422, %p423
      %p425 = scmp.ne.s32.totalorder %s414, %s417
      %p426 = scmp.eq.s32.totalorder %s48, 1
      %p427 = por %p425, %p426
      %p428 = scmp.ne.s32.totalorder %s417, %s418
      %p429 = scmp.eq.s32.totalorder %s48, 0
      %p430 = por %p428, %p429
      %p431 = scmp.ne.s32.totalorder %s417, %s418
      %p432 = scmp.eq.s32.totalorder %s49, 1
      %p433 = por %p431, %p432
      %p435 = scmp.ne.s32.totalorder %s418, %s434
      %p436 = scmp.eq.s32.totalorder %s49, 0
      %p437 = por %p435, %p436
      %s438 = ssub.s32 %s51, %s58
      %p439 = scmp.eq.s32.totalorder %s438, 0
      %s441 = sadd.s32 %s440, 1
      %s442 = scalar_select %p439, %s440, %s441
      %p445 = pneg %p439
      %p446 = scmp.eq.s32.totalorder %s43, 1
      %p447 = por %p445, %p446
      %p448 = scmp.ne.s32.totalorder %s440, %s443
      %p449 = scmp.eq.s32.totalorder %s43, 0
      %p450 = por %p448, %p449
      %p451 = scmp.ne.s32.totalorder %s440, %s443
      %p452 = scmp.eq.s32.totalorder %s48, 1
      %p453 = por %p451, %p452
      %p454 = scmp.ne.s32.totalorder %s443, %s444
      %p455 = scmp.eq.s32.totalorder %s48, 0
      %p456 = por %p454, %p455
      %p457 = scmp.ne.s32.totalorder %s443, %s444
      %p458 = scmp.eq.s32.totalorder %s49, 1
      %p459 = por %p457, %p458
      %p461 = scmp.ne.s32.totalorder %s444, %s460
      %p462 = scmp.eq.s32.totalorder %s49, 0
      %p463 = por %p461, %p462
      %s464 = ssub.s32 %s51, %s58
      %p465 = scmp.eq.s32.totalorder %s464, 0
      %s467 = sadd.s32 %s466, 1
      %s468 = scalar_select %p465, %s466, %s467
      %p471 = pneg %p465
      %p472 = scmp.eq.s32.totalorder %s43, 1
      %p473 = por %p471, %p472
      %p474 = scmp.ne.s32.totalorder %s466, %s469
      %p475 = scmp.eq.s32.totalorder %s43, 0
      %p476 = por %p474, %p475
      %p477 = scmp.ne.s32.totalorder %s466, %s469
      %p478 = scmp.eq.s32.totalorder %s48, 1
      %p479 = por %p477, %p478
      %p480 = scmp.ne.s32.totalorder %s469, %s470
      %p481 = scmp.eq.s32.totalorder %s48, 0
      %p482 = por %p480, %p481
      %p483 = scmp.ne.s32.totalorder %s469, %s470
      %p484 = scmp.eq.s32.totalorder %s49, 1
      %p485 = por %p483, %p484
      %p487 = scmp.ne.s32.totalorder %s470, %s486
      %p488 = scmp.eq.s32.totalorder %s49, 0
      %p489 = por %p487, %p488
      %s490 = ssub.s32 %s51, %s58
      %p491 = scmp.eq.s32.totalorder %s490, 0
      %s493 = sadd.s32 %s492, 1
      %s494 = scalar_select %p491, %s492, %s493
      %p497 = pneg %p491
      %p498 = scmp.eq.s32.totalorder %s43, 1
      %p499 = por %p497, %p498
      %p500 = scmp.ne.s32.totalorder %s492, %s495
      %p501 = scmp.eq.s32.totalorder %s43, 0
      %p502 = por %p500, %p501
      %p503 = scmp.ne.s32.totalorder %s492, %s495
      %p504 = scmp.eq.s32.totalorder %s48, 1
      %p505 = por %p503, %p504
      %p506 = scmp.ne.s32.totalorder %s495, %s496
      %p507 = scmp.eq.s32.totalorder %s48, 0
      %p508 = por %p506, %p507
      %p509 = scmp.ne.s32.totalorder %s495, %s496
      %p510 = scmp.eq.s32.totalorder %s49, 1
      %p511 = por %p509, %p510
      %p513 = scmp.ne.s32.totalorder %s496, %s512
      %p514 = scmp.eq.s32.totalorder %s49, 0
      %p515 = por %p513, %p514
      %s516 = ssub.s32 %s51, %s58
      %p517 = scmp.eq.s32.totalorder %s516, 0
      %s519 = sadd.s32 %s518, 1
      %s520 = scalar_select %p517, %s518, %s519
      %p523 = pneg %p517
      %p524 = scmp.eq.s32.totalorder %s43, 1
      %p525 = por %p523, %p524
      %p526 = scmp.ne.s32.totalorder %s518, %s521
      %p527 = scmp.eq.s32.totalorder %s43, 0
      %p528 = por %p526, %p527
      %p529 = scmp.ne.s32.totalorder %s518, %s521
      %p530 = scmp.eq.s32.totalorder %s48, 1
      %p531 = por %p529, %p530
      %p532 = scmp.ne.s32.totalorder %s521, %s522
      %p533 = scmp.eq.s32.totalorder %s48, 0
      %p534 = por %p532, %p533
      %p535 = scmp.ne.s32.totalorder %s521, %s522
      %p536 = scmp.eq.s32.totalorder %s49, 1
      %p537 = por %p535, %p536
      %p539 = scmp.ne.s32.totalorder %s522, %s538
      %p540 = scmp.eq.s32.totalorder %s49, 0
      %p541 = por %p539, %p540
      %s542 = ssub.s32 %s51, %s58
      %p543 = scmp.eq.s32.totalorder %s542, 0
      %s545 = sadd.s32 %s544, 1
      %s546 = scalar_select %p543, %s544, %s545
      %p549 = pneg %p543
      %p550 = scmp.eq.s32.totalorder %s43, 1
      %p551 = por %p549, %p550
      %p552 = scmp.ne.s32.totalorder %s544, %s547
      %p553 = scmp.eq.s32.totalorder %s43, 0
      %p554 = por %p552, %p553
      %p555 = scmp.ne.s32.totalorder %s544, %s547
      %p556 = scmp.eq.s32.totalorder %s48, 1
      %p557 = por %p555, %p556
      %p558 = scmp.ne.s32.totalorder %s547, %s548
      %p559 = scmp.eq.s32.totalorder %s48, 0
      %p560 = por %p558, %p559
      %p561 = scmp.ne.s32.totalorder %s547, %s548
      %p562 = scmp.eq.s32.totalorder %s49, 1
      %p563 = por %p561, %p562
      %p565 = scmp.ne.s32.totalorder %s548, %s564
      %p566 = scmp.eq.s32.totalorder %s49, 0
      %p567 = por %p565, %p566
      %s568 = ssub.s32 %s51, %s58
      %p569 = scmp.eq.s32.totalorder %s568, 0
      %s571 = sadd.s32 %s570, 1
      %s572 = scalar_select %p569, %s570, %s571
      %p575 = pneg %p569
      %p576 = scmp.eq.s32.totalorder %s43, 1
      %p577 = por %p575, %p576
      %p578 = scmp.ne.s32.totalorder %s570, %s573
      %p579 = scmp.eq.s32.totalorder %s43, 0
      %p580 = por %p578, %p579
      %p581 = scmp.ne.s32.totalorder %s570, %s573
      %p582 = scmp.eq.s32.totalorder %s48, 1
      %p583 = por %p581, %p582
      %p584 = scmp.ne.s32.totalorder %s573, %s574
      %p585 = scmp.eq.s32.totalorder %s48, 0
      %p586 = por %p584, %p585
      %p587 = scmp.ne.s32.totalorder %s573, %s574
      %p588 = scmp.eq.s32.totalorder %s49, 1
      %p589 = por %p587, %p588
      %p591 = scmp.ne.s32.totalorder %s574, %s590
      %p592 = scmp.eq.s32.totalorder %s49, 0
      %p593 = por %p591, %p592
      %s594 = ssub.s32 %s51, %s58
      %p595 = scmp.eq.s32.totalorder %s594, 0
      %s597 = sadd.s32 %s596, 1
      %s598 = scalar_select %p595, %s596, %s597
      %p601 = pneg %p595
      %p602 = scmp.eq.s32.totalorder %s43, 1
      %p603 = por %p601, %p602
      %p604 = scmp.ne.s32.totalorder %s596, %s599
      %p605 = scmp.eq.s32.totalorder %s43, 0
      %p606 = por %p604, %p605
      %p607 = scmp.ne.s32.totalorder %s596, %s599
      %p608 = scmp.eq.s32.totalorder %s48, 1
      %p609 = por %p607, %p608
      %p610 = scmp.ne.s32.totalorder %s599, %s600
      %p611 = scmp.eq.s32.totalorder %s48, 0
      %p612 = por %p610, %p611
      %p613 = scmp.ne.s32.totalorder %s599, %s600
      %p614 = scmp.eq.s32.totalorder %s49, 1
      %p615 = por %p613, %p614
      %p617 = scmp.ne.s32.totalorder %s600, %s616
      %p618 = scmp.eq.s32.totalorder %s49, 0
      %p619 = por %p617, %p618
      %s621 = sadd.s32 %s620, 1
      %p624 = scmp.eq.s32.totalorder %s43, 1
      %p625 = scmp.ne.s32.totalorder %s620, %s622
      %p626 = scmp.eq.s32.totalorder %s43, 0
      %p627 = por %p625, %p626
      %p628 = scmp.ne.s32.totalorder %s620, %s622
      %p629 = scmp.eq.s32.totalorder %s48, 1
      %p630 = por %p628, %p629
      %p631 = scmp.ne.s32.totalorder %s622, %s623
      %p632 = scmp.eq.s32.totalorder %s48, 0
      %p633 = por %p631, %p632
      %p634 = scmp.ne.s32.totalorder %s622, %s623
      %p635 = scmp.eq.s32.totalorder %s49, 1
      %p636 = por %p634, %p635
      %p638 = scmp.ne.s32.totalorder %s623, %s637
      %p639 = scmp.eq.s32.totalorder %s49, 0
      %p640 = por %p638, %p639
      %s642 = sadd.s32 %s641, 1
      %p645 = scmp.eq.s32.totalorder %s43, 1
      %p646 = scmp.ne.s32.totalorder %s641, %s643
      %p647 = scmp.eq.s32.totalorder %s43, 0
      %p648 = por %p646, %p647
      %p649 = scmp.ne.s32.totalorder %s641, %s643
      %p650 = scmp.eq.s32.totalorder %s48, 1
      %p651 = por %p649, %p650
      %p652 = scmp.ne.s32.totalorder %s643, %s644
      %p653 = scmp.eq.s32.totalorder %s48, 0
      %p654 = por %p652, %p653
      %p655 = scmp.ne.s32.totalorder %s643, %s644
      %p656 = scmp.eq.s32.totalorder %s49, 1
      %p657 = por %p655, %p656
      %p659 = scmp.ne.s32.totalorder %s644, %s658
      %p660 = scmp.eq.s32.totalorder %s49, 0
      %p661 = por %p659, %p660
      %s662 = ssub.s32 %s50, %s62
      %p663 = scmp.eq.s32.totalorder %s662, 0
      %s665 = sadd.s32 %s664, 1
      %s666 = scalar_select %p663, %s664, %s665
      %p669 = pneg %p663
      %p670 = scmp.eq.s32.totalorder %s43, 1
      %p671 = por %p669, %p670
      %p672 = scmp.ne.s32.totalorder %s664, %s667
      %p673 = scmp.eq.s32.totalorder %s43, 0
      %p674 = por %p672, %p673
      %p675 = scmp.ne.s32.totalorder %s664, %s667
      %p676 = scmp.eq.s32.totalorder %s48, 1
      %p677 = por %p675, %p676
      %p678 = scmp.ne.s32.totalorder %s667, %s668
      %p679 = scmp.eq.s32.totalorder %s48, 0
      %p680 = por %p678, %p679
      %p681 = scmp.ne.s32.totalorder %s667, %s668
      %p682 = scmp.eq.s32.totalorder %s49, 1
      %p683 = por %p681, %p682
      %p685 = scmp.ne.s32.totalorder %s668, %s684
      %p686 = scmp.eq.s32.totalorder %s49, 0
      %p687 = por %p685, %p686
      %p688 = scmp.le.s32.totalorder 1, %s43
      %p689 = scmp.lt.s32.totalorder %s43, 3
      %p690 = pnand %p688, %p689
      %p691 = pneg %p690
      // Predicated region
      $region9: #{tpu_custom_call.1} parent=5 // pred_check
        _
      $region10: #{tpu_custom_call.1} parent=5 // pred_check_branch
        %693 = sbr.rel (%p690) target = $region12
      $region11: #{tpu_custom_call.1} parent=5 // pred_region
        %s694 = ssub.s32 %s43, 1
        // Predicated region
        $region13: #{tpu_custom_call.1} parent=11 // pred_check
          %p695 = pneg %p81
        $region14: #{tpu_custom_call.1} parent=11 // pred_check_branch
          %697 = sbr.rel (%p695) target = $region16
        $region15: #{tpu_custom_call.1} parent=11 // pred_region
          %s698 = smul.u32 2, %s52
          %p699 = scmp.lt.s32.totalorder %s698, 1
          %s700 = scalar_select %p699, %s698, 1
          %s701 = smul.addr %s700, 4
          %s702 = scalar_lea.vmem %s0, %s701
          %s703 = smul.u32 2, %s52
        $region16: #{tpu_custom_call.1} parent=11 // pred_fallthru
          _
        // Predicated region
        $region17: #{tpu_custom_call.1} parent=11 // pred_check
          %p704 = pneg %p102
        $region18: #{tpu_custom_call.1} parent=11 // pred_check_branch
          %706 = sbr.rel (%p704) target = $region20
        $region19: #{tpu_custom_call.1} parent=11 // pred_region
          _
        $region20: #{tpu_custom_call.1} parent=11 // pred_fallthru
          _
        // Predicated region
        $region21: #{tpu_custom_call.1} parent=11 // pred_check
          %p707 = pneg %p128
        $region22: #{tpu_custom_call.1} parent=11 // pred_check_branch
          %709 = sbr.rel (%p707) target = $region24
        $region23: #{tpu_custom_call.1} parent=11 // pred_region
          %s710 = smul.u32 2, %s52
          %p711 = scmp.lt.s32.totalorder %s710, 1
          %s712 = scalar_select %p711, %s710, 1
          %s713 = smul.addr %s712, 4
          %s714 = scalar_lea.vmem %s2, %s713
          %s715 = smul.u32 2, %s52
        $region24: #{tpu_custom_call.1} parent=11 // pred_fallthru
          _
        // Predicated region
        $region25: #{tpu_custom_call.1} parent=11 // pred_check
          %p716 = pneg %p149
        $region26: #{tpu_custom_call.1} parent=11 // pred_check_branch
          %718 = sbr.rel (%p716) target = $region28
        $region27: #{tpu_custom_call.1} parent=11 // pred_region
          _
        $region28: #{tpu_custom_call.1} parent=11 // pred_fallthru
          _
        // Predicated region
        $region29: #{tpu_custom_call.1} parent=11 // pred_check
          %p719 = pneg %p170
        $region30: #{tpu_custom_call.1} parent=11 // pred_check_branch
          %721 = sbr.rel (%p719) target = $region32
        $region31: #{tpu_custom_call.1} parent=11 // pred_region
          _
        $region32: #{tpu_custom_call.1} parent=11 // pred_fallthru
          _
        // Predicated region
        $region33: #{tpu_custom_call.1} parent=11 // pred_check
          %p722 = pneg %p196
        $region34: #{tpu_custom_call.1} parent=11 // pred_check_branch
          %724 = sbr.rel (%p722) target = $region36
        $region35: #{tpu_custom_call.1} parent=11 // pred_region
          %s725 = smul.u32 2, %s52
          %p726 = scmp.lt.s32.totalorder %s725, 1
          %s727 = scalar_select %p726, %s725, 1
          %s728 = scalar_lea.vmem %s5, %s727
          %s729 = smul.u32 2, %s52
        $region36: #{tpu_custom_call.1} parent=11 // pred_fallthru
          _
        // Predicated region
        $region37: #{tpu_custom_call.1} parent=11 // pred_check
          %p730 = pneg %p633
        $region38: #{tpu_custom_call.1} parent=11 // pred_check_branch
          %732 = sbr.rel (%p730) target = $region40
        $region39: #{tpu_custom_call.1} parent=11 // pred_region
          _
        $region40: #{tpu_custom_call.1} parent=11 // pred_fallthru
          _
        // Predicated region
        $region41: #{tpu_custom_call.1} parent=11 // pred_check
          %p733 = pneg %p654
        $region42: #{tpu_custom_call.1} parent=11 // pred_check_branch
          %735 = sbr.rel (%p733) target = $region44
        $region43: #{tpu_custom_call.1} parent=11 // pred_region
          _
        $region44: #{tpu_custom_call.1} parent=11 // pred_fallthru
          _
      $region12: #{tpu_custom_call.1} parent=5 // pred_fallthru
        _
      %p736 = scmp.lt.s32.totalorder %s43, 2
      // Predicated region
      $region45: #{tpu_custom_call.1} parent=5 // pred_check
        %p737 = pneg %p736
      $region46: #{tpu_custom_call.1} parent=5 // pred_check_branch
        %739 = sbr.rel (%p737) target = $region48
      $region47: #{tpu_custom_call.1} parent=5 // pred_region
        // Predicated region
        $region49: #{tpu_custom_call.1} parent=47 // pred_check
          %p740 = pneg %p216
        $region50: #{tpu_custom_call.1} parent=47 // pred_check_branch
          %742 = sbr.rel (%p740) target = $region52
        $region51: #{tpu_custom_call.1} parent=47 // pred_region
          %s743 = sand.u32 %s206, 1
          %s744 = scalar_lea.sflag [#allocation5], %s743
          %s745 = sand.u32 %s206, 1
          %s746 = smul.addr %s745, 64
          %s747 = scalar_lea.vmem [#allocation4], %s746
          %s749 = ssub.s32 1024, 1024
          %750 = vsyncadd %s744, %s749
          %s751 = smul.addr %s51, 16
          %s752 = smul.addr %s751, 64
          %s753 = scalar_lea.hbm %s6, %s752
          %s754 = sshll.u32 %s747, 4
          %s755 = int_to_ptr.vmem [resolvable:$true] %s754
          %760 = dma.hbm_to_vmem [thread:$0]  %s753, 1024, %s755, %s744, 64, 64, 4
        $region52: #{tpu_custom_call.1} parent=47 // pred_fallthru
          _
        // Predicated region
        $region53: #{tpu_custom_call.1} parent=47 // pred_check
          %p761 = pneg %p242
        $region54: #{tpu_custom_call.1} parent=47 // pred_check_branch
          %763 = sbr.rel (%p761) target = $region56
        $region55: #{tpu_custom_call.1} parent=47 // pred_region
          %p764 = scmp.lt.s32.totalorder %s51, 1
          %s765 = scalar_select %p764, %s51, 1
          %s766 = scalar_lea.vmem %s7, %s765
        $region56: #{tpu_custom_call.1} parent=47 // pred_fallthru
          _
        // Predicated region
        $region57: #{tpu_custom_call.1} parent=47 // pred_check
          %p767 = pneg %p268
        $region58: #{tpu_custom_call.1} parent=47 // pred_check_branch
          %769 = sbr.rel (%p767) target = $region60
        $region59: #{tpu_custom_call.1} parent=47 // pred_region
          %s770 = sand.u32 %s43, 1
          %s771 = scalar_lea.sflag [#allocation8], %s770
          %s772 = sand.u32 %s258, 1
          %s773 = smul.addr %s772, 64
          %s774 = scalar_lea.vmem [#allocation7], %s773
          %s776 = ssub.s32 1024, 1024
          %777 = vsyncadd %s771, %s776
          %s778 = smul.addr %s51, 16
          %s779 = smul.addr %s778, 64
          %s780 = scalar_lea.hbm %s8, %s779
          %s781 = sshll.u32 %s774, 4
          %s782 = int_to_ptr.vmem [resolvable:$true] %s781
          %787 = dma.hbm_to_vmem [thread:$0]  %s780, 1024, %s782, %s771, 64, 64, 4
        $region60: #{tpu_custom_call.1} parent=47 // pred_fallthru
          _
        // Predicated region
        $region61: #{tpu_custom_call.1} parent=47 // pred_check
          %p788 = pneg %p294
        $region62: #{tpu_custom_call.1} parent=47 // pred_check_branch
          %790 = sbr.rel (%p788) target = $region64
        $region63: #{tpu_custom_call.1} parent=47 // pred_region
          %p791 = scmp.lt.s32.totalorder %s51, 1
          %s792 = scalar_select %p791, %s51, 1
          %s793 = scalar_lea.vmem %s9, %s792
        $region64: #{tpu_custom_call.1} parent=47 // pred_fallthru
          _
        // Predicated region
        $region65: #{tpu_custom_call.1} parent=47 // pred_check
          %p794 = pneg %p320
        $region66: #{tpu_custom_call.1} parent=47 // pred_check_branch
          %796 = sbr.rel (%p794) target = $region68
        $region67: #{tpu_custom_call.1} parent=47 // pred_region
          %s797 = sand.u32 %s43, 1
          %s798 = scalar_lea.sflag [#allocation8], %s797
          %s799 = sand.u32 %s310, 1
          %s800 = smul.addr %s799, 64
          %s801 = scalar_lea.vmem [#allocation9], %s800
          %s803 = ssub.s32 1024, 1024
          %804 = vsyncadd %s798, %s803
          %s805 = smul.addr %s51, 16
          %s806 = smul.addr %s805, 64
          %s807 = scalar_lea.hbm %s10, %s806
          %s808 = sshll.u32 %s801, 4
          %s809 = int_to_ptr.vmem [resolvable:$true] %s808
          %814 = dma.hbm_to_vmem [thread:$0]  %s807, 1024, %s809, %s798, 64, 64, 4
        $region68: #{tpu_custom_call.1} parent=47 // pred_fallthru
          _
        // Predicated region
        $region69: #{tpu_custom_call.1} parent=47 // pred_check
          %p815 = pneg %p346
        $region70: #{tpu_custom_call.1} parent=47 // pred_check_branch
          %817 = sbr.rel (%p815) target = $region72
        $region71: #{tpu_custom_call.1} parent=47 // pred_region
          %p818 = scmp.lt.s32.totalorder %s51, 1
          %s819 = scalar_select %p818, %s51, 1
          %s820 = scalar_lea.vmem %s11, %s819
        $region72: #{tpu_custom_call.1} parent=47 // pred_fallthru
          _
        // Predicated region
        $region73: #{tpu_custom_call.1} parent=47 // pred_check
          %p821 = pneg %p372
        $region74: #{tpu_custom_call.1} parent=47 // pred_check_branch
          %823 = sbr.rel (%p821) target = $region76
        $region75: #{tpu_custom_call.1} parent=47 // pred_region
          %s824 = sand.u32 %s43, 1
          %s825 = scalar_lea.sflag [#allocation11], %s824
          %s826 = sand.u32 %s362, 1
          %s827 = smul.addr %s826, 64
          %s828 = scalar_lea.vmem [#allocation10], %s827
          %s830 = ssub.s32 1024, 1024
          %831 = vsyncadd %s825, %s830
          %s832 = smul.addr %s51, 16
          %s833 = smul.addr %s832, 64
          %s834 = scalar_lea.hbm %s12, %s833
          %s835 = sshll.u32 %s828, 4
          %s836 = int_to_ptr.vmem [resolvable:$true] %s835
          %841 = dma.hbm_to_vmem [thread:$0]  %s834, 1024, %s836, %s825, 64, 64, 4
        $region76: #{tpu_custom_call.1} parent=47 // pred_fallthru
          _
        // Predicated region
        $region77: #{tpu_custom_call.1} parent=47 // pred_check
          %p842 = pneg %p398
        $region78: #{tpu_custom_call.1} parent=47 // pred_check_branch
          %844 = sbr.rel (%p842) target = $region80
        $region79: #{tpu_custom_call.1} parent=47 // pred_region
          %p845 = scmp.lt.s32.totalorder %s51, 1
          %s846 = scalar_select %p845, %s51, 1
          %s847 = scalar_lea.vmem %s13, %s846
        $region80: #{tpu_custom_call.1} parent=47 // pred_fallthru
          _
        // Predicated region
        $region81: #{tpu_custom_call.1} parent=47 // pred_check
          %p848 = pneg %p424
        $region82: #{tpu_custom_call.1} parent=47 // pred_check_branch
          %850 = sbr.rel (%p848) target = $region84
        $region83: #{tpu_custom_call.1} parent=47 // pred_region
          %p851 = scmp.lt.s32.totalorder %s51, 1
          %s852 = scalar_select %p851, %s51, 1
          %s853 = scalar_lea.vmem %s14, %s852
        $region84: #{tpu_custom_call.1} parent=47 // pred_fallthru
          _
        // Predicated region
        $region85: #{tpu_custom_call.1} parent=47 // pred_check
          %p854 = pneg %p450
        $region86: #{tpu_custom_call.1} parent=47 // pred_check_branch
          %856 = sbr.rel (%p854) target = $region88
        $region87: #{tpu_custom_call.1} parent=47 // pred_region
          %p857 = scmp.lt.s32.totalorder %s51, 1
          %s858 = scalar_select %p857, %s51, 1
          %s859 = scalar_lea.vmem %s15, %s858
        $region88: #{tpu_custom_call.1} parent=47 // pred_fallthru
          _
        // Predicated region
        $region89: #{tpu_custom_call.1} parent=47 // pred_check
          %p860 = pneg %p476
        $region90: #{tpu_custom_call.1} parent=47 // pred_check_branch
          %862 = sbr.rel (%p860) target = $region92
        $region91: #{tpu_custom_call.1} parent=47 // pred_region
          %s863 = sand.u32 %s43, 1
          %s864 = scalar_lea.sflag [#allocation11], %s863
          %s865 = sand.u32 %s466, 1
          %s866 = smul.addr %s865, 128
          %s867 = scalar_lea.vmem [#allocation12], %s866
          %s869 = ssub.s32 2048, 2048
          %870 = vsyncadd %s864, %s869
          %s871 = smul.addr %s51, 32
          %s872 = smul.addr %s871, 64
          %s873 = scalar_lea.hbm %s16, %s872
          %s874 = sshll.u32 %s867, 4
          %s875 = int_to_ptr.vmem [resolvable:$true] %s874
          %880 = dma.hbm_to_vmem [thread:$0]  %s873, 2048, %s875, %s864, 128, 128, 8
        $region92: #{tpu_custom_call.1} parent=47 // pred_fallthru
          _
        // Predicated region
        $region93: #{tpu_custom_call.1} parent=47 // pred_check
          %p881 = pneg %p502
        $region94: #{tpu_custom_call.1} parent=47 // pred_check_branch
          %883 = sbr.rel (%p881) target = $region96
        $region95: #{tpu_custom_call.1} parent=47 // pred_region
          %p884 = scmp.lt.s32.totalorder %s51, 1
          %s885 = scalar_select %p884, %s51, 1
          %s886 = smul.addr %s885, 2
          %s887 = scalar_lea.vmem %s17, %s886
        $region96: #{tpu_custom_call.1} parent=47 // pred_fallthru
          _
        // Predicated region
        $region97: #{tpu_custom_call.1} parent=47 // pred_check
          %p888 = pneg %p528
        $region98: #{tpu_custom_call.1} parent=47 // pred_check_branch
          %890 = sbr.rel (%p888) target = $region100
        $region99: #{tpu_custom_call.1} parent=47 // pred_region
          %s891 = sand.u32 %s518, 1
          %s892 = scalar_lea.sflag [#allocation14], %s891
          %s893 = sand.u32 %s518, 1
          %s894 = smul.addr %s893, 128
          %s895 = scalar_lea.vmem [#allocation13], %s894
          %s897 = ssub.s32 2048, 2048
          %898 = vsyncadd %s892, %s897
          %s899 = smul.addr %s51, 32
          %s900 = smul.addr %s899, 64
          %s901 = scalar_lea.hbm %s18, %s900
          %s902 = sshll.u32 %s895, 4
          %s903 = int_to_ptr.vmem [resolvable:$true] %s902
          %908 = dma.hbm_to_vmem [thread:$0]  %s901, 2048, %s903, %s892, 64, 64, 4
        $region100: #{tpu_custom_call.1} parent=47 // pred_fallthru
          _
        // Predicated region
        $region101: #{tpu_custom_call.1} parent=47 // pred_check
          %p909 = pneg %p554
        $region102: #{tpu_custom_call.1} parent=47 // pred_check_branch
          %911 = sbr.rel (%p909) target = $region104
        $region103: #{tpu_custom_call.1} parent=47 // pred_region
          %p912 = scmp.lt.s32.totalorder %s51, 1
          %s913 = scalar_select %p912, %s51, 1
          %s914 = scalar_lea.vmem %s19, %s913
        $region104: #{tpu_custom_call.1} parent=47 // pred_fallthru
          _
        // Predicated region
        $region105: #{tpu_custom_call.1} parent=47 // pred_check
          %p915 = pneg %p580
        $region106: #{tpu_custom_call.1} parent=47 // pred_check_branch
          %917 = sbr.rel (%p915) target = $region108
        $region107: #{tpu_custom_call.1} parent=47 // pred_region
          %p918 = scmp.lt.s32.totalorder %s51, 1
          %s919 = scalar_select %p918, %s51, 1
          %s920 = scalar_lea.vmem %s20, %s919
        $region108: #{tpu_custom_call.1} parent=47 // pred_fallthru
          _
        // Predicated region
        $region109: #{tpu_custom_call.1} parent=47 // pred_check
          %p921 = pneg %p606
        $region110: #{tpu_custom_call.1} parent=47 // pred_check_branch
          %923 = sbr.rel (%p921) target = $region112
        $region111: #{tpu_custom_call.1} parent=47 // pred_region
          %p924 = scmp.lt.s32.totalorder %s51, 1
          %s925 = scalar_select %p924, %s51, 1
          %s926 = scalar_lea.vmem %s21, %s925
        $region112: #{tpu_custom_call.1} parent=47 // pred_fallthru
          _
      $region48: #{tpu_custom_call.1} parent=5 // pred_fallthru
        _
      %p927 = scmp.le.s32.totalorder 1, %s43
      %p928 = scmp.lt.s32.totalorder %s43, 3
      %p929 = pnand %p927, %p928
      %p930 = pneg %p929
      // Predicated region
      $region113: #{tpu_custom_call.1} parent=5 // pred_check
        _
      $region114: #{tpu_custom_call.1} parent=5 // pred_check_branch
        %932 = sbr.rel (%p929) target = $region116
      $region115: #{tpu_custom_call.1} parent=5 // pred_region
        %s933 = ssub.s32 %s43, 1
        %s934 = sand.u32 %s209, 1
        %s935 = scalar_lea.sflag [#allocation5], %s934
        %s936 = sand.u32 %s209, 1
        %s937 = smul.addr %s936, 64
        %s938 = scalar_lea.vmem [#allocation4], %s937
        // Predicated region
        $region117: #{tpu_custom_call.1} parent=115 // pred_check
          %p939 = pneg %p222
        $region118: #{tpu_custom_call.1} parent=115 // pred_check_branch
          %941 = sbr.rel (%p939) target = $region120
        $region119: #{tpu_custom_call.1} parent=115 // pred_region
          %942 = dma.done %s935, 1024
        $region120: #{tpu_custom_call.1} parent=115 // pred_fallthru
          _
        %s943 = sand.u32 %s48, 1
        %s944 = scalar_lea.sflag [#allocation8], %s943
        %s945 = sand.u32 %s261, 1
        %s946 = smul.addr %s945, 64
        %s947 = scalar_lea.vmem [#allocation7], %s946
        // Predicated region
        $region121: #{tpu_custom_call.1} parent=115 // pred_check
          %p948 = pneg %p274
        $region122: #{tpu_custom_call.1} parent=115 // pred_check_branch
          %950 = sbr.rel (%p948) target = $region124
        $region123: #{tpu_custom_call.1} parent=115 // pred_region
          %951 = dma.done %s944, 1024
        $region124: #{tpu_custom_call.1} parent=115 // pred_fallthru
          _
        %s952 = sand.u32 %s48, 1
        %s953 = scalar_lea.sflag [#allocation8], %s952
        %s954 = sand.u32 %s313, 1
        %s955 = smul.addr %s954, 64
        %s956 = scalar_lea.vmem [#allocation9], %s955
        // Predicated region
        $region125: #{tpu_custom_call.1} parent=115 // pred_check
          %p957 = pneg %p326
        $region126: #{tpu_custom_call.1} parent=115 // pred_check_branch
          %959 = sbr.rel (%p957) target = $region128
        $region127: #{tpu_custom_call.1} parent=115 // pred_region
          %960 = dma.done %s953, 1024
        $region128: #{tpu_custom_call.1} parent=115 // pred_fallthru
          _
        %s961 = sand.u32 %s48, 1
        %s962 = scalar_lea.sflag [#allocation11], %s961
        %s963 = sand.u32 %s365, 1
        %s964 = smul.addr %s963, 64
        %s965 = scalar_lea.vmem [#allocation10], %s964
        // Predicated region
        $region129: #{tpu_custom_call.1} parent=115 // pred_check
          %p966 = pneg %p378
        $region130: #{tpu_custom_call.1} parent=115 // pred_check_branch
          %968 = sbr.rel (%p966) target = $region132
        $region131: #{tpu_custom_call.1} parent=115 // pred_region
          %969 = dma.done %s962, 1024
        $region132: #{tpu_custom_call.1} parent=115 // pred_fallthru
          _
        %s970 = sand.u32 %s48, 1
        %s971 = scalar_lea.sflag [#allocation11], %s970
        %s972 = sand.u32 %s469, 1
        %s973 = smul.addr %s972, 128
        %s974 = scalar_lea.vmem [#allocation12], %s973
        // Predicated region
        $region133: #{tpu_custom_call.1} parent=115 // pred_check
          %p975 = pneg %p482
        $region134: #{tpu_custom_call.1} parent=115 // pred_check_branch
          %977 = sbr.rel (%p975) target = $region136
        $region135: #{tpu_custom_call.1} parent=115 // pred_region
          %978 = dma.done %s971, 2048
        $region136: #{tpu_custom_call.1} parent=115 // pred_fallthru
          _
        %s979 = sand.u32 %s521, 1
        %s980 = scalar_lea.sflag [#allocation14], %s979
        %s981 = sand.u32 %s521, 1
        %s982 = smul.addr %s981, 128
        %s983 = scalar_lea.vmem [#allocation13], %s982
        // Predicated region
        $region137: #{tpu_custom_call.1} parent=115 // pred_check
          %p984 = pneg %p534
        $region138: #{tpu_custom_call.1} parent=115 // pred_check_branch
          %986 = sbr.rel (%p984) target = $region140
        $region139: #{tpu_custom_call.1} parent=115 // pred_region
          %987 = dma.done %s980, 2048
        $region140: #{tpu_custom_call.1} parent=115 // pred_fallthru
          _
        %s988 = smul.u32 2, %s52
        %p989 = scmp.lt.s32.totalorder %s988, 1
        %s990 = scalar_select %p989, %s988, 1
        %s991 = smul.addr %s990, 4
        %s992 = scalar_lea.vmem %s0, %s991
        %p993 = pneg %p81
        %p994 = pneg %p78
        %p995 = pneg %p102
        %p996 = pneg %p99
        %s997 = smul.u32 2, %s52
        %p998 = scmp.lt.s32.totalorder %s997, 1
        %s999 = scalar_select %p998, %s997, 1
        %s1000 = smul.addr %s999, 4
        %s1001 = scalar_lea.vmem %s2, %s1000
        %p1002 = pneg %p128
        %p1003 = pneg %p125
        %p1004 = pneg %p149
        %p1005 = pneg %p146
        %p1006 = pneg %p170
        %p1007 = pneg %p167
        %s1008 = smul.u32 2, %s52
        %p1009 = scmp.lt.s32.totalorder %s1008, 1
        %s1010 = scalar_select %p1009, %s1008, 1
        %s1011 = scalar_lea.vmem %s5, %s1010
        %p1012 = pneg %p196
        %p1013 = pneg %p193
        %s1014 = sand.u32 %s209, 1
        %s1015 = scalar_lea.sflag [#allocation5], %s1014
        %s1016 = sand.u32 %s209, 1
        %s1017 = smul.addr %s1016, 64
        %s1018 = scalar_lea.vmem [#allocation4], %s1017
        %p1019 = pneg %p222
        %p1020 = pneg %p219
        %p1021 = scmp.lt.s32.totalorder %s53, 1
        %s1022 = scalar_select %p1021, %s53, 1
        %s1023 = scalar_lea.vmem %s7, %s1022
        %p1024 = pneg %p248
        %p1025 = pneg %p245
        %s1026 = sand.u32 %s48, 1
        %s1027 = scalar_lea.sflag [#allocation8], %s1026
        %s1028 = sand.u32 %s261, 1
        %s1029 = smul.addr %s1028, 64
        %s1030 = scalar_lea.vmem [#allocation7], %s1029
        %p1031 = pneg %p274
        %p1032 = pneg %p271
        %p1033 = scmp.lt.s32.totalorder %s53, 1
        %s1034 = scalar_select %p1033, %s53, 1
        %s1035 = scalar_lea.vmem %s9, %s1034
        %p1036 = pneg %p300
        %p1037 = pneg %p297
        %s1038 = sand.u32 %s48, 1
        %s1039 = scalar_lea.sflag [#allocation8], %s1038
        %s1040 = sand.u32 %s313, 1
        %s1041 = smul.addr %s1040, 64
        %s1042 = scalar_lea.vmem [#allocation9], %s1041
        %p1043 = pneg %p326
        %p1044 = pneg %p323
        %p1045 = scmp.lt.s32.totalorder %s53, 1
        %s1046 = scalar_select %p1045, %s53, 1
        %s1047 = scalar_lea.vmem %s11, %s1046
        %p1048 = pneg %p352
        %p1049 = pneg %p349
        %s1050 = sand.u32 %s48, 1
        %s1051 = scalar_lea.sflag [#allocation11], %s1050
        %s1052 = sand.u32 %s365, 1
        %s1053 = smul.addr %s1052, 64
        %s1054 = scalar_lea.vmem [#allocation10], %s1053
        %p1055 = pneg %p378
        %p1056 = pneg %p375
        %p1057 = scmp.lt.s32.totalorder %s53, 1
        %s1058 = scalar_select %p1057, %s53, 1
        %s1059 = scalar_lea.vmem %s13, %s1058
        %p1060 = pneg %p404
        %p1061 = pneg %p401
        %p1062 = scmp.lt.s32.totalorder %s53, 1
        %s1063 = scalar_select %p1062, %s53, 1
        %s1064 = scalar_lea.vmem %s14, %s1063
        %p1065 = pneg %p430
        %p1066 = pneg %p427
        %p1067 = scmp.lt.s32.totalorder %s53, 1
        %s1068 = scalar_select %p1067, %s53, 1
        %s1069 = scalar_lea.vmem %s15, %s1068
        %p1070 = pneg %p456
        %p1071 = pneg %p453
        %s1072 = sand.u32 %s48, 1
        %s1073 = scalar_lea.sflag [#allocation11], %s1072
        %s1074 = sand.u32 %s469, 1
        %s1075 = smul.addr %s1074, 128
        %s1076 = scalar_lea.vmem [#allocation12], %s1075
        %p1077 = pneg %p482
        %p1078 = pneg %p479
        %p1079 = scmp.lt.s32.totalorder %s53, 1
        %s1080 = scalar_select %p1079, %s53, 1
        %s1081 = smul.addr %s1080, 2
        %s1082 = scalar_lea.vmem %s17, %s1081
        %p1083 = pneg %p508
        %p1084 = pneg %p505
        %s1085 = sand.u32 %s521, 1
        %s1086 = scalar_lea.sflag [#allocation14], %s1085
        %s1087 = sand.u32 %s521, 1
        %s1088 = smul.addr %s1087, 128
        %s1089 = scalar_lea.vmem [#allocation13], %s1088
        %p1090 = pneg %p534
        %p1091 = pneg %p531
        %p1092 = scmp.lt.s32.totalorder %s53, 1
        %s1093 = scalar_select %p1092, %s53, 1
        %s1094 = scalar_lea.vmem %s19, %s1093
        %p1095 = pneg %p560
        %p1096 = pneg %p557
        %p1097 = scmp.lt.s32.totalorder %s53, 1
        %s1098 = scalar_select %p1097, %s53, 1
        %s1099 = scalar_lea.vmem %s20, %s1098
        %p1100 = pneg %p586
        %p1101 = pneg %p583
        %p1102 = scmp.lt.s32.totalorder %s53, 1
        %s1103 = scalar_select %p1102, %s53, 1
        %s1104 = scalar_lea.vmem %s21, %s1103
        %p1105 = pneg %p612
        %p1106 = pneg %p609
        %p1107 = pneg %p633
        %p1108 = pneg %p630
        %p1109 = pneg %p654
        %p1110 = pneg %p651
        %p1111 = pneg %p680
        %p1112 = pneg %p677
        %s1113 = smul.u32 2, %s52
        %p1114 = scmp.lt.s32.totalorder %s1113, 1
        %s1115 = scalar_select %p1114, %s1113, 1
        %s1116 = smul.addr %s1115, 4
        %s1117 = scalar_lea.vmem %s0, %s1116
        %s1118 = smul.u32 2, %s52
        %s1119 = smul.u32 2, %s52
        %p1120 = scmp.lt.s32.totalorder %s1119, 1
        %s1121 = scalar_select %p1120, %s1119, 1
        %s1122 = smul.addr %s1121, 4
        %s1123 = scalar_lea.vmem %s2, %s1122
        %s1124 = smul.u32 2, %s52
        %s1125 = smul.u32 2, %s52
        %p1126 = scmp.lt.s32.totalorder %s1125, 1
        %s1127 = scalar_select %p1126, %s1125, 1
        %s1128 = scalar_lea.vmem %s5, %s1127
        %s1129 = smul.u32 2, %s52
        %p1130 = scmp.lt.s32.totalorder %s53, 1
        %s1131 = scalar_select %p1130, %s53, 1
        %s1132 = scalar_lea.vmem %s7, %s1131
        %p1133 = scmp.lt.s32.totalorder %s53, 1
        %s1134 = scalar_select %p1133, %s53, 1
        %s1135 = scalar_lea.vmem %s9, %s1134
        %p1136 = scmp.lt.s32.totalorder %s53, 1
        %s1137 = scalar_select %p1136, %s53, 1
        %s1138 = scalar_lea.vmem %s11, %s1137
        %p1139 = scmp.lt.s32.totalorder %s53, 1
        %s1140 = scalar_select %p1139, %s53, 1
        %s1141 = scalar_lea.vmem %s13, %s1140
        %p1142 = scmp.lt.s32.totalorder %s53, 1
        %s1143 = scalar_select %p1142, %s53, 1
        %s1144 = scalar_lea.vmem %s14, %s1143
        %p1145 = scmp.lt.s32.totalorder %s53, 1
        %s1146 = scalar_select %p1145, %s53, 1
        %s1147 = scalar_lea.vmem %s15, %s1146
        %p1148 = scmp.lt.s32.totalorder %s53, 1
        %s1149 = scalar_select %p1148, %s53, 1
        %s1150 = smul.addr %s1149, 2
        %s1151 = scalar_lea.vmem %s17, %s1150
        %p1152 = scmp.lt.s32.totalorder %s53, 1
        %s1153 = scalar_select %p1152, %s53, 1
        %s1154 = scalar_lea.vmem %s19, %s1153
        %p1155 = scmp.lt.s32.totalorder %s53, 1
        %s1156 = scalar_select %p1155, %s53, 1
        %s1157 = scalar_lea.vmem %s20, %s1156
        %p1158 = scmp.lt.s32.totalorder %s53, 1
        %s1159 = scalar_select %p1158, %s53, 1
        %s1160 = scalar_lea.vmem %s21, %s1159
        %p1162 = scmp.eq.s32.totalorder %s53, 0
        // Predicated region
        $region141: #{tpu_custom_call.1} parent=115 // pred_check
          %p1163 = pneg %p1162
        $region142: #{tpu_custom_call.1} parent=115 // pred_check_branch
          %1165 = sbr.rel (%p1163) target = $region144
        $region143: #{tpu_custom_call.1} parent=115 // pred_region
          %v1166 = vld [vmem:[%s1117] sm:$0xf]
          %v1167 = vld [vmem:[%s1117 + $0x4] sm:$0xf]
          %v1168 = vunpack.c.l.bf16 %v1166
          %v1169 = vunpack.c.l.bf16 %v1167
          %v1170 = vld [vmem:[%s1] sm:$0xf]
          %v1171 = vunpack.c.l.bf16 %v1170
          %v1172 = vadd.f32 %v1168, %v1171
          %v1173 = vadd.f32 %v1169, %v1171
          %v1174 = vld [vmem:[%s1123] sm:$0xf]
          %v1175 = vld [vmem:[%s1123 + $0x4] sm:$0xf]
          %v1176 = vunpack.c.l.bf16 %v1174
          %v1177 = vunpack.c.l.bf16 %v1175
          %v1178 = vadd.f32 %v1172, %v1176
          %v1179 = vadd.f32 %v1173, %v1177
          %v1180 = vld [vmem:[%s3] sm:$0x1]
          %v1181 = vld [vmem:[%s4] sm:$0x1]
          %1182 = vadd.xlane.f32.xlu0 %v1178
          %v1183 = vpop.xlane.xlu0 %1182
          %1184 = vadd.xlane.f32.xlu0 %v1179
          %v1185 = vpop.xlane.xlu0 %1184
          %v1186 = vrcp.pop 128.0
          %v1187 = vmul.f32 %v1183, %v1186
          %v1188 = vmul.f32 %v1185, %v1186
          %v1189 = vsub.f32 %v1178, %v1187
          %v1190 = vsub.f32 %v1179, %v1188
          %v1191 = vmul.f32 %v1189, %v1189
          %v1192 = vmul.f32 %v1190, %v1190
          %1193 = vadd.xlane.f32.xlu0 %v1191
          %v1194 = vpop.xlane.xlu0 %1193
          %1195 = vadd.xlane.f32.xlu0 %v1192
          %v1196 = vpop.xlane.xlu0 %1195
          %v1197 = vmul.f32 %v1194, %v1186
          %v1198 = vmul.f32 %v1196, %v1186
          %v1199 = vadd.f32 %v1197, 1e-12
          %v1200 = vadd.f32 %v1198, 1e-12
          %v1201 = vrsqrt.pop %v1199
          %v1202 = vrsqrt.pop %v1200
          %v1203 = vmul.f32 %v1189, %v1201
          %v1204 = vmul.f32 %v1190, %v1202
          %v1206 = vlaneseq
          %v1207 = vshrl.u32 %v1206, 7
          %v1208 = vsub.s32 0, %v1207
          %v1209 = vrot.slane %v1180, %v1208
          %v1211 = vmul.f32 %v1203, %v1209
          %v1212 = vmul.f32 %v1204, %v1209
          %v1214 = vlaneseq
          %v1215 = vshrl.u32 %v1214, 7
          %v1216 = vsub.s32 0, %v1215
          %v1217 = vrot.slane %v1181, %v1216
          %v1219 = vadd.f32 %v1211, %v1217
          %v1220 = vadd.f32 %v1212, %v1217
          %1221 = vst [vmem:[#allocation2] sm:$0xff] %v1219
          %1222 = vst [vmem:[#allocation2 + $0x8] sm:$0xff] %v1220
        $region144: #{tpu_custom_call.1} parent=115 // pred_fallthru
          _
        %v1223 = vld [vmem:[#allocation2] sm:$0xff]
        %v1224 = vld [vmem:[#allocation2 + $0x8] sm:$0xff]
        %v1225 = vpack.c.bf16 %v1224, %v1223
        %v1226 = vld [vmem:[%s1128] sm:$0x1]
        %v1227 = vld [vmem:[%s1128 + $0x1] sm:$0x1]
        %v1228 = vld [vmem:[%s938] sm:$0xf]
        %v1229 = vld [vmem:[%s938 + $0x4] sm:$0xf]
        %v1230 = vld [vmem:[%s938 + $0x8] sm:$0xf]
        %v1231 = vld [vmem:[%s938 + $0xc] sm:$0xf]
        %v1232 = vld [vmem:[%s938 + $0x10] sm:$0xf]
        %v1233 = vld [vmem:[%s938 + $0x14] sm:$0xf]
        %v1234 = vld [vmem:[%s938 + $0x18] sm:$0xf]
        %v1235 = vld [vmem:[%s938 + $0x1c] sm:$0xf]
        %v1236 = vld [vmem:[%s938 + $0x20] sm:$0xf]
        %v1237 = vld [vmem:[%s938 + $0x24] sm:$0xf]
        %v1238 = vld [vmem:[%s938 + $0x28] sm:$0xf]
        %v1239 = vld [vmem:[%s938 + $0x2c] sm:$0xf]
        %v1240 = vld [vmem:[%s938 + $0x30] sm:$0xf]
        %v1241 = vld [vmem:[%s938 + $0x34] sm:$0xf]
        %v1242 = vld [vmem:[%s938 + $0x38] sm:$0xf]
        %v1243 = vld [vmem:[%s938 + $0x3c] sm:$0xf]
        %v1244 = vld [vmem:[%s1132] sm:$0x1]
        %v1246 = vlaneseq
        %v1247 = vshrl.u32 %v1246, 7
        %v1248 = vsub.s32 0, %v1247
        %v1249 = vrot.slane %v1244, %v1248
        %v1267 = vunpack.c.l.b16 %v1228
        %v1268 = vunpack.c.l.b16 %v1229
        %v1269 = vunpack.c.l.b16 %v1230
        %v1270 = vunpack.c.l.b16 %v1231
        %v1271 = vunpack.c.l.b16 %v1232
        %v1272 = vunpack.c.l.b16 %v1233
        %v1273 = vunpack.c.l.b16 %v1234
        %v1274 = vunpack.c.l.b16 %v1235
        %v1275 = vunpack.c.l.b16 %v1236
        %v1276 = vunpack.c.l.b16 %v1237
        %v1277 = vunpack.c.l.b16 %v1238
        %v1278 = vunpack.c.l.b16 %v1239
        %v1279 = vunpack.c.l.b16 %v1240
        %v1280 = vunpack.c.l.b16 %v1241
        %v1281 = vunpack.c.l.b16 %v1242
        %v1282 = vunpack.c.l.b16 %v1243
        %v1283 = vpack.c.b16 %v1268, %v1267
        %v1284 = vpack.c.b16 %v1270, %v1269
        %v1285 = vpack.c.b16 %v1272, %v1271
        %v1286 = vpack.c.b16 %v1274, %v1273
        %v1287 = vpack.c.b16 %v1276, %v1275
        %v1288 = vpack.c.b16 %v1278, %v1277
        %v1289 = vpack.c.b16 %v1280, %v1279
        %v1290 = vpack.c.b16 %v1282, %v1281
        %1299 = vmatprep.subr.bf16.mxu0 0
        %1300 = vmatpush1.bf16.msra.mxu0 %v1290
        %1301 = vmatprep.subr.bf16.mxu0 0
        %1302 = vmatpush1.bf16.msra.mxu0 %v1289
        %1303 = vmatprep.subr.bf16.mxu0 0
        %1304 = vmatpush1.bf16.msra.mxu0 %v1288
        %1305 = vmatprep.subr.bf16.mxu0 0
        %1306 = vmatpush1.bf16.msra.mxu0 %v1287
        %1307 = vmatprep.subr.bf16.mxu0 0
        %1308 = vmatpush1.bf16.msra.mxu0 %v1286
        %1309 = vmatprep.subr.bf16.mxu0 0
        %1310 = vmatpush1.bf16.msra.mxu0 %v1285
        %1311 = vmatprep.subr.bf16.mxu0 0
        %1312 = vmatpush1.bf16.msra.mxu0 %v1284
        %1313 = vmatprep.subr.bf16.mxu0 0
        %1314 = vmatpush1.bf16.msra.mxu0 %v1283
        %1315 = vmatprep.subr.bf16.mxu0 0
        %1316 = vmatpush2.bf16.msra.mxu0 0
        %1317 = vmatprep.subr.bf16.mxu0 0
        %1318 = vmatpush2.bf16.msra.mxu0 0
        %1319 = vmatprep.subr.bf16.mxu0 0
        %1320 = vmatpush2.bf16.msra.mxu0 0
        %1321 = vmatprep.subr.bf16.mxu0 0
        %1322 = vmatpush2.bf16.msra.mxu0 0
        %1323 = vmatprep.subr.bf16.mxu0 0
        %1324 = vmatpush2.bf16.msra.mxu0 0
        %1325 = vmatprep.subr.bf16.mxu0 0
        %1326 = vmatpush2.bf16.msra.mxu0 0
        %1327 = vmatprep.subr.bf16.mxu0 0
        %1328 = vmatpush2.bf16.msra.mxu0 0
        %1329 = vmatprep.subr.bf16.mxu0 0
        %1330 = vmatpush2.bf16.msra.mxu0 0
        %1331 = vmatprep.mubr.bf16.mxu0 0
        %1332 = vmatmul.mubr.bf16.gmra.mxu0 %v1225
        %v1333 = vpop.f32.mrf.mxu0
        %v1334 = vadd.f32 %v1249, %v1333
        %v1335 = vpop.f32.mrf.mxu0
        %v1336 = vpop.f32.mrf.mxu0
        %v1337 = vadd.f32 %v1249, %v1336
        %v1338 = vpop.f32.mrf.mxu0
        %1339 = vdwg.mxu0
        %v1340 = vld [vmem:[%s947] sm:$0xf]
        %v1341 = vld [vmem:[%s947 + $0x4] sm:$0xf]
        %v1342 = vld [vmem:[%s947 + $0x8] sm:$0xf]
        %v1343 = vld [vmem:[%s947 + $0xc] sm:$0xf]
        %v1344 = vld [vmem:[%s947 + $0x10] sm:$0xf]
        %v1345 = vld [vmem:[%s947 + $0x14] sm:$0xf]
        %v1346 = vld [vmem:[%s947 + $0x18] sm:$0xf]
        %v1347 = vld [vmem:[%s947 + $0x1c] sm:$0xf]
        %v1348 = vld [vmem:[%s947 + $0x20] sm:$0xf]
        %v1349 = vld [vmem:[%s947 + $0x24] sm:$0xf]
        %v1350 = vld [vmem:[%s947 + $0x28] sm:$0xf]
        %v1351 = vld [vmem:[%s947 + $0x2c] sm:$0xf]
        %v1352 = vld [vmem:[%s947 + $0x30] sm:$0xf]
        %v1353 = vld [vmem:[%s947 + $0x34] sm:$0xf]
        %v1354 = vld [vmem:[%s947 + $0x38] sm:$0xf]
        %v1355 = vld [vmem:[%s947 + $0x3c] sm:$0xf]
        %v1356 = vld [vmem:[%s1135] sm:$0x1]
        %v1358 = vlaneseq
        %v1359 = vshrl.u32 %v1358, 7
        %v1360 = vsub.s32 0, %v1359
        %v1361 = vrot.slane %v1356, %v1360
        %v1379 = vunpack.c.l.b16 %v1340
        %v1380 = vunpack.c.l.b16 %v1341
        %v1381 = vunpack.c.l.b16 %v1342
        %v1382 = vunpack.c.l.b16 %v1343
        %v1383 = vunpack.c.l.b16 %v1344
        %v1384 = vunpack.c.l.b16 %v1345
        %v1385 = vunpack.c.l.b16 %v1346
        %v1386 = vunpack.c.l.b16 %v1347
        %v1387 = vunpack.c.l.b16 %v1348
        %v1388 = vunpack.c.l.b16 %v1349
        %v1389 = vunpack.c.l.b16 %v1350
        %v1390 = vunpack.c.l.b16 %v1351
        %v1391 = vunpack.c.l.b16 %v1352
        %v1392 = vunpack.c.l.b16 %v1353
        %v1393 = vunpack.c.l.b16 %v1354
        %v1394 = vunpack.c.l.b16 %v1355
        %v1395 = vpack.c.b16 %v1380, %v1379
        %v1396 = vpack.c.b16 %v1382, %v1381
        %v1397 = vpack.c.b16 %v1384, %v1383
        %v1398 = vpack.c.b16 %v1386, %v1385
        %v1399 = vpack.c.b16 %v1388, %v1387
        %v1400 = vpack.c.b16 %v1390, %v1389
        %v1401 = vpack.c.b16 %v1392, %v1391
        %v1402 = vpack.c.b16 %v1394, %v1393
        %1411 = vmatprep.subr.bf16.mxu0 0
        %1412 = vmatpush1.bf16.msra.mxu0 %v1402
        %1413 = vmatprep.subr.bf16.mxu0 0
        %1414 = vmatpush1.bf16.msra.mxu0 %v1401
        %1415 = vmatprep.subr.bf16.mxu0 0
        %1416 = vmatpush1.bf16.msra.mxu0 %v1400
        %1417 = vmatprep.subr.bf16.mxu0 0
        %1418 = vmatpush1.bf16.msra.mxu0 %v1399
        %1419 = vmatprep.subr.bf16.mxu0 0
        %1420 = vmatpush1.bf16.msra.mxu0 %v1398
        %1421 = vmatprep.subr.bf16.mxu0 0
        %1422 = vmatpush1.bf16.msra.mxu0 %v1397
        %1423 = vmatprep.subr.bf16.mxu0 0
        %1424 = vmatpush1.bf16.msra.mxu0 %v1396
        %1425 = vmatprep.subr.bf16.mxu0 0
        %1426 = vmatpush1.bf16.msra.mxu0 %v1395
        %1427 = vmatprep.subr.bf16.mxu0 0
        %1428 = vmatpush2.bf16.msra.mxu0 0
        %1429 = vmatprep.subr.bf16.mxu0 0
        %1430 = vmatpush2.bf16.msra.mxu0 0
        %1431 = vmatprep.subr.bf16.mxu0 0
        %1432 = vmatpush2.bf16.msra.mxu0 0
        %1433 = vmatprep.subr.bf16.mxu0 0
        %1434 = vmatpush2.bf16.msra.mxu0 0
        %1435 = vmatprep.subr.bf16.mxu0 0
        %1436 = vmatpush2.bf16.msra.mxu0 0
        %1437 = vmatprep.subr.bf16.mxu0 0
        %1438 = vmatpush2.bf16.msra.mxu0 0
        %1439 = vmatprep.subr.bf16.mxu0 0
        %1440 = vmatpush2.bf16.msra.mxu0 0
        %1441 = vmatprep.subr.bf16.mxu0 0
        %1442 = vmatpush2.bf16.msra.mxu0 0
        %1443 = vmatprep.mubr.bf16.mxu0 0
        %1444 = vmatmul.mubr.bf16.gmra.mxu0 %v1225
        %v1445 = vpop.f32.mrf.mxu0
        %v1446 = vadd.f32 %v1361, %v1445
        %v1447 = vpop.f32.mrf.mxu0
        %v1448 = vpop.f32.mrf.mxu0
        %v1449 = vadd.f32 %v1361, %v1448
        %v1450 = vpop.f32.mrf.mxu0
        %1451 = vdwg.mxu0
        %v1452 = vld [vmem:[%s956] sm:$0xf]
        %v1453 = vld [vmem:[%s956 + $0x4] sm:$0xf]
        %v1454 = vld [vmem:[%s956 + $0x8] sm:$0xf]
        %v1455 = vld [vmem:[%s956 + $0xc] sm:$0xf]
        %v1456 = vld [vmem:[%s956 + $0x10] sm:$0xf]
        %v1457 = vld [vmem:[%s956 + $0x14] sm:$0xf]
        %v1458 = vld [vmem:[%s956 + $0x18] sm:$0xf]
        %v1459 = vld [vmem:[%s956 + $0x1c] sm:$0xf]
        %v1460 = vld [vmem:[%s956 + $0x20] sm:$0xf]
        %v1461 = vld [vmem:[%s956 + $0x24] sm:$0xf]
        %v1462 = vld [vmem:[%s956 + $0x28] sm:$0xf]
        %v1463 = vld [vmem:[%s956 + $0x2c] sm:$0xf]
        %v1464 = vld [vmem:[%s956 + $0x30] sm:$0xf]
        %v1465 = vld [vmem:[%s956 + $0x34] sm:$0xf]
        %v1466 = vld [vmem:[%s956 + $0x38] sm:$0xf]
        %v1467 = vld [vmem:[%s956 + $0x3c] sm:$0xf]
        %v1468 = vld [vmem:[%s1138] sm:$0x1]
        %v1470 = vlaneseq
        %v1471 = vshrl.u32 %v1470, 7
        %v1472 = vsub.s32 0, %v1471
        %v1473 = vrot.slane %v1468, %v1472
        %v1491 = vunpack.c.l.b16 %v1452
        %v1492 = vunpack.c.l.b16 %v1453
        %v1493 = vunpack.c.l.b16 %v1454
        %v1494 = vunpack.c.l.b16 %v1455
        %v1495 = vunpack.c.l.b16 %v1456
        %v1496 = vunpack.c.l.b16 %v1457
        %v1497 = vunpack.c.l.b16 %v1458
        %v1498 = vunpack.c.l.b16 %v1459
        %v1499 = vunpack.c.l.b16 %v1460
        %v1500 = vunpack.c.l.b16 %v1461
        %v1501 = vunpack.c.l.b16 %v1462
        %v1502 = vunpack.c.l.b16 %v1463
        %v1503 = vunpack.c.l.b16 %v1464
        %v1504 = vunpack.c.l.b16 %v1465
        %v1505 = vunpack.c.l.b16 %v1466
        %v1506 = vunpack.c.l.b16 %v1467
        %v1507 = vpack.c.b16 %v1492, %v1491
        %v1508 = vpack.c.b16 %v1494, %v1493
        %v1509 = vpack.c.b16 %v1496, %v1495
        %v1510 = vpack.c.b16 %v1498, %v1497
        %v1511 = vpack.c.b16 %v1500, %v1499
        %v1512 = vpack.c.b16 %v1502, %v1501
        %v1513 = vpack.c.b16 %v1504, %v1503
        %v1514 = vpack.c.b16 %v1506, %v1505
        %1523 = vmatprep.subr.bf16.mxu0 0
        %1524 = vmatpush1.bf16.msra.mxu0 %v1514
        %1525 = vmatprep.subr.bf16.mxu0 0
        %1526 = vmatpush1.bf16.msra.mxu0 %v1513
        %1527 = vmatprep.subr.bf16.mxu0 0
        %1528 = vmatpush1.bf16.msra.mxu0 %v1512
        %1529 = vmatprep.subr.bf16.mxu0 0
        %1530 = vmatpush1.bf16.msra.mxu0 %v1511
        %1531 = vmatprep.subr.bf16.mxu0 0
        %1532 = vmatpush1.bf16.msra.mxu0 %v1510
        %1533 = vmatprep.subr.bf16.mxu0 0
        %1534 = vmatpush1.bf16.msra.mxu0 %v1509
        %1535 = vmatprep.subr.bf16.mxu0 0
        %1536 = vmatpush1.bf16.msra.mxu0 %v1508
        %1537 = vmatprep.subr.bf16.mxu0 0
        %1538 = vmatpush1.bf16.msra.mxu0 %v1507
        %1539 = vmatprep.subr.bf16.mxu0 0
        %1540 = vmatpush2.bf16.msra.mxu0 0
        %1541 = vmatprep.subr.bf16.mxu0 0
        %1542 = vmatpush2.bf16.msra.mxu0 0
        %1543 = vmatprep.subr.bf16.mxu0 0
        %1544 = vmatpush2.bf16.msra.mxu0 0
        %1545 = vmatprep.subr.bf16.mxu0 0
        %1546 = vmatpush2.bf16.msra.mxu0 0
        %1547 = vmatprep.subr.bf16.mxu0 0
        %1548 = vmatpush2.bf16.msra.mxu0 0
        %1549 = vmatprep.subr.bf16.mxu0 0
        %1550 = vmatpush2.bf16.msra.mxu0 0
        %1551 = vmatprep.subr.bf16.mxu0 0
        %1552 = vmatpush2.bf16.msra.mxu0 0
        %1553 = vmatprep.subr.bf16.mxu0 0
        %1554 = vmatpush2.bf16.msra.mxu0 0
        %1555 = vmatprep.mubr.bf16.mxu0 0
        %1556 = vmatmul.mubr.bf16.gmra.mxu0 %v1225
        %v1557 = vpop.f32.mrf.mxu0
        %v1558 = vadd.f32 %v1473, %v1557
        %v1559 = vpop.f32.mrf.mxu0
        %v1560 = vpop.f32.mrf.mxu0
        %v1561 = vadd.f32 %v1473, %v1560
        %v1562 = vpop.f32.mrf.mxu0
        %1563 = vdwg.mxu0
        %v1564 = vmul.f32 %v1334, 0.125
        %v1565 = vmul.f32 %v1337, 0.125
        %v1566 = vpack.c.bf16 %v1565, %v1564
        %v1567 = vpack.c.bf16 %v1449, %v1446
        %v1568 = vpack.c.bf16 %v1561, %v1558
        %v1570 = vunpack.c.l.b16 %v1566
        %v1571 = vunpack.c.h.b16 %v1566
        %v1572 = vpack.c.b16 %v1570, %v1570
        %v1573 = vpack.c.b16 %v1571, %v1571
        %v1575 = vunpack.c.l.b16 %v1567
        %v1576 = vunpack.c.h.b16 %v1567
        %v1577 = vpack.c.b16 %v1575, %v1575
        %v1578 = vpack.c.b16 %v1576, %v1576
        %v1580 = vunpack.c.l.b16 %v1568
        %v1581 = vunpack.c.h.b16 %v1568
        %v1582 = vpack.c.b16 %v1580, %v1580
        %v1583 = vpack.c.b16 %v1581, %v1581
        %v1586 = vlaneseq
        %v1587 = vshrl.u32 %v1586, 7
        %v1588 = vsub.s32 0, %v1587
        %v1589 = vrot.slane %v1226, %v1588
        %v1590 = vlaneseq
        %v1591 = vshrl.u32 %v1590, 7
        %v1592 = vsub.s32 0, %v1591
        %v1593 = vrot.slane %v1227, %v1592
        %vm1596 = vcmask 523264
        %v1598 = vsel %vm1596, %v1572, 0
        %v1601 = vsel %vm1596, %v1577, 0
        %1603 = vmatprep.subr.bf16.mxu0 0
        %1604 = vmatpush1.bf16.xpose.msra.mxu0 0
        %1605 = vmatprep.subr.bf16.mxu0 0
        %1606 = vmatpush1.bf16.xpose.msra.mxu0 0
        %1607 = vmatprep.subr.bf16.mxu0 0
        %1608 = vmatpush1.bf16.xpose.msra.mxu0 0
        %1609 = vmatprep.subr.bf16.mxu0 0
        %1610 = vmatpush1.bf16.xpose.msra.mxu0 0
        %1611 = vmatprep.subr.bf16.mxu0 0
        %1612 = vmatpush1.bf16.xpose.msra.mxu0 0
        %1613 = vmatprep.subr.bf16.mxu0 0
        %1614 = vmatpush1.bf16.xpose.msra.mxu0 0
        %1615 = vmatprep.subr.bf16.mxu0 0
        %1616 = vmatpush1.bf16.xpose.msra.mxu0 0
        %1617 = vmatprep.subr.bf16.mxu0 0
        %1618 = vmatpush1.bf16.xpose.msra.mxu0 %v1601
        %1619 = vmatprep.subr.bf16.mxu0 0
        %1620 = vmatpush2.bf16.xpose.msra.mxu0 0
        %1621 = vmatprep.subr.bf16.mxu0 0
        %1622 = vmatpush2.bf16.xpose.msra.mxu0 0
        %1623 = vmatprep.subr.bf16.mxu0 0
        %1624 = vmatpush2.bf16.xpose.msra.mxu0 0
        %1625 = vmatprep.subr.bf16.mxu0 0
        %1626 = vmatpush2.bf16.xpose.msra.mxu0 0
        %1627 = vmatprep.subr.bf16.mxu0 0
        %1628 = vmatpush2.bf16.xpose.msra.mxu0 0
        %1629 = vmatprep.subr.bf16.mxu0 0
        %1630 = vmatpush2.bf16.xpose.msra.mxu0 0
        %1631 = vmatprep.subr.bf16.mxu0 0
        %1632 = vmatpush2.bf16.xpose.msra.mxu0 0
        %1633 = vmatprep.subr.bf16.mxu0 0
        %1634 = vmatpush2.bf16.xpose.msra.mxu0 0
        %1635 = vmatprep.mubr.bf16.mxu0 0
        %1636 = vmatmul.mubr.bf16.gmra.mxu0 %v1598
        %v1637 = vpop.f32.mrf.mxu0
        %v1638 = vadd.f32 %v1589, %v1637
        %v1639 = vpop.f32.mrf.mxu0
        %v1640 = vpop.f32.mrf.mxu0
        %v1641 = vpop.f32.mrf.mxu0
        %1642 = vdwg.mxu0
        %v1644 = vsel %vm1596, %v1573, 0
        %v1647 = vsel %vm1596, %v1578, 0
        %1649 = vmatprep.subr.bf16.mxu0 0
        %1650 = vmatpush1.bf16.xpose.msra.mxu0 0
        %1651 = vmatprep.subr.bf16.mxu0 0
        %1652 = vmatpush1.bf16.xpose.msra.mxu0 0
        %1653 = vmatprep.subr.bf16.mxu0 0
        %1654 = vmatpush1.bf16.xpose.msra.mxu0 0
        %1655 = vmatprep.subr.bf16.mxu0 0
        %1656 = vmatpush1.bf16.xpose.msra.mxu0 0
        %1657 = vmatprep.subr.bf16.mxu0 0
        %1658 = vmatpush1.bf16.xpose.msra.mxu0 0
        %1659 = vmatprep.subr.bf16.mxu0 0
        %1660 = vmatpush1.bf16.xpose.msra.mxu0 0
        %1661 = vmatprep.subr.bf16.mxu0 0
        %1662 = vmatpush1.bf16.xpose.msra.mxu0 0
        %1663 = vmatprep.subr.bf16.mxu0 0
        %1664 = vmatpush1.bf16.xpose.msra.mxu0 %v1647
        %1665 = vmatprep.subr.bf16.mxu0 0
        %1666 = vmatpush2.bf16.xpose.msra.mxu0 0
        %1667 = vmatprep.subr.bf16.mxu0 0
        %1668 = vmatpush2.bf16.xpose.msra.mxu0 0
        %1669 = vmatprep.subr.bf16.mxu0 0
        %1670 = vmatpush2.bf16.xpose.msra.mxu0 0
        %1671 = vmatprep.subr.bf16.mxu0 0
        %1672 = vmatpush2.bf16.xpose.msra.mxu0 0
        %1673 = vmatprep.subr.bf16.mxu0 0
        %1674 = vmatpush2.bf16.xpose.msra.mxu0 0
        %1675 = vmatprep.subr.bf16.mxu0 0
        %1676 = vmatpush2.bf16.xpose.msra.mxu0 0
        %1677 = vmatprep.subr.bf16.mxu0 0
        %1678 = vmatpush2.bf16.xpose.msra.mxu0 0
        %1679 = vmatprep.subr.bf16.mxu0 0
        %1680 = vmatpush2.bf16.xpose.msra.mxu0 0
        %1681 = vmatprep.mubr.bf16.mxu0 0
        %1682 = vmatmul.mubr.bf16.gmra.mxu0 %v1644
        %v1683 = vpop.f32.mrf.mxu0
        %v1684 = vadd.f32 %v1593, %v1683
        %v1685 = vpop.f32.mrf.mxu0
        %v1686 = vpop.f32.mrf.mxu0
        %v1687 = vpop.f32.mrf.mxu0
        %1688 = vdwg.mxu0
        %vm1689 = vcmask 64512
        %v1690 = vsel %vm1689, %v1638, -inf
        %1691 = vmax.xlane.f32.xlu0 %v1690
        %v1692 = vpop.xlane.xlu0 %1691
        %v1693 = vsel %vm1689, %v1684, -inf
        %1694 = vmax.xlane.f32.xlu0 %v1693
        %v1695 = vpop.xlane.xlu0 %1694
        %v1696 = vsub.f32 %v1638, %v1692
        %v1697 = vsub.f32 %v1684, %v1695
        %v1698 = vmul.f32 %v1696, 1.442695
        %v1699 = vpow.pop %v1698
        %v1700 = vmul.f32 %v1697, 1.442695
        %v1701 = vpow.pop %v1700
        %v1702 = vsel %vm1689, %v1699, 0.0
        %1703 = vadd.xlane.f32.xlu0 %v1702
        %v1704 = vpop.xlane.xlu0 %1703
        %v1705 = vsel %vm1689, %v1701, 0.0
        %1706 = vadd.xlane.f32.xlu0 %v1705
        %v1707 = vpop.xlane.xlu0 %1706
        %v1708 = vrcp.pop %v1704
        %v1709 = vrcp.pop %v1707
        %v1710 = vmul.f32 %v1699, %v1708
        %v1711 = vmul.f32 %v1701, %v1709
        %v1712 = vpack.c.bf16 %v1710, %v1710
        %v1713 = vpack.c.bf16 %v1711, %v1711
        %v1715 = vsel %vm1689, %v1712, 0
        %vm1717 = vcmask 1043456
        %v1719 = vsel %vm1717, %v1582, 0
        %1721 = vmatprep.subr.bf16.mxu0 0
        %1722 = vmatpush1.bf16.msra.mxu0 0
        %1723 = vmatprep.subr.bf16.mxu0 0
        %1724 = vmatpush1.bf16.msra.mxu0 0
        %1725 = vmatprep.subr.bf16.mxu0 0
        %1726 = vmatpush1.bf16.msra.mxu0 0
        %1727 = vmatprep.subr.bf16.mxu0 0
        %1728 = vmatpush1.bf16.msra.mxu0 0
        %1729 = vmatprep.subr.bf16.mxu0 0
        %1730 = vmatpush1.bf16.msra.mxu0 0
        %1731 = vmatprep.subr.bf16.mxu0 0
        %1732 = vmatpush1.bf16.msra.mxu0 0
        %1733 = vmatprep.subr.bf16.mxu0 0
        %1734 = vmatpush1.bf16.msra.mxu0 0
        %1735 = vmatprep.subr.bf16.mxu0 0
        %1736 = vmatpush1.bf16.msra.mxu0 %v1719
        %1737 = vmatprep.subr.bf16.mxu0 0
        %1738 = vmatpush2.bf16.msra.mxu0 0
        %1739 = vmatprep.subr.bf16.mxu0 0
        %1740 = vmatpush2.bf16.msra.mxu0 0
        %1741 = vmatprep.subr.bf16.mxu0 0
        %1742 = vmatpush2.bf16.msra.mxu0 0
        %1743 = vmatprep.subr.bf16.mxu0 0
        %1744 = vmatpush2.bf16.msra.mxu0 0
        %1745 = vmatprep.subr.bf16.mxu0 0
        %1746 = vmatpush2.bf16.msra.mxu0 0
        %1747 = vmatprep.subr.bf16.mxu0 0
        %1748 = vmatpush2.bf16.msra.mxu0 0
        %1749 = vmatprep.subr.bf16.mxu0 0
        %1750 = vmatpush2.bf16.msra.mxu0 0
        %1751 = vmatprep.subr.bf16.mxu0 0
        %1752 = vmatpush2.bf16.msra.mxu0 0
        %1753 = vmatprep.mubr.bf16.mxu0 0
        %1754 = vmatmul.mubr.bf16.gmra.mxu0 %v1715
        %v1755 = vpop.f32.mrf.mxu0
        %v1756 = vadd.f32 0.0, %v1755
        %v1757 = vpop.f32.mrf.mxu0
        %v1758 = vpop.f32.mrf.mxu0
        %v1759 = vpop.f32.mrf.mxu0
        %1760 = vdwg.mxu0
        %v1762 = vsel %vm1689, %v1713, 0
        %v1765 = vsel %vm1717, %v1583, 0
        %1767 = vmatprep.subr.bf16.mxu0 0
        %1768 = vmatpush1.bf16.msra.mxu0 0
        %1769 = vmatprep.subr.bf16.mxu0 0
        %1770 = vmatpush1.bf16.msra.mxu0 0
        %1771 = vmatprep.subr.bf16.mxu0 0
        %1772 = vmatpush1.bf16.msra.mxu0 0
        %1773 = vmatprep.subr.bf16.mxu0 0
        %1774 = vmatpush1.bf16.msra.mxu0 0
        %1775 = vmatprep.subr.bf16.mxu0 0
        %1776 = vmatpush1.bf16.msra.mxu0 0
        %1777 = vmatprep.subr.bf16.mxu0 0
        %1778 = vmatpush1.bf16.msra.mxu0 0
        %1779 = vmatprep.subr.bf16.mxu0 0
        %1780 = vmatpush1.bf16.msra.mxu0 0
        %1781 = vmatprep.subr.bf16.mxu0 0
        %1782 = vmatpush1.bf16.msra.mxu0 %v1765
        %1783 = vmatprep.subr.bf16.mxu0 0
        %1784 = vmatpush2.bf16.msra.mxu0 0
        %1785 = vmatprep.subr.bf16.mxu0 0
        %1786 = vmatpush2.bf16.msra.mxu0 0
        %1787 = vmatprep.subr.bf16.mxu0 0
        %1788 = vmatpush2.bf16.msra.mxu0 0
        %1789 = vmatprep.subr.bf16.mxu0 0
        %1790 = vmatpush2.bf16.msra.mxu0 0
        %1791 = vmatprep.subr.bf16.mxu0 0
        %1792 = vmatpush2.bf16.msra.mxu0 0
        %1793 = vmatprep.subr.bf16.mxu0 0
        %1794 = vmatpush2.bf16.msra.mxu0 0
        %1795 = vmatprep.subr.bf16.mxu0 0
        %1796 = vmatpush2.bf16.msra.mxu0 0
        %1797 = vmatprep.subr.bf16.mxu0 0
        %1798 = vmatpush2.bf16.msra.mxu0 0
        %1799 = vmatprep.mubr.bf16.mxu0 0
        %1800 = vmatmul.mubr.bf16.gmra.mxu0 %v1762
        %v1801 = vpop.f32.mrf.mxu0
        %v1802 = vadd.f32 0.0, %v1801
        %v1803 = vpop.f32.mrf.mxu0
        %v1804 = vpop.f32.mrf.mxu0
        %v1805 = vpop.f32.mrf.mxu0
        %1806 = vdwg.mxu0
        %1807 = vst.msk [vmem:[#allocation3] sm:$0xff] %vm1596, %v1756
        %1808 = vst.msk [vmem:[#allocation3 + $0x8] sm:$0xff] %vm1596, %v1802
        %1809 = vrot.lane.b32.xlu0 %v1572, 64
        %v1810 = vpop.permute.xlu0 %1809
        %1811 = vrot.lane.b32.xlu0 %v1577, 64
        %v1812 = vpop.permute.xlu0 %1811
        %v1814 = vsel %vm1596, %v1810, 0
        %v1817 = vsel %vm1596, %v1812, 0
        %1819 = vmatprep.subr.bf16.mxu0 0
        %1820 = vmatpush1.bf16.xpose.msra.mxu0 0
        %1821 = vmatprep.subr.bf16.mxu0 0
        %1822 = vmatpush1.bf16.xpose.msra.mxu0 0
        %1823 = vmatprep.subr.bf16.mxu0 0
        %1824 = vmatpush1.bf16.xpose.msra.mxu0 0
        %1825 = vmatprep.subr.bf16.mxu0 0
        %1826 = vmatpush1.bf16.xpose.msra.mxu0 0
        %1827 = vmatprep.subr.bf16.mxu0 0
        %1828 = vmatpush1.bf16.xpose.msra.mxu0 0
        %1829 = vmatprep.subr.bf16.mxu0 0
        %1830 = vmatpush1.bf16.xpose.msra.mxu0 0
        %1831 = vmatprep.subr.bf16.mxu0 0
        %1832 = vmatpush1.bf16.xpose.msra.mxu0 0
        %1833 = vmatprep.subr.bf16.mxu0 0
        %1834 = vmatpush1.bf16.xpose.msra.mxu0 %v1817
        %1835 = vmatprep.subr.bf16.mxu0 0
        %1836 = vmatpush2.bf16.xpose.msra.mxu0 0
        %1837 = vmatprep.subr.bf16.mxu0 0
        %1838 = vmatpush2.bf16.xpose.msra.mxu0 0
        %1839 = vmatprep.subr.bf16.mxu0 0
        %1840 = vmatpush2.bf16.xpose.msra.mxu0 0
        %1841 = vmatprep.subr.bf16.mxu0 0
        %1842 = vmatpush2.bf16.xpose.msra.mxu0 0
        %1843 = vmatprep.subr.bf16.mxu0 0
        %1844 = vmatpush2.bf16.xpose.msra.mxu0 0
        %1845 = vmatprep.subr.bf16.mxu0 0
        %1846 = vmatpush2.bf16.xpose.msra.mxu0 0
        %1847 = vmatprep.subr.bf16.mxu0 0
        %1848 = vmatpush2.bf16.xpose.msra.mxu0 0
        %1849 = vmatprep.subr.bf16.mxu0 0
        %1850 = vmatpush2.bf16.xpose.msra.mxu0 0
        %1851 = vmatprep.mubr.bf16.mxu0 0
        %1852 = vmatmul.mubr.bf16.gmra.mxu0 %v1814
        %v1853 = vpop.f32.mrf.mxu0
        %v1854 = vadd.f32 %v1589, %v1853
        %v1855 = vpop.f32.mrf.mxu0
        %v1856 = vpop.f32.mrf.mxu0
        %v1857 = vpop.f32.mrf.mxu0
        %1858 = vdwg.mxu0
        %1859 = vrot.lane.b32.xlu0 %v1573, 64
        %v1860 = vpop.permute.xlu0 %1859
        %1861 = vrot.lane.b32.xlu0 %v1578, 64
        %v1862 = vpop.permute.xlu0 %1861
        %v1864 = vsel %vm1596, %v1860, 0
        %v1867 = vsel %vm1596, %v1862, 0
        %1869 = vmatprep.subr.bf16.mxu0 0
        %1870 = vmatpush1.bf16.xpose.msra.mxu0 0
        %1871 = vmatprep.subr.bf16.mxu0 0
        %1872 = vmatpush1.bf16.xpose.msra.mxu0 0
        %1873 = vmatprep.subr.bf16.mxu0 0
        %1874 = vmatpush1.bf16.xpose.msra.mxu0 0
        %1875 = vmatprep.subr.bf16.mxu0 0
        %1876 = vmatpush1.bf16.xpose.msra.mxu0 0
        %1877 = vmatprep.subr.bf16.mxu0 0
        %1878 = vmatpush1.bf16.xpose.msra.mxu0 0
        %1879 = vmatprep.subr.bf16.mxu0 0
        %1880 = vmatpush1.bf16.xpose.msra.mxu0 0
        %1881 = vmatprep.subr.bf16.mxu0 0
        %1882 = vmatpush1.bf16.xpose.msra.mxu0 0
        %1883 = vmatprep.subr.bf16.mxu0 0
        %1884 = vmatpush1.bf16.xpose.msra.mxu0 %v1867
        %1885 = vmatprep.subr.bf16.mxu0 0
        %1886 = vmatpush2.bf16.xpose.msra.mxu0 0
        %1887 = vmatprep.subr.bf16.mxu0 0
        %1888 = vmatpush2.bf16.xpose.msra.mxu0 0
        %1889 = vmatprep.subr.bf16.mxu0 0
        %1890 = vmatpush2.bf16.xpose.msra.mxu0 0
        %1891 = vmatprep.subr.bf16.mxu0 0
        %1892 = vmatpush2.bf16.xpose.msra.mxu0 0
        %1893 = vmatprep.subr.bf16.mxu0 0
        %1894 = vmatpush2.bf16.xpose.msra.mxu0 0
        %1895 = vmatprep.subr.bf16.mxu0 0
        %1896 = vmatpush2.bf16.xpose.msra.mxu0 0
        %1897 = vmatprep.subr.bf16.mxu0 0
        %1898 = vmatpush2.bf16.xpose.msra.mxu0 0
        %1899 = vmatprep.subr.bf16.mxu0 0
        %1900 = vmatpush2.bf16.xpose.msra.mxu0 0
        %1901 = vmatprep.mubr.bf16.mxu0 0
        %1902 = vmatmul.mubr.bf16.gmra.mxu0 %v1864
        %v1903 = vpop.f32.mrf.mxu0
        %v1904 = vadd.f32 %v1593, %v1903
        %v1905 = vpop.f32.mrf.mxu0
        %v1906 = vpop.f32.mrf.mxu0
        %v1907 = vpop.f32.mrf.mxu0
        %1908 = vdwg.mxu0
        %v1909 = vsel %vm1689, %v1854, -inf
        %1910 = vmax.xlane.f32.xlu0 %v1909
        %v1911 = vpop.xlane.xlu0 %1910
        %v1912 = vsel %vm1689, %v1904, -inf
        %1913 = vmax.xlane.f32.xlu0 %v1912
        %v1914 = vpop.xlane.xlu0 %1913
        %v1915 = vsub.f32 %v1854, %v1911
        %v1916 = vsub.f32 %v1904, %v1914
        %v1917 = vmul.f32 %v1915, 1.442695
        %v1918 = vpow.pop %v1917
        %v1919 = vmul.f32 %v1916, 1.442695
        %v1920 = vpow.pop %v1919
        %v1921 = vsel %vm1689, %v1918, 0.0
        %1922 = vadd.xlane.f32.xlu0 %v1921
        %v1923 = vpop.xlane.xlu0 %1922
        %v1924 = vsel %vm1689, %v1920, 0.0
        %1925 = vadd.xlane.f32.xlu0 %v1924
        %v1926 = vpop.xlane.xlu0 %1925
        %v1927 = vrcp.pop %v1923
        %v1928 = vrcp.pop %v1926
        %v1929 = vmul.f32 %v1918, %v1927
        %v1930 = vmul.f32 %v1920, %v1928
        %v1931 = vpack.c.bf16 %v1929, %v1929
        %v1932 = vpack.c.bf16 %v1930, %v1930
        %1933 = vrot.lane.b32.xlu0 %v1582, 64
        %v1934 = vpop.permute.xlu0 %1933
        %v1936 = vsel %vm1689, %v1931, 0
        %v1939 = vsel %vm1717, %v1934, 0
        %1941 = vmatprep.subr.bf16.mxu0 0
        %1942 = vmatpush1.bf16.msra.mxu0 0
        %1943 = vmatprep.subr.bf16.mxu0 0
        %1944 = vmatpush1.bf16.msra.mxu0 0
        %1945 = vmatprep.subr.bf16.mxu0 0
        %1946 = vmatpush1.bf16.msra.mxu0 0
        %1947 = vmatprep.subr.bf16.mxu0 0
        %1948 = vmatpush1.bf16.msra.mxu0 0
        %1949 = vmatprep.subr.bf16.mxu0 0
        %1950 = vmatpush1.bf16.msra.mxu0 0
        %1951 = vmatprep.subr.bf16.mxu0 0
        %1952 = vmatpush1.bf16.msra.mxu0 0
        %1953 = vmatprep.subr.bf16.mxu0 0
        %1954 = vmatpush1.bf16.msra.mxu0 0
        %1955 = vmatprep.subr.bf16.mxu0 0
        %1956 = vmatpush1.bf16.msra.mxu0 %v1939
        %1957 = vmatprep.subr.bf16.mxu0 0
        %1958 = vmatpush2.bf16.msra.mxu0 0
        %1959 = vmatprep.subr.bf16.mxu0 0
        %1960 = vmatpush2.bf16.msra.mxu0 0
        %1961 = vmatprep.subr.bf16.mxu0 0
        %1962 = vmatpush2.bf16.msra.mxu0 0
        %1963 = vmatprep.subr.bf16.mxu0 0
        %1964 = vmatpush2.bf16.msra.mxu0 0
        %1965 = vmatprep.subr.bf16.mxu0 0
        %1966 = vmatpush2.bf16.msra.mxu0 0
        %1967 = vmatprep.subr.bf16.mxu0 0
        %1968 = vmatpush2.bf16.msra.mxu0 0
        %1969 = vmatprep.subr.bf16.mxu0 0
        %1970 = vmatpush2.bf16.msra.mxu0 0
        %1971 = vmatprep.subr.bf16.mxu0 0
        %1972 = vmatpush2.bf16.msra.mxu0 0
        %1973 = vmatprep.mubr.bf16.mxu0 0
        %1974 = vmatmul.mubr.bf16.gmra.mxu0 %v1936
        %v1975 = vpop.f32.mrf.mxu0
        %v1976 = vadd.f32 0.0, %v1975
        %v1977 = vpop.f32.mrf.mxu0
        %v1978 = vpop.f32.mrf.mxu0
        %v1979 = vpop.f32.mrf.mxu0
        %1980 = vdwg.mxu0
        %1981 = vrot.lane.b32.xlu0 %v1583, 64
        %v1982 = vpop.permute.xlu0 %1981
        %v1984 = vsel %vm1689, %v1932, 0
        %v1987 = vsel %vm1717, %v1982, 0
        %1989 = vmatprep.subr.bf16.mxu0 0
        %1990 = vmatpush1.bf16.msra.mxu0 0
        %1991 = vmatprep.subr.bf16.mxu0 0
        %1992 = vmatpush1.bf16.msra.mxu0 0
        %1993 = vmatprep.subr.bf16.mxu0 0
        %1994 = vmatpush1.bf16.msra.mxu0 0
        %1995 = vmatprep.subr.bf16.mxu0 0
        %1996 = vmatpush1.bf16.msra.mxu0 0
        %1997 = vmatprep.subr.bf16.mxu0 0
        %1998 = vmatpush1.bf16.msra.mxu0 0
        %1999 = vmatprep.subr.bf16.mxu0 0
        %2000 = vmatpush1.bf16.msra.mxu0 0
        %2001 = vmatprep.subr.bf16.mxu0 0
        %2002 = vmatpush1.bf16.msra.mxu0 0
        %2003 = vmatprep.subr.bf16.mxu0 0
        %2004 = vmatpush1.bf16.msra.mxu0 %v1987
        %2005 = vmatprep.subr.bf16.mxu0 0
        %2006 = vmatpush2.bf16.msra.mxu0 0
        %2007 = vmatprep.subr.bf16.mxu0 0
        %2008 = vmatpush2.bf16.msra.mxu0 0
        %2009 = vmatprep.subr.bf16.mxu0 0
        %2010 = vmatpush2.bf16.msra.mxu0 0
        %2011 = vmatprep.subr.bf16.mxu0 0
        %2012 = vmatpush2.bf16.msra.mxu0 0
        %2013 = vmatprep.subr.bf16.mxu0 0
        %2014 = vmatpush2.bf16.msra.mxu0 0
        %2015 = vmatprep.subr.bf16.mxu0 0
        %2016 = vmatpush2.bf16.msra.mxu0 0
        %2017 = vmatprep.subr.bf16.mxu0 0
        %2018 = vmatpush2.bf16.msra.mxu0 0
        %2019 = vmatprep.subr.bf16.mxu0 0
        %2020 = vmatpush2.bf16.msra.mxu0 0
        %2021 = vmatprep.mubr.bf16.mxu0 0
        %2022 = vmatmul.mubr.bf16.gmra.mxu0 %v1984
        %v2023 = vpop.f32.mrf.mxu0
        %v2024 = vadd.f32 0.0, %v2023
        %v2025 = vpop.f32.mrf.mxu0
        %v2026 = vpop.f32.mrf.mxu0
        %v2027 = vpop.f32.mrf.mxu0
        %2028 = vdwg.mxu0
        %2031 = vrot.lane.b32.xlu0 %v1976, 64
        %v2032 = vpop.permute.xlu0 %2031
        %2033 = vrot.lane.b32.xlu0 %v2024, 64
        %v2034 = vpop.permute.xlu0 %2033
        %vm2037 = vcmask 1048064
        %2038 = vst.msk [vmem:[#allocation3] sm:$0xff] %vm2037, %v2032
        %2039 = vst.msk [vmem:[#allocation3 + $0x8] sm:$0xff] %vm2037, %v2034
        %v2040 = vld [vmem:[#allocation3] sm:$0xff]
        %v2041 = vld [vmem:[#allocation3 + $0x8] sm:$0xff]
        %v2042 = vpack.c.bf16 %v2041, %v2040
        %v2043 = vld [vmem:[%s965] sm:$0xf]
        %v2044 = vld [vmem:[%s965 + $0x4] sm:$0xf]
        %v2045 = vld [vmem:[%s965 + $0x8] sm:$0xf]
        %v2046 = vld [vmem:[%s965 + $0xc] sm:$0xf]
        %v2047 = vld [vmem:[%s965 + $0x10] sm:$0xf]
        %v2048 = vld [vmem:[%s965 + $0x14] sm:$0xf]
        %v2049 = vld [vmem:[%s965 + $0x18] sm:$0xf]
        %v2050 = vld [vmem:[%s965 + $0x1c] sm:$0xf]
        %v2051 = vld [vmem:[%s965 + $0x20] sm:$0xf]
        %v2052 = vld [vmem:[%s965 + $0x24] sm:$0xf]
        %v2053 = vld [vmem:[%s965 + $0x28] sm:$0xf]
        %v2054 = vld [vmem:[%s965 + $0x2c] sm:$0xf]
        %v2055 = vld [vmem:[%s965 + $0x30] sm:$0xf]
        %v2056 = vld [vmem:[%s965 + $0x34] sm:$0xf]
        %v2057 = vld [vmem:[%s965 + $0x38] sm:$0xf]
        %v2058 = vld [vmem:[%s965 + $0x3c] sm:$0xf]
        %v2059 = vld [vmem:[%s1141] sm:$0x1]
        %v2061 = vlaneseq
        %v2062 = vshrl.u32 %v2061, 7
        %v2063 = vsub.s32 0, %v2062
        %v2064 = vrot.slane %v2059, %v2063
        %v2082 = vunpack.c.l.b16 %v2043
        %v2083 = vunpack.c.l.b16 %v2044
        %v2084 = vunpack.c.l.b16 %v2045
        %v2085 = vunpack.c.l.b16 %v2046
        %v2086 = vunpack.c.l.b16 %v2047
        %v2087 = vunpack.c.l.b16 %v2048
        %v2088 = vunpack.c.l.b16 %v2049
        %v2089 = vunpack.c.l.b16 %v2050
        %v2090 = vunpack.c.l.b16 %v2051
        %v2091 = vunpack.c.l.b16 %v2052
        %v2092 = vunpack.c.l.b16 %v2053
        %v2093 = vunpack.c.l.b16 %v2054
        %v2094 = vunpack.c.l.b16 %v2055
        %v2095 = vunpack.c.l.b16 %v2056
        %v2096 = vunpack.c.l.b16 %v2057
        %v2097 = vunpack.c.l.b16 %v2058
        %v2098 = vpack.c.b16 %v2083, %v2082
        %v2099 = vpack.c.b16 %v2085, %v2084
        %v2100 = vpack.c.b16 %v2087, %v2086
        %v2101 = vpack.c.b16 %v2089, %v2088
        %v2102 = vpack.c.b16 %v2091, %v2090
        %v2103 = vpack.c.b16 %v2093, %v2092
        %v2104 = vpack.c.b16 %v2095, %v2094
        %v2105 = vpack.c.b16 %v2097, %v2096
        %2114 = vmatprep.subr.bf16.mxu0 0
        %2115 = vmatpush1.bf16.msra.mxu0 %v2105
        %2116 = vmatprep.subr.bf16.mxu0 0
        %2117 = vmatpush1.bf16.msra.mxu0 %v2104
        %2118 = vmatprep.subr.bf16.mxu0 0
        %2119 = vmatpush1.bf16.msra.mxu0 %v2103
        %2120 = vmatprep.subr.bf16.mxu0 0
        %2121 = vmatpush1.bf16.msra.mxu0 %v2102
        %2122 = vmatprep.subr.bf16.mxu0 0
        %2123 = vmatpush1.bf16.msra.mxu0 %v2101
        %2124 = vmatprep.subr.bf16.mxu0 0
        %2125 = vmatpush1.bf16.msra.mxu0 %v2100
        %2126 = vmatprep.subr.bf16.mxu0 0
        %2127 = vmatpush1.bf16.msra.mxu0 %v2099
        %2128 = vmatprep.subr.bf16.mxu0 0
        %2129 = vmatpush1.bf16.msra.mxu0 %v2098
        %2130 = vmatprep.subr.bf16.mxu0 0
        %2131 = vmatpush2.bf16.msra.mxu0 0
        %2132 = vmatprep.subr.bf16.mxu0 0
        %2133 = vmatpush2.bf16.msra.mxu0 0
        %2134 = vmatprep.subr.bf16.mxu0 0
        %2135 = vmatpush2.bf16.msra.mxu0 0
        %2136 = vmatprep.subr.bf16.mxu0 0
        %2137 = vmatpush2.bf16.msra.mxu0 0
        %2138 = vmatprep.subr.bf16.mxu0 0
        %2139 = vmatpush2.bf16.msra.mxu0 0
        %2140 = vmatprep.subr.bf16.mxu0 0
        %2141 = vmatpush2.bf16.msra.mxu0 0
        %2142 = vmatprep.subr.bf16.mxu0 0
        %2143 = vmatpush2.bf16.msra.mxu0 0
        %2144 = vmatprep.subr.bf16.mxu0 0
        %2145 = vmatpush2.bf16.msra.mxu0 0
        %2146 = vmatprep.mubr.bf16.mxu0 0
        %2147 = vmatmul.mubr.bf16.gmra.mxu0 %v2042
        %v2148 = vpop.f32.mrf.mxu0
        %v2149 = vadd.f32 %v2064, %v2148
        %v2150 = vpop.f32.mrf.mxu0
        %v2151 = vpop.f32.mrf.mxu0
        %v2152 = vadd.f32 %v2064, %v2151
        %v2153 = vpop.f32.mrf.mxu0
        %2154 = vdwg.mxu0
        %v2155 = vadd.f32 %v1223, %v2149
        %v2156 = vadd.f32 %v1224, %v2152
        %v2157 = vld [vmem:[%s1144] sm:$0x1]
        %v2158 = vld [vmem:[%s1147] sm:$0x1]
        %2159 = vadd.xlane.f32.xlu0 %v2155
        %v2160 = vpop.xlane.xlu0 %2159
        %2161 = vadd.xlane.f32.xlu0 %v2156
        %v2162 = vpop.xlane.xlu0 %2161
        %v2163 = vrcp.pop 128.0
        %v2164 = vmul.f32 %v2160, %v2163
        %v2165 = vmul.f32 %v2162, %v2163
        %v2166 = vsub.f32 %v2155, %v2164
        %v2167 = vsub.f32 %v2156, %v2165
        %v2168 = vmul.f32 %v2166, %v2166
        %v2169 = vmul.f32 %v2167, %v2167
        %2170 = vadd.xlane.f32.xlu0 %v2168
        %v2171 = vpop.xlane.xlu0 %2170
        %2172 = vadd.xlane.f32.xlu0 %v2169
        %v2173 = vpop.xlane.xlu0 %2172
        %v2174 = vmul.f32 %v2171, %v2163
        %v2175 = vmul.f32 %v2173, %v2163
        %v2176 = vadd.f32 %v2174, 1e-12
        %v2177 = vadd.f32 %v2175, 1e-12
        %v2178 = vrsqrt.pop %v2176
        %v2179 = vrsqrt.pop %v2177
        %v2180 = vmul.f32 %v2166, %v2178
        %v2181 = vmul.f32 %v2167, %v2179
        %v2183 = vlaneseq
        %v2184 = vshrl.u32 %v2183, 7
        %v2185 = vsub.s32 0, %v2184
        %v2186 = vrot.slane %v2157, %v2185
        %v2188 = vmul.f32 %v2180, %v2186
        %v2189 = vmul.f32 %v2181, %v2186
        %v2191 = vlaneseq
        %v2192 = vshrl.u32 %v2191, 7
        %v2193 = vsub.s32 0, %v2192
        %v2194 = vrot.slane %v2158, %v2193
        %v2196 = vadd.f32 %v2188, %v2194
        %v2197 = vadd.f32 %v2189, %v2194
        %v2198 = vpack.c.bf16 %v2197, %v2196
        %v2199 = vld [vmem:[%s974] sm:$0xff]
        %v2200 = vld [vmem:[%s974 + $0x8] sm:$0xff]
        %v2201 = vld [vmem:[%s974 + $0x10] sm:$0xff]
        %v2202 = vld [vmem:[%s974 + $0x18] sm:$0xff]
        %v2203 = vld [vmem:[%s974 + $0x20] sm:$0xff]
        %v2204 = vld [vmem:[%s974 + $0x28] sm:$0xff]
        %v2205 = vld [vmem:[%s974 + $0x30] sm:$0xff]
        %v2206 = vld [vmem:[%s974 + $0x38] sm:$0xff]
        %v2207 = vld [vmem:[%s974 + $0x40] sm:$0xff]
        %v2208 = vld [vmem:[%s974 + $0x48] sm:$0xff]
        %v2209 = vld [vmem:[%s974 + $0x50] sm:$0xff]
        %v2210 = vld [vmem:[%s974 + $0x58] sm:$0xff]
        %v2211 = vld [vmem:[%s974 + $0x60] sm:$0xff]
        %v2212 = vld [vmem:[%s974 + $0x68] sm:$0xff]
        %v2213 = vld [vmem:[%s974 + $0x70] sm:$0xff]
        %v2214 = vld [vmem:[%s974 + $0x78] sm:$0xff]
        %v2215 = vld [vmem:[%s1151] sm:$0x3]
        %v2217 = vlaneseq
        %v2218 = vshrl.u32 %v2217, 7
        %v2219 = vsub.s32 0, %v2218
        %v2220 = vrot.slane %v2215, %v2219
        %v2221 = vlaneseq
        %v2222 = vshrl.u32 %v2221, 7
        %v2223 = vsub.s32 1, %v2222
        %v2224 = vrot.slane %v2215, %v2223
        %v2243 = vunpack.c.l.b16 %v2199
        %v2244 = vunpack.c.h.b16 %v2199
        %v2245 = vunpack.c.l.b16 %v2200
        %v2246 = vunpack.c.h.b16 %v2200
        %v2247 = vunpack.c.l.b16 %v2201
        %v2248 = vunpack.c.h.b16 %v2201
        %v2249 = vunpack.c.l.b16 %v2202
        %v2250 = vunpack.c.h.b16 %v2202
        %v2251 = vunpack.c.l.b16 %v2203
        %v2252 = vunpack.c.h.b16 %v2203
        %v2253 = vunpack.c.l.b16 %v2204
        %v2254 = vunpack.c.h.b16 %v2204
        %v2255 = vunpack.c.l.b16 %v2205
        %v2256 = vunpack.c.h.b16 %v2205
        %v2257 = vunpack.c.l.b16 %v2206
        %v2258 = vunpack.c.h.b16 %v2206
        %v2259 = vunpack.c.l.b16 %v2207
        %v2260 = vunpack.c.h.b16 %v2207
        %v2261 = vunpack.c.l.b16 %v2208
        %v2262 = vunpack.c.h.b16 %v2208
        %v2263 = vunpack.c.l.b16 %v2209
        %v2264 = vunpack.c.h.b16 %v2209
        %v2265 = vunpack.c.l.b16 %v2210
        %v2266 = vunpack.c.h.b16 %v2210
        %v2267 = vunpack.c.l.b16 %v2211
        %v2268 = vunpack.c.h.b16 %v2211
        %v2269 = vunpack.c.l.b16 %v2212
        %v2270 = vunpack.c.h.b16 %v2212
        %v2271 = vunpack.c.l.b16 %v2213
        %v2272 = vunpack.c.h.b16 %v2213
        %v2273 = vunpack.c.l.b16 %v2214
        %v2274 = vunpack.c.h.b16 %v2214
        %v2275 = vpack.c.b16 %v2245, %v2243
        %v2276 = vpack.c.b16 %v2246, %v2244
        %v2277 = vpack.c.b16 %v2249, %v2247
        %v2278 = vpack.c.b16 %v2250, %v2248
        %v2279 = vpack.c.b16 %v2253, %v2251
        %v2280 = vpack.c.b16 %v2254, %v2252
        %v2281 = vpack.c.b16 %v2257, %v2255
        %v2282 = vpack.c.b16 %v2258, %v2256
        %v2283 = vpack.c.b16 %v2261, %v2259
        %v2284 = vpack.c.b16 %v2262, %v2260
        %v2285 = vpack.c.b16 %v2265, %v2263
        %v2286 = vpack.c.b16 %v2266, %v2264
        %v2287 = vpack.c.b16 %v2269, %v2267
        %v2288 = vpack.c.b16 %v2270, %v2268
        %v2289 = vpack.c.b16 %v2273, %v2271
        %v2290 = vpack.c.b16 %v2274, %v2272
        %2307 = vmatprep.subr.bf16.mxu0 %v2290
        %2308 = vmatpush1.bf16.msra.mxu0 %v2289
        %2309 = vmatprep.subr.bf16.mxu0 %v2288
        %2310 = vmatpush1.bf16.msra.mxu0 %v2287
        %2311 = vmatprep.subr.bf16.mxu0 %v2286
        %2312 = vmatpush1.bf16.msra.mxu0 %v2285
        %2313 = vmatprep.subr.bf16.mxu0 %v2284
        %2314 = vmatpush1.bf16.msra.mxu0 %v2283
        %2315 = vmatprep.subr.bf16.mxu0 %v2282
        %2316 = vmatpush1.bf16.msra.mxu0 %v2281
        %2317 = vmatprep.subr.bf16.mxu0 %v2280
        %2318 = vmatpush1.bf16.msra.mxu0 %v2279
        %2319 = vmatprep.subr.bf16.mxu0 %v2278
        %2320 = vmatpush1.bf16.msra.mxu0 %v2277
        %2321 = vmatprep.subr.bf16.mxu0 %v2276
        %2322 = vmatpush1.bf16.msra.mxu0 %v2275
        %2323 = vmatprep.subr.bf16.mxu0 0
        %2324 = vmatpush2.bf16.msra.mxu0 0
        %2325 = vmatprep.subr.bf16.mxu0 0
        %2326 = vmatpush2.bf16.msra.mxu0 0
        %2327 = vmatprep.subr.bf16.mxu0 0
        %2328 = vmatpush2.bf16.msra.mxu0 0
        %2329 = vmatprep.subr.bf16.mxu0 0
        %2330 = vmatpush2.bf16.msra.mxu0 0
        %2331 = vmatprep.subr.bf16.mxu0 0
        %2332 = vmatpush2.bf16.msra.mxu0 0
        %2333 = vmatprep.subr.bf16.mxu0 0
        %2334 = vmatpush2.bf16.msra.mxu0 0
        %2335 = vmatprep.subr.bf16.mxu0 0
        %2336 = vmatpush2.bf16.msra.mxu0 0
        %2337 = vmatprep.subr.bf16.mxu0 0
        %2338 = vmatpush2.bf16.msra.mxu0 0
        %2339 = vmatprep.mubr.bf16.mxu0 0
        %2340 = vmatmul.mubr.bf16.gmra.mxu0 %v2198
        %v2341 = vpop.f32.mrf.mxu0
        %v2342 = vadd.f32 %v2220, %v2341
        %v2343 = vpop.f32.mrf.mxu0
        %v2344 = vadd.f32 %v2224, %v2343
        %v2345 = vpop.f32.mrf.mxu0
        %v2346 = vadd.f32 %v2220, %v2345
        %v2347 = vpop.f32.mrf.mxu0
        %v2348 = vadd.f32 %v2224, %v2347
        %2349 = vdwg.mxu0
        %v2350 = vmul.f32 %v2342, %v2342
        %v2351 = vmul.f32 %v2344, %v2344
        %v2352 = vmul.f32 %v2346, %v2346
        %v2353 = vmul.f32 %v2348, %v2348
        %v2354 = vmul.f32 %v2342, %v2350
        %v2355 = vmul.f32 %v2344, %v2351
        %v2356 = vmul.f32 %v2346, %v2352
        %v2357 = vmul.f32 %v2348, %v2353
        %v2358 = vmul.f32 %v2354, 0.044715
        %v2359 = vmul.f32 %v2355, 0.044715
        %v2360 = vmul.f32 %v2356, 0.044715
        %v2361 = vmul.f32 %v2357, 0.044715
        %v2362 = vadd.f32 %v2342, %v2358
        %v2363 = vadd.f32 %v2344, %v2359
        %v2364 = vadd.f32 %v2346, %v2360
        %v2365 = vadd.f32 %v2348, %v2361
        %v2366 = vmul.f32 %v2362, 0.7978846
        %v2367 = vmul.f32 %v2363, 0.7978846
        %v2368 = vmul.f32 %v2364, 0.7978846
        %v2369 = vmul.f32 %v2365, 0.7978846
        %v2370 = vtanh.pop %v2366
        %v2371 = vtanh.pop %v2367
        %v2372 = vtanh.pop %v2368
        %v2373 = vtanh.pop %v2369
        %v2374 = vadd.f32 %v2370, 1.0
        %v2375 = vadd.f32 %v2371, 1.0
        %v2376 = vadd.f32 %v2372, 1.0
        %v2377 = vadd.f32 %v2373, 1.0
        %v2378 = vmul.f32 %v2374, 0.5
        %v2379 = vmul.f32 %v2375, 0.5
        %v2380 = vmul.f32 %v2376, 0.5
        %v2381 = vmul.f32 %v2377, 0.5
        %v2382 = vmul.f32 %v2342, %v2378
        %v2383 = vmul.f32 %v2344, %v2379
        %v2384 = vmul.f32 %v2346, %v2380
        %v2385 = vmul.f32 %v2348, %v2381
        %v2386 = vpack.c.bf16 %v2384, %v2382
        %v2387 = vpack.c.bf16 %v2385, %v2383
        %v2388 = vld [vmem:[%s983] sm:$0xf]
        %v2389 = vld [vmem:[%s983 + $0x4] sm:$0xf]
        %v2390 = vld [vmem:[%s983 + $0x8] sm:$0xf]
        %v2391 = vld [vmem:[%s983 + $0xc] sm:$0xf]
        %v2392 = vld [vmem:[%s983 + $0x10] sm:$0xf]
        %v2393 = vld [vmem:[%s983 + $0x14] sm:$0xf]
        %v2394 = vld [vmem:[%s983 + $0x18] sm:$0xf]
        %v2395 = vld [vmem:[%s983 + $0x1c] sm:$0xf]
        %v2396 = vld [vmem:[%s983 + $0x20] sm:$0xf]
        %v2397 = vld [vmem:[%s983 + $0x24] sm:$0xf]
        %v2398 = vld [vmem:[%s983 + $0x28] sm:$0xf]
        %v2399 = vld [vmem:[%s983 + $0x2c] sm:$0xf]
        %v2400 = vld [vmem:[%s983 + $0x30] sm:$0xf]
        %v2401 = vld [vmem:[%s983 + $0x34] sm:$0xf]
        %v2402 = vld [vmem:[%s983 + $0x38] sm:$0xf]
        %v2403 = vld [vmem:[%s983 + $0x3c] sm:$0xf]
        %v2404 = vld [vmem:[%s983 + $0x40] sm:$0xf]
        %v2405 = vld [vmem:[%s983 + $0x44] sm:$0xf]
        %v2406 = vld [vmem:[%s983 + $0x48] sm:$0xf]
        %v2407 = vld [vmem:[%s983 + $0x4c] sm:$0xf]
        %v2408 = vld [vmem:[%s983 + $0x50] sm:$0xf]
        %v2409 = vld [vmem:[%s983 + $0x54] sm:$0xf]
        %v2410 = vld [vmem:[%s983 + $0x58] sm:$0xf]
        %v2411 = vld [vmem:[%s983 + $0x5c] sm:$0xf]
        %v2412 = vld [vmem:[%s983 + $0x60] sm:$0xf]
        %v2413 = vld [vmem:[%s983 + $0x64] sm:$0xf]
        %v2414 = vld [vmem:[%s983 + $0x68] sm:$0xf]
        %v2415 = vld [vmem:[%s983 + $0x6c] sm:$0xf]
        %v2416 = vld [vmem:[%s983 + $0x70] sm:$0xf]
        %v2417 = vld [vmem:[%s983 + $0x74] sm:$0xf]
        %v2418 = vld [vmem:[%s983 + $0x78] sm:$0xf]
        %v2419 = vld [vmem:[%s983 + $0x7c] sm:$0xf]
        %v2420 = vld [vmem:[%s1154] sm:$0x1]
        %v2422 = vlaneseq
        %v2423 = vshrl.u32 %v2422, 7
        %v2424 = vsub.s32 0, %v2423
        %v2425 = vrot.slane %v2420, %v2424
        %v2459 = vunpack.c.l.b16 %v2388
        %v2460 = vunpack.c.l.b16 %v2389
        %v2461 = vunpack.c.l.b16 %v2390
        %v2462 = vunpack.c.l.b16 %v2391
        %v2463 = vunpack.c.l.b16 %v2392
        %v2464 = vunpack.c.l.b16 %v2393
        %v2465 = vunpack.c.l.b16 %v2394
        %v2466 = vunpack.c.l.b16 %v2395
        %v2467 = vunpack.c.l.b16 %v2396
        %v2468 = vunpack.c.l.b16 %v2397
        %v2469 = vunpack.c.l.b16 %v2398
        %v2470 = vunpack.c.l.b16 %v2399
        %v2471 = vunpack.c.l.b16 %v2400
        %v2472 = vunpack.c.l.b16 %v2401
        %v2473 = vunpack.c.l.b16 %v2402
        %v2474 = vunpack.c.l.b16 %v2403
        %v2475 = vunpack.c.l.b16 %v2404
        %v2476 = vunpack.c.l.b16 %v2405
        %v2477 = vunpack.c.l.b16 %v2406
        %v2478 = vunpack.c.l.b16 %v2407
        %v2479 = vunpack.c.l.b16 %v2408
        %v2480 = vunpack.c.l.b16 %v2409
        %v2481 = vunpack.c.l.b16 %v2410
        %v2482 = vunpack.c.l.b16 %v2411
        %v2483 = vunpack.c.l.b16 %v2412
        %v2484 = vunpack.c.l.b16 %v2413
        %v2485 = vunpack.c.l.b16 %v2414
        %v2486 = vunpack.c.l.b16 %v2415
        %v2487 = vunpack.c.l.b16 %v2416
        %v2488 = vunpack.c.l.b16 %v2417
        %v2489 = vunpack.c.l.b16 %v2418
        %v2490 = vunpack.c.l.b16 %v2419
        %v2491 = vpack.c.b16 %v2460, %v2459
        %v2492 = vpack.c.b16 %v2462, %v2461
        %v2493 = vpack.c.b16 %v2464, %v2463
        %v2494 = vpack.c.b16 %v2466, %v2465
        %v2495 = vpack.c.b16 %v2468, %v2467
        %v2496 = vpack.c.b16 %v2470, %v2469
        %v2497 = vpack.c.b16 %v2472, %v2471
        %v2498 = vpack.c.b16 %v2474, %v2473
        %v2499 = vpack.c.b16 %v2476, %v2475
        %v2500 = vpack.c.b16 %v2478, %v2477
        %v2501 = vpack.c.b16 %v2480, %v2479
        %v2502 = vpack.c.b16 %v2482, %v2481
        %v2503 = vpack.c.b16 %v2484, %v2483
        %v2504 = vpack.c.b16 %v2486, %v2485
        %v2505 = vpack.c.b16 %v2488, %v2487
        %v2506 = vpack.c.b16 %v2490, %v2489
        %2523 = vmatprep.subr.bf16.mxu0 0
        %2524 = vmatpush1.bf16.msra.mxu0 %v2498
        %2525 = vmatprep.subr.bf16.mxu0 0
        %2526 = vmatpush1.bf16.msra.mxu0 %v2497
        %2527 = vmatprep.subr.bf16.mxu0 0
        %2528 = vmatpush1.bf16.msra.mxu0 %v2496
        %2529 = vmatprep.subr.bf16.mxu0 0
        %2530 = vmatpush1.bf16.msra.mxu0 %v2495
        %2531 = vmatprep.subr.bf16.mxu0 0
        %2532 = vmatpush1.bf16.msra.mxu0 %v2494
        %2533 = vmatprep.subr.bf16.mxu0 0
        %2534 = vmatpush1.bf16.msra.mxu0 %v2493
        %2535 = vmatprep.subr.bf16.mxu0 0
        %2536 = vmatpush1.bf16.msra.mxu0 %v2492
        %2537 = vmatprep.subr.bf16.mxu0 0
        %2538 = vmatpush1.bf16.msra.mxu0 %v2491
        %2539 = vmatprep.subr.bf16.mxu0 0
        %2540 = vmatpush2.bf16.msra.mxu0 %v2506
        %2541 = vmatprep.subr.bf16.mxu0 0
        %2542 = vmatpush2.bf16.msra.mxu0 %v2505
        %2543 = vmatprep.subr.bf16.mxu0 0
        %2544 = vmatpush2.bf16.msra.mxu0 %v2504
        %2545 = vmatprep.subr.bf16.mxu0 0
        %2546 = vmatpush2.bf16.msra.mxu0 %v2503
        %2547 = vmatprep.subr.bf16.mxu0 0
        %2548 = vmatpush2.bf16.msra.mxu0 %v2502
        %2549 = vmatprep.subr.bf16.mxu0 0
        %2550 = vmatpush2.bf16.msra.mxu0 %v2501
        %2551 = vmatprep.subr.bf16.mxu0 0
        %2552 = vmatpush2.bf16.msra.mxu0 %v2500
        %2553 = vmatprep.subr.bf16.mxu0 0
        %2554 = vmatpush2.bf16.msra.mxu0 %v2499
        %2555 = vmatprep.mubr.bf16.mxu0 %v2387
        %2556 = vmatmul.mubr.bf16.gmra.mxu0 %v2386
        %v2557 = vpop.f32.mrf.mxu0
        %v2558 = vadd.f32 %v2425, %v2557
        %v2559 = vpop.f32.mrf.mxu0
        %v2560 = vpop.f32.mrf.mxu0
        %v2561 = vadd.f32 %v2425, %v2560
        %v2562 = vpop.f32.mrf.mxu0
        %2563 = vdwg.mxu0
        %v2564 = vadd.f32 %v2196, %v2558
        %v2565 = vadd.f32 %v2197, %v2561
        %v2566 = vld [vmem:[%s1157] sm:$0x1]
        %v2567 = vld [vmem:[%s1160] sm:$0x1]
        %2568 = vadd.xlane.f32.xlu0 %v2564
        %v2569 = vpop.xlane.xlu0 %2568
        %2570 = vadd.xlane.f32.xlu0 %v2565
        %v2571 = vpop.xlane.xlu0 %2570
        %v2572 = vmul.f32 %v2569, %v2163
        %v2573 = vmul.f32 %v2571, %v2163
        %v2574 = vsub.f32 %v2564, %v2572
        %v2575 = vsub.f32 %v2565, %v2573
        %v2576 = vmul.f32 %v2574, %v2574
        %v2577 = vmul.f32 %v2575, %v2575
        %2578 = vadd.xlane.f32.xlu0 %v2576
        %v2579 = vpop.xlane.xlu0 %2578
        %2580 = vadd.xlane.f32.xlu0 %v2577
        %v2581 = vpop.xlane.xlu0 %2580
        %v2582 = vmul.f32 %v2579, %v2163
        %v2583 = vmul.f32 %v2581, %v2163
        %v2584 = vadd.f32 %v2582, 1e-12
        %v2585 = vadd.f32 %v2583, 1e-12
        %v2586 = vrsqrt.pop %v2584
        %v2587 = vrsqrt.pop %v2585
        %v2588 = vmul.f32 %v2574, %v2586
        %v2589 = vmul.f32 %v2575, %v2587
        %v2591 = vlaneseq
        %v2592 = vshrl.u32 %v2591, 7
        %v2593 = vsub.s32 0, %v2592
        %v2594 = vrot.slane %v2566, %v2593
        %v2596 = vmul.f32 %v2588, %v2594
        %v2597 = vmul.f32 %v2589, %v2594
        %v2599 = vlaneseq
        %v2600 = vshrl.u32 %v2599, 7
        %v2601 = vsub.s32 0, %v2600
        %v2602 = vrot.slane %v2567, %v2601
        %v2604 = vadd.f32 %v2596, %v2602
        %v2605 = vadd.f32 %v2597, %v2602
        %2606 = vst [vmem:[#allocation2] sm:$0xff] %v2604
        %2607 = vst [vmem:[#allocation2 + $0x8] sm:$0xff] %v2605
        %p2608 = scmp.eq.s32.totalorder %s53, 1
        // Predicated region
        $region145: #{tpu_custom_call.1} parent=115 // pred_check
          %p2609 = pneg %p2608
        $region146: #{tpu_custom_call.1} parent=115 // pred_check_branch
          %2611 = sbr.rel (%p2609) target = $region148
        $region147: #{tpu_custom_call.1} parent=115 // pred_region
          %v2612 = vrot.slane %v2604, 4
          %v2613 = vadd.f32 %v2604, %v2612
          %v2614 = vrot.slane %v2613, 2
          %v2615 = vadd.f32 %v2613, %v2614
          %v2616 = vrot.slane %v2615, 1
          %v2617 = vadd.f32 %v2615, %v2616
          %v2618 = vrot.slane %v2605, 4
          %v2619 = vadd.f32 %v2605, %v2618
          %v2620 = vrot.slane %v2619, 2
          %v2621 = vadd.f32 %v2619, %v2620
          %v2622 = vrot.slane %v2621, 1
          %v2623 = vadd.f32 %v2621, %v2622
          %v2624 = vrcp.pop 8.0
          %v2625 = vmul.f32 %v2617, %v2624
          %v2626 = vmul.f32 %v2623, %v2624
          %v2627 = vpack.c.bf16 %v2625, %v2625
          %v2628 = vpack.c.bf16 %v2626, %v2626
          %v2629 = vld [vmem:[%s22] sm:$0xf]
          %v2630 = vld [vmem:[%s22 + $0x4] sm:$0xf]
          %v2631 = vld [vmem:[%s22 + $0x8] sm:$0xf]
          %v2632 = vld [vmem:[%s22 + $0xc] sm:$0xf]
          %v2633 = vld [vmem:[%s22 + $0x10] sm:$0xf]
          %v2634 = vld [vmem:[%s22 + $0x14] sm:$0xf]
          %v2635 = vld [vmem:[%s22 + $0x18] sm:$0xf]
          %v2636 = vld [vmem:[%s22 + $0x1c] sm:$0xf]
          %v2637 = vld [vmem:[%s22 + $0x20] sm:$0xf]
          %v2638 = vld [vmem:[%s22 + $0x24] sm:$0xf]
          %v2639 = vld [vmem:[%s22 + $0x28] sm:$0xf]
          %v2640 = vld [vmem:[%s22 + $0x2c] sm:$0xf]
          %v2641 = vld [vmem:[%s22 + $0x30] sm:$0xf]
          %v2642 = vld [vmem:[%s22 + $0x34] sm:$0xf]
          %v2643 = vld [vmem:[%s22 + $0x38] sm:$0xf]
          %v2644 = vld [vmem:[%s22 + $0x3c] sm:$0xf]
          %v2645 = vld [vmem:[%s23] sm:$0x1]
          %v2647 = vlaneseq
          %v2648 = vshrl.u32 %v2647, 7
          %v2649 = vsub.s32 0, %v2648
          %v2650 = vrot.slane %v2645, %v2649
          %v2654 = vunpack.c.l.b16 %v2627
          %v2655 = vunpack.c.l.b16 %v2628
          %vm2656 = vcmask 1041409
          %v2657 = vsel %vm2656, %v2655, %v2654
          %v2658 = vpack.c.b16 %v2657, %v2657
          %v2676 = vunpack.c.l.b16 %v2629
          %v2677 = vunpack.c.l.b16 %v2630
          %v2678 = vunpack.c.l.b16 %v2631
          %v2679 = vunpack.c.l.b16 %v2632
          %v2680 = vunpack.c.l.b16 %v2633
          %v2681 = vunpack.c.l.b16 %v2634
          %v2682 = vunpack.c.l.b16 %v2635
          %v2683 = vunpack.c.l.b16 %v2636
          %v2684 = vunpack.c.l.b16 %v2637
          %v2685 = vunpack.c.l.b16 %v2638
          %v2686 = vunpack.c.l.b16 %v2639
          %v2687 = vunpack.c.l.b16 %v2640
          %v2688 = vunpack.c.l.b16 %v2641
          %v2689 = vunpack.c.l.b16 %v2642
          %v2690 = vunpack.c.l.b16 %v2643
          %v2691 = vunpack.c.l.b16 %v2644
          %v2692 = vpack.c.b16 %v2677, %v2676
          %v2693 = vpack.c.b16 %v2679, %v2678
          %v2694 = vpack.c.b16 %v2681, %v2680
          %v2695 = vpack.c.b16 %v2683, %v2682
          %v2696 = vpack.c.b16 %v2685, %v2684
          %v2697 = vpack.c.b16 %v2687, %v2686
          %v2698 = vpack.c.b16 %v2689, %v2688
          %v2699 = vpack.c.b16 %v2691, %v2690
          %2708 = vmatprep.subr.bf16.mxu0 0
          %2709 = vmatpush1.bf16.msra.mxu0 %v2699
          %2710 = vmatprep.subr.bf16.mxu0 0
          %2711 = vmatpush1.bf16.msra.mxu0 %v2698
          %2712 = vmatprep.subr.bf16.mxu0 0
          %2713 = vmatpush1.bf16.msra.mxu0 %v2697
          %2714 = vmatprep.subr.bf16.mxu0 0
          %2715 = vmatpush1.bf16.msra.mxu0 %v2696
          %2716 = vmatprep.subr.bf16.mxu0 0
          %2717 = vmatpush1.bf16.msra.mxu0 %v2695
          %2718 = vmatprep.subr.bf16.mxu0 0
          %2719 = vmatpush1.bf16.msra.mxu0 %v2694
          %2720 = vmatprep.subr.bf16.mxu0 0
          %2721 = vmatpush1.bf16.msra.mxu0 %v2693
          %2722 = vmatprep.subr.bf16.mxu0 0
          %2723 = vmatpush1.bf16.msra.mxu0 %v2692
          %2724 = vmatprep.subr.bf16.mxu0 0
          %2725 = vmatpush2.bf16.msra.mxu0 0
          %2726 = vmatprep.subr.bf16.mxu0 0
          %2727 = vmatpush2.bf16.msra.mxu0 0
          %2728 = vmatprep.subr.bf16.mxu0 0
          %2729 = vmatpush2.bf16.msra.mxu0 0
          %2730 = vmatprep.subr.bf16.mxu0 0
          %2731 = vmatpush2.bf16.msra.mxu0 0
          %2732 = vmatprep.subr.bf16.mxu0 0
          %2733 = vmatpush2.bf16.msra.mxu0 0
          %2734 = vmatprep.subr.bf16.mxu0 0
          %2735 = vmatpush2.bf16.msra.mxu0 0
          %2736 = vmatprep.subr.bf16.mxu0 0
          %2737 = vmatpush2.bf16.msra.mxu0 0
          %2738 = vmatprep.subr.bf16.mxu0 0
          %2739 = vmatpush2.bf16.msra.mxu0 0
          %2740 = vmatprep.mubr.bf16.mxu0 0
          %2741 = vmatmul.mubr.bf16.gmra.mxu0 %v2658
          %v2742 = vpop.f32.mrf.mxu0
          %v2743 = vadd.f32 %v2650, %v2742
          %v2744 = vpop.f32.mrf.mxu0
          %v2745 = vpop.f32.mrf.mxu0
          %v2746 = vpop.f32.mrf.mxu0
          %2747 = vdwg.mxu0
          %vm2748 = vcmask 9216
          %2749 = vst.msk [vmem:[#allocation15] sm:$0x3] %vm2748, %v2743
        $region148: #{tpu_custom_call.1} parent=115 // pred_fallthru
          _
        // Predicated region
        $region149: #{tpu_custom_call.1} parent=115 // pred_check
          %p2750 = pneg %p677
        $region150: #{tpu_custom_call.1} parent=115 // pred_check_branch
          %2752 = sbr.rel (%p2750) target = $region152
        $region151: #{tpu_custom_call.1} parent=115 // pred_region
          %s2754 = ssub.s32 32, 32
          %2755 = vsyncadd [#allocation6], %s2754
          %s2756 = smul.addr %s52, 32
          %s2757 = scalar_lea.hbm %s24, %s2756
          %s2759 = sshll.u32 [#allocation15], 4
          %s2760 = int_to_ptr.vmem [resolvable:$true] %s2759
          %2762 = dma.vmem_to_hbm [thread:$0]  %s2760, 32, %s2757, [#allocation6]
        $region152: #{tpu_custom_call.1} parent=115 // pred_fallthru
          _
        // Predicated region
        $region153: #{tpu_custom_call.1} parent=115 // pred_check
          %p2763 = pneg %p677
        $region154: #{tpu_custom_call.1} parent=115 // pred_check_branch
          %2765 = sbr.rel (%p2763) target = $region156
        $region155: #{tpu_custom_call.1} parent=115 // pred_region
          %2766 = dma.done [#allocation6], 32
        $region156: #{tpu_custom_call.1} parent=115 // pred_fallthru
          _
      $region116: #{tpu_custom_call.1} parent=5 // pred_fallthru
        _
      %p2767 = scmp.le.s32.totalorder 2, %s43
      // Predicated region
      $region157: #{tpu_custom_call.1} parent=5 // pred_check
        %p2768 = pneg %p2767
      $region158: #{tpu_custom_call.1} parent=5 // pred_check_branch
        %2770 = sbr.rel (%p2768) target = $region160
      $region159: #{tpu_custom_call.1} parent=5 // pred_region
        %s2771 = ssub.s32 %s43, 2
      $region160: #{tpu_custom_call.1} parent=5 // pred_fallthru
        _
    $region6: #{tpu_custom_call.1} parent=1 // loop_footer
      %s47 = sadd.s32 1, %s43
    $region7: #{tpu_custom_call.1} parent=1 // loop_footer_branch
      %42 = sbr.rel target = $region3
    $region8: #{tpu_custom_call.1} parent=1 // loop_exit
      _
    %2772 = vsyncpa [#allocation5], 1
    %s2773 = scalar_lea.sflag [#allocation5], 1
    %2774 = vsyncpa %s2773, 1
    %2775 = vsyncpa [#allocation8], 1
    %s2776 = scalar_lea.sflag [#allocation8], 1
    %2777 = vsyncpa %s2776, 1
    %2778 = vsyncpa [#allocation11], 1
    %s2779 = scalar_lea.sflag [#allocation11], 1
    %2780 = vsyncpa %s2779, 1
    %2781 = vsyncpa [#allocation14], 1
    %s2782 = scalar_lea.sflag [#allocation14], 1
    %2783 = vsyncpa %s2782, 1
    %2784 = vsyncpa [#allocation6], 1
    %s2785 = scalar_lea.sflag [#allocation6], 1
    %2786 = vsyncpa %s2785, 1

</llo_original>
